<compile_context>
chip_gen: v7x
topology: tpu7x:2x2x1
jax: 0.10.0
libtpu: 0.0.40
codegen_flags: <defaults>
</compile_context>

<pallas_src>
import math
from functools import partial

import jax
import jax.numpy as jnp
from jax import lax
from jax.experimental import pallas as pl
from jax.experimental.pallas import tpu as pltpu


def _vmem_limit_bytes():
    # Generation-aware scoped-VMEM budget: ~3/4 of physical (v5e/v6e 128 MiB ->
    # 96 MiB, v7x 64 MiB -> 48 MiB); conservative 32 MiB fallback.
    try:
        info = pltpu.get_tpu_info()
        cap = getattr(info, "vmem_capacity_bytes", None)
        if cap:
            return int(min(cap * 3 // 4, 96 * 1024 * 1024))
    except Exception:
        pass
    return 32 * 1024 * 1024


_VMEM_LIMIT = _vmem_limit_bytes()


def _pick_tn(n):
    # Lane-dense output tiles.  Small/medium N -> single N step (fewer, fatter
    # kernels); otherwise largest multiple-of-128 divisor capped at 512 so the
    # 256-wide v6e/v7x MXU stays full without tripling the grid-step count.
    if n <= 1024:
        return n
    for tn in (512, 384, 256, 128):
        if n % tn == 0:
            return tn
    return n


def _pick_tm(m):
    return m if m <= 1024 else 1024


def _gelu(x):
    # tanh-approx GELU (EUP slot); nn.GELU() exact erf differs by <1e-3.
    c = math.sqrt(2.0 / math.pi)
    return 0.5 * x * (1.0 + jnp.tanh(c * (x + 0.044715 * x * x * x)))


# ----------------------------------------------------------------------------
# Pallas kernels
# ----------------------------------------------------------------------------
def _mm_kernel(x_ref, w_ref, b_ref, o_ref, *, act):
    # o = act(x @ w + b); bf16 inputs, f32 accumulation.
    acc = jnp.dot(x_ref[...], w_ref[...], preferred_element_type=jnp.float32)
    acc = acc + b_ref[...]
    if act == "gelu":
        acc = _gelu(acc)
    o_ref[...] = acc.astype(o_ref.dtype)


def _ln_mm_kernel(x_ref, g_ref, bln_ref, w_ref, b_ref, o_ref, *, act, eps):
    # o = act(LayerNorm(x) @ w + b) — LN fused into the matmul prologue
    # (K is whole in the x block, so per-row stats are exact); stats in f32.
    x = x_ref[...].astype(jnp.float32)
    mean = jnp.mean(x, axis=-1, keepdims=True)
    xc = x - mean
    var = jnp.mean(xc * xc, axis=-1, keepdims=True)
    xn = (xc * lax.rsqrt(var + eps) * g_ref[...] + bln_ref[...]).astype(x_ref.dtype)
    acc = jnp.dot(xn, w_ref[...], preferred_element_type=jnp.float32)
    acc = acc + b_ref[...]
    if act == "gelu":
        acc = _gelu(acc)
    o_ref[...] = acc.astype(o_ref.dtype)


def _mm_res_kernel(x_ref, w_ref, b_ref, ls_ref, r_ref, o_ref):
    # o = residual + layerscale * (x @ w + b)   (fused branch epilogue)
    acc = jnp.dot(x_ref[...], w_ref[...], preferred_element_type=jnp.float32)
    acc = (acc + b_ref[...]) * ls_ref[...] + r_ref[...].astype(jnp.float32)
    o_ref[...] = acc.astype(o_ref.dtype)


def _attention_kernel(q_ref, k_ref, v_ref, o_ref, m_sc, l_sc, acc_sc,
                      *, scale, t_kv, kv_len):
    # Flash-style attention for one (batch, head, q-tile): KV tiles arrive on
    # the innermost ("arbitrary") grid axis; online softmax state in f32 VMEM
    # scratch; normalization deferred until the final KV tile.
    kv = pl.program_id(3)

    @pl.when(kv == 0)
    def _():
        m_sc[...] = jnp.full_like(m_sc, -jnp.inf)
        l_sc[...] = jnp.zeros_like(l_sc)
        acc_sc[...] = jnp.zeros_like(acc_sc)

    # Fold the 1/sqrt(head_dim) scale into q (Tq x Dh) instead of the scores.
    q = (q_ref[0].astype(jnp.float32) * scale).astype(q_ref.dtype)
    k = k_ref[0]
    v = v_ref[0]
    s = lax.dot_general(q, k, (((1,), (1,)), ((), ())),
                        preferred_element_type=jnp.float32)        # (Tq, TKV)

    if kv_len % t_kv != 0:
        # Ragged last KV tile: mask padded columns and zero padded V rows so
        # out-of-bounds garbage can never contaminate the accumulation.
        kv_start = kv * t_kv
        col = kv_start + lax.broadcasted_iota(jnp.int32, s.shape, 1)
        s = jnp.where(col < kv_len, s, -1e30)
        row = kv_start + lax.broadcasted_iota(jnp.int32, (v.shape[0], 1), 0)
        v = jnp.where(row < kv_len, v, jnp.zeros_like(v))

    m_prev = m_sc[...]
    m_new = jnp.maximum(m_prev, jnp.max(s, axis=-1, keepdims=True))
    alpha = jnp.exp(m_prev - m_new)
    p = jnp.exp(s - m_new)
    l_sc[...] = alpha * l_sc[...] + jnp.sum(p, axis=-1, keepdims=True)
    acc_sc[...] = alpha * acc_sc[...] + jnp.dot(p.astype(v.dtype), v,
                                                preferred_element_type=jnp.float32)
    m_sc[...] = m_new

    @pl.when(kv == pl.num_programs(3) - 1)
    def _():
        inv_l = pl.reciprocal(l_sc[...], approx=True)
        o_ref[0] = (acc_sc[...] * inv_l).astype(o_ref.dtype)


# ----------------------------------------------------------------------------
# Pallas wrappers
# ----------------------------------------------------------------------------
def matmul_bias(x, w, b, *, act=None, ln=None, ls=None, residual=None):
    """x:(M,K) bf16, w:(K,N) bf16, b:(N,) f32.
    Optional fused LayerNorm prologue (ln=(gamma,beta)) or fused GELU /
    LayerScale+residual epilogues.  Returns (M,N) in x.dtype."""
    M, K = x.shape
    K2, N = w.shape
    assert K == K2
    assert not (ln is not None and residual is not None)

    TM = _pick_tm(M)
    TN = _pick_tn(N)
    grid_m = (M + TM - 1) // TM
    grid_n = (N + TN - 1) // TN
    grid = (grid_m, grid_n)

    b2 = b.reshape(1, N).astype(jnp.float32)
    cp = pltpu.CompilerParams(dimension_semantics=("parallel", "parallel"),
                              vmem_limit_bytes=_VMEM_LIMIT)

    x_spec = pl.BlockSpec((TM, K), lambda i, j: (i, 0))
    w_kwargs = {}
    if grid_n > 1:
        # Weight tiles actually stream across the inner axis: triple-buffer.
        w_kwargs["pipeline_mode"] = pl.Buffered(3)
    w_spec = pl.BlockSpec((K, TN), lambda i, j: (0, j), **w_kwargs)
    b_spec = pl.BlockSpec((1, TN), lambda i, j: (0, j))
    out_spec = pl.BlockSpec((TM, TN), lambda i, j: (i, j))
    out_shape = jax.ShapeDtypeStruct((M, N), x.dtype)

    if residual is not None:
        ls2 = ls.reshape(1, N).astype(jnp.float32)
        r_spec = pl.BlockSpec((TM, TN), lambda i, j: (i, j))
        return pl.pallas_call(
            _mm_res_kernel,
            out_shape=out_shape,
            grid=grid,
            in_specs=[x_spec, w_spec, b_spec, b_spec, r_spec],
            out_specs=out_spec,
            compiler_params=cp,
        )(x, w, b2, ls2, residual)

    if ln is not None:
        g2 = ln[0].reshape(1, K).astype(jnp.float32)
        bln2 = ln[1].reshape(1, K).astype(jnp.float32)
        ln_spec = pl.BlockSpec((1, K), lambda i, j: (0, 0))
        return pl.pallas_call(
            partial(_ln_mm_kernel, act=act, eps=1e-6),
            out_shape=out_shape,
            grid=grid,
            in_specs=[x_spec, ln_spec, ln_spec, w_spec, b_spec],
            out_specs=out_spec,
            compiler_params=cp,
        )(x, g2, bln2, w, b2)

    return pl.pallas_call(
        partial(_mm_kernel, act=act),
        out_shape=out_shape,
        grid=grid,
        in_specs=[x_spec, w_spec, b_spec],
        out_specs=out_spec,
        compiler_params=cp,
    )(x, w, b2)


def attention(qkv3d, num_heads):
    """qkv3d:(B, T, 3*D) bf16 in the PyTorch (3, heads, head_dim) column order.
    Head slices are selected by BlockSpec index_maps (no transposes); per-head
    output is written directly in concatenated-heads (B, T, D) layout.
    Flash-style KV tiling keeps VMEM usage resolution independent."""
    B, T, threeD = qkv3d.shape
    D = threeD // 3
    H = num_heads
    Dh = D // H
    scale = Dh ** -0.5
    # TODO(synk): for head_dim < 128 (real DINOv2 ViT-S/B has Dh=64) pack
    # 128 // Dh heads per grid step for lane-dense output stores.
    TQ = T if T <= 512 else 512
    TKV = T if T <= 512 else 512
    nq = (T + TQ - 1) // TQ
    nkv = (T + TKV - 1) // TKV

    return pl.pallas_call(
        partial(_attention_kernel, scale=scale, t_kv=TKV, kv_len=T),
        out_shape=jax.ShapeDtypeStruct((B, T, D), qkv3d.dtype),
        grid=(B, H, nq, nkv),
        in_specs=[
            pl.BlockSpec((1, TQ, Dh), lambda b, h, qi, ki: (b, qi, h)),          # q
            pl.BlockSpec((1, TKV, Dh), lambda b, h, qi, ki: (b, ki, H + h)),     # k
            pl.BlockSpec((1, TKV, Dh), lambda b, h, qi, ki: (b, ki, 2 * H + h)), # v
        ],
        out_specs=pl.BlockSpec((1, TQ, Dh), lambda b, h, qi, ki: (b, qi, h)),
        scratch_shapes=[
            pltpu.VMEM((TQ, 1), jnp.float32),    # running max m
            pltpu.VMEM((TQ, 1), jnp.float32),    # running denom l
            pltpu.VMEM((TQ, Dh), jnp.float32),   # output accumulator
        ],
        compiler_params=pltpu.CompilerParams(
            dimension_semantics=("parallel", "parallel", "parallel", "arbitrary"),
            vmem_limit_bytes=_VMEM_LIMIT),
    )(qkv3d, qkv3d, qkv3d)


# ----------------------------------------------------------------------------
# ViT (DINOv2-style) parameters + forward
# ----------------------------------------------------------------------------
def init_params(key, *, in_chans, patch, embed_dim, depth, num_heads,
                mlp_hidden, num_reg, num_patches):
    keystate = [key]

    def nxt():
        keystate[0], sub = jax.random.split(keystate[0])
        return sub

    def w(shape, scale=0.02, dtype=jnp.bfloat16):
        return (scale * jax.random.normal(nxt(), shape, jnp.float32)).astype(dtype)

    D = embed_dim
    # NOTE: matmul weights are stored (in_features, out_features); loading real
    # PyTorch nn.Linear / Conv2d weights would require a transpose/reshape.
    params = {
        "patch_w": w((patch * patch * in_chans, D)),
        "patch_b": w((D,), dtype=jnp.float32),
        "cls_token": w((1, 1, D)),
        "register_tokens": w((1, max(num_reg, 1), D)),
        "pos_embed": w((1, 1 + num_patches, D)),
        "blocks": [],
    }
    for _ in range(depth):
        params["blocks"].append({
            "ln1_g": jnp.ones((D,), jnp.float32),
            "ln1_b": jnp.zeros((D,), jnp.float32),
            "qkv_w": w((D, 3 * D)),
            "qkv_b": w((3 * D,), dtype=jnp.float32),
            "proj_w": w((D, D)),
            "proj_b": w((D,), dtype=jnp.float32),
            "ls1": jnp.full((D,), 0.1, jnp.float32),
            "ln2_g": jnp.ones((D,), jnp.float32),
            "ln2_b": jnp.zeros((D,), jnp.float32),
            "fc1_w": w((D, mlp_hidden)),
            "fc1_b": w((mlp_hidden,), dtype=jnp.float32),
            "fc2_w": w((mlp_hidden, D)),
            "fc2_b": w((D,), dtype=jnp.float32),
            "ls2": jnp.full((D,), 0.1, jnp.float32),
        })
    return params


def vit_block(x2d, p, num_heads, B, T):
    D = x2d.shape[1]
    # Attention branch: (LN fused into) QKV matmul -> flash attention -> proj
    # with LayerScale + residual fused into the proj matmul.
    qkv = matmul_bias(x2d, p["qkv_w"], p["qkv_b"], ln=(p["ln1_g"], p["ln1_b"]))
    attn = attention(qkv.reshape(B, T, 3 * D), num_heads)        # (B, T, D)
    x2d = matmul_bias(attn.reshape(B * T, D), p["proj_w"], p["proj_b"],
                      ls=p["ls1"], residual=x2d)
    # MLP branch: (LN fused into) fc1(+GELU fused) -> fc2(+LayerScale+residual).
    h = matmul_bias(x2d, p["fc1_w"], p["fc1_b"], act="gelu",
                    ln=(p["ln2_g"], p["ln2_b"]))
    x2d = matmul_bias(h, p["fc2_w"], p["fc2_b"], ls=p["ls2"], residual=x2d)
    return x2d


def dino_extractor_forward(params, x_nchw, *, patch, num_heads, num_reg,
                           extraction_blocks):
    B, C, Hi, Wi = x_nchw.shape
    gh, gw = Hi // patch, Wi // patch
    Np = gh * gw
    D = params["pos_embed"].shape[-1]

    # Patch embed: Conv2d(C, D, k=patch, s=patch) == per-patch flatten + matmul.
    # Cast to bf16 before the transposes to halve their HBM traffic.
    x = x_nchw.astype(jnp.bfloat16)
    x = jnp.transpose(x, (0, 2, 3, 1))                           # NHWC
    x = x.reshape(B, gh, patch, gw, patch, C)
    x = jnp.transpose(x, (0, 1, 3, 2, 4, 5)).reshape(B * Np, patch * patch * C)
    tok = matmul_bias(x, params["patch_w"], params["patch_b"]).reshape(B, Np, D)

    # Token assembly (DINOv2 prepare_tokens_with_masks): cls + pos-embed, then
    # register tokens inserted after the cls token (no pos-embed on registers).
    # TODO(synk): bicubic pos-embed interpolation for non-native grid sizes is
    # not implemented; pos_embed is built for this grid.
    cls = jnp.broadcast_to(params["cls_token"], (B, 1, D))
    t = jnp.concatenate([cls, tok], axis=1) + params["pos_embed"]
    if num_reg:
        reg = jnp.broadcast_to(params["register_tokens"][:, :num_reg], (B, num_reg, D))
        t = jnp.concatenate([t[:, :1], reg, t[:, 1:]], axis=1)
    T = 1 + num_reg + Np
    x2d = t.reshape(B * T, D)

    # Run the blocks; the reference collects each block's output via a forward
    # hook and strips cls+register tokens from the requested blocks.
    collected = {}
    for i, blk in enumerate(params["blocks"]):
        x2d = vit_block(x2d, blk, num_heads, B, T)
        if i in extraction_blocks:
            collected[i] = x2d.reshape(B, T, D)[:, 1 + num_reg:]
    # TODO(synk): dinov2's final norm + head are skipped — only the hooked
    # block outputs are returned by the reference.
    return [collected[i] for i in extraction_blocks]


# ----------------------------------------------------------------------------
if __name__ == "__main__":
    # Small DINOv2-style config (real dinov2_vits14: patch 14, dim 384, 12 blocks).
    B, C, S = 2, 3, 32
    patch = 8
    embed_dim, depth, num_heads = 256, 12, 2          # head_dim = 128 (lane-aligned)
    mlp_hidden = 4 * embed_dim
    num_reg = 4
    extraction_blocks = (2, 5, 8, 11)
    Np = (S // patch) * (S // patch)

    key = jax.random.PRNGKey(0)
    kx, kp = jax.random.split(key)
    x = jax.random.normal(kx, (B, C, S, S), jnp.float32)          # NCHW image
    params = init_params(kp, in_chans=C, patch=patch, embed_dim=embed_dim,
                         depth=depth, num_heads=num_heads, mlp_hidden=mlp_hidden,
                         num_reg=num_reg, num_patches=Np)

    fwd = jax.jit(partial(dino_extractor_forward, patch=patch, num_heads=num_heads,
                          num_reg=num_reg, extraction_blocks=extraction_blocks))
    outs = jax.block_until_ready(fwd(params, x))

    assert len(outs) == len(extraction_blocks)
    for o in outs:
        assert o.shape == (B, Np, embed_dim), o.shape
        assert bool(jnp.all(jnp.isfinite(o.astype(jnp.float32))))
    print("KERNEL_OK")
</pallas_src>

<mosaic_0001>
module attributes {stable_mosaic.version = 11 : i64} {
  func.func @_mm_kernel(%arg0: i32, %arg1: i32, %arg2: memref<32x192xbf16, #tpu.memory_space<vmem>>, %arg3: memref<192x256xbf16, #tpu.memory_space<vmem>>, %arg4: memref<1x256xf32, #tpu.memory_space<vmem>>, %arg5: memref<32x256xbf16, #tpu.memory_space<vmem>>) attributes {dimension_semantics = [#tpu.dimension_semantics<parallel>, #tpu.dimension_semantics<parallel>], iteration_bounds = array<i64: 1, 1>, scalar_prefetch = 0 : i64, scratch_operands = 0 : i64, tpu.core_type = #tpu.core_type<tc>, window_params = [{transform_indices = @transform_0, window_bounds = array<i64: 32, 192>}, {transform_indices = @transform_1, window_bounds = array<i64: 192, 256>}, {transform_indices = @transform_2, window_bounds = array<i64: 1, 256>}, {transform_indices = @transform_3, window_bounds = array<i64: 32, 256>}]} {
    %c0 = arith.constant 0 : index
    %c0_0 = arith.constant 0 : index
    %0 = vector.load %arg2[%c0, %c0_0] : memref<32x192xbf16, #tpu.memory_space<vmem>>, vector<32x192xbf16>
    %c0_1 = arith.constant 0 : index
    %c0_2 = arith.constant 0 : index
    %1 = vector.load %arg3[%c0_1, %c0_2] : memref<192x256xbf16, #tpu.memory_space<vmem>>, vector<192x256xbf16>
    %cst = arith.constant dense<0.000000e+00> : vector<32x256xf32>
    %2 = tpu.matmul %0, %1, %cst {dimension_numbers = #tpu.dot_dimension_numbers<[1], [0], [0], [1], [0, 0, 1, 1], [], []>} : vector<32x192xbf16>, vector<192x256xbf16>, vector<32x256xf32> -> vector<32x256xf32>
    %c0_3 = arith.constant 0 : index
    %c0_4 = arith.constant 0 : index
    %3 = vector.load %arg4[%c0_3, %c0_4] : memref<1x256xf32, #tpu.memory_space<vmem>>, vector<1x256xf32>
    %4 = vector.broadcast %3 : vector<1x256xf32> to vector<32x256xf32>
    %5 = arith.addf %2, %4 : vector<32x256xf32>
    %6 = arith.truncf %5 : vector<32x256xf32> to vector<32x256xbf16>
    %c0_5 = arith.constant 0 : index
    %c0_6 = arith.constant 0 : index
    %7 = vector.load %arg5[%c0_5, %c0_6] : memref<32x256xbf16, #tpu.memory_space<vmem>>, vector<32x256xbf16>
    tpu.vector_store %arg5[%c0_5, %c0_6], %6 {strides = array<i32>} : memref<32x256xbf16, #tpu.memory_space<vmem>>, vector<32x256xbf16>,
    return
  }
  func.func @transform_0(%arg0: i32, %arg1: i32) -> (i32, i32) {
    %c0_i32 = arith.constant 0 : i32
    %c0_i32_0 = arith.constant 0 : i32
    return %arg0, %c0_i32 : i32, i32
  }
  func.func @transform_1(%arg0: i32, %arg1: i32) -> (i32, i32) {
    %c0_i32 = arith.constant 0 : i32
    %c0_i32_0 = arith.constant 0 : i32
    return %c0_i32, %arg1 : i32, i32
  }
  func.func @transform_2(%arg0: i32, %arg1: i32) -> (i32, i32) {
    %c0_i32 = arith.constant 0 : i32
    %c0_i32_0 = arith.constant 0 : i32
    return %c0_i32, %arg1 : i32, i32
  }
  func.func @transform_3(%arg0: i32, %arg1: i32) -> (i32, i32) {
    %c0_i32 = arith.constant 0 : i32
    return %arg0, %arg1 : i32, i32
  }
}

module attributes {stable_mosaic.version = 11 : i64} {
  func.func @_ln_mm_kernel(%arg0: i32, %arg1: i32, %arg2: memref<42x256xbf16, #tpu.memory_space<vmem>>, %arg3: memref<1x256xf32, #tpu.memory_space<vmem>>, %arg4: memref<1x256xf32, #tpu.memory_space<vmem>>, %arg5: memref<256x768xbf16, #tpu.memory_space<vmem>>, %arg6: memref<1x768xf32, #tpu.memory_space<vmem>>, %arg7: memref<42x768xbf16, #tpu.memory_space<vmem>>) attributes {dimension_semantics = [#tpu.dimension_semantics<parallel>, #tpu.dimension_semantics<parallel>], iteration_bounds = array<i64: 1, 1>, scalar_prefetch = 0 : i64, scratch_operands = 0 : i64, tpu.core_type = #tpu.core_type<tc>, window_params = [{transform_indices = @transform_0, window_bounds = array<i64: 42, 256>}, {pipeline_mode = #tpu.pipeline_mode<synchronous>, transform_indices = @transform_1, window_bounds = array<i64: 1, 256>}, {pipeline_mode = #tpu.pipeline_mode<synchronous>, transform_indices = @transform_2, window_bounds = array<i64: 1, 256>}, {transform_indices = @transform_3, window_bounds = array<i64: 256, 768>}, {transform_indices = @transform_4, window_bounds = array<i64: 1, 768>}, {transform_indices = @transform_5, window_bounds = array<i64: 42, 768>}]} {
    %c0 = arith.constant 0 : index
    %c0_0 = arith.constant 0 : index
    %0 = vector.load %arg2[%c0, %c0_0] : memref<42x256xbf16, #tpu.memory_space<vmem>>, vector<42x256xbf16>
    %1 = arith.extf %0 : vector<42x256xbf16> to vector<42x256xf32>
    %cst = arith.constant dense<0.000000e+00> : vector<42xf32>
    %2 = vector.multi_reduction <add>, %1, %cst [1] : vector<42x256xf32> to vector<42xf32>
    %3 = vector.shape_cast %2 : vector<42xf32> to vector<42x1xf32>
    %cst_1 = arith.constant 2.560000e+02 : f32
    %4 = vector.broadcast %cst_1 : f32 to vector<42x1xf32>
    %5 = arith.divf %3, %4 : vector<42x1xf32>
    %6 = vector.broadcast %5 : vector<42x1xf32> to vector<42x256xf32>
    %7 = arith.subf %1, %6 : vector<42x256xf32>
    %8 = arith.mulf %7, %7 : vector<42x256xf32>
    %cst_2 = arith.constant dense<0.000000e+00> : vector<42xf32>
    %9 = vector.multi_reduction <add>, %8, %cst_2 [1] : vector<42x256xf32> to vector<42xf32>
    %10 = vector.shape_cast %9 : vector<42xf32> to vector<42x1xf32>
    %cst_3 = arith.constant 2.560000e+02 : f32
    %11 = vector.broadcast %cst_3 : f32 to vector<42x1xf32>
    %12 = arith.divf %10, %11 : vector<42x1xf32>
    %cst_4 = arith.constant 9.99999997E-7 : f32
    %13 = vector.broadcast %cst_4 : f32 to vector<42x1xf32>
    %14 = arith.addf %12, %13 : vector<42x1xf32>
    %15 = math.rsqrt %14 : vector<42x1xf32>
    %16 = vector.broadcast %15 : vector<42x1xf32> to vector<42x256xf32>
    %17 = arith.mulf %7, %16 : vector<42x256xf32>
    %c0_5 = arith.constant 0 : index
    %c0_6 = arith.constant 0 : index
    %18 = vector.load %arg3[%c0_5, %c0_6] : memref<1x256xf32, #tpu.memory_space<vmem>>, vector<1x256xf32>
    %19 = vector.broadcast %18 : vector<1x256xf32> to vector<42x256xf32>
    %20 = arith.mulf %17, %19 : vector<42x256xf32>
    %c0_7 = arith.constant 0 : index
    %c0_8 = arith.constant 0 : index
    %21 = vector.load %arg4[%c0_7, %c0_8] : memref<1x256xf32, #tpu.memory_space<vmem>>, vector<1x256xf32>
    %22 = vector.broadcast %21 : vector<1x256xf32> to vector<42x256xf32>
    %23 = arith.addf %20, %22 : vector<42x256xf32>
    %24 = arith.truncf %23 : vector<42x256xf32> to vector<42x256xbf16>
    %c0_9 = arith.constant 0 : index
    %c0_10 = arith.constant 0 : index
    %25 = vector.load %arg5[%c0_9, %c0_10] : memref<256x768xbf16, #tpu.memory_space<vmem>>, vector<256x768xbf16>
    %cst_11 = arith.constant dense<0.000000e+00> : vector<42x768xf32>
    %26 = tpu.matmul %24, %25, %cst_11 {dimension_numbers = #tpu.dot_dimension_numbers<[1], [0], [0], [1], [0, 0, 1, 1], [], []>} : vector<42x256xbf16>, vector<256x768xbf16>, vector<42x768xf32> -> vector<42x768xf32>
    %c0_12 = arith.constant 0 : index
    %c0_13 = arith.constant 0 : index
    %27 = vector.load %arg6[%c0_12, %c0_13] : memref<1x768xf32, #tpu.memory_space<vmem>>, vector<1x768xf32>
    %28 = vector.broadcast %27 : vector<1x768xf32> to vector<42x768xf32>
    %29 = arith.addf %26, %28 : vector<42x768xf32>
    %30 = arith.truncf %29 : vector<42x768xf32> to vector<42x768xbf16>
    %c0_14 = arith.constant 0 : index
    %c0_15 = arith.constant 0 : index
    %31 = vector.load %arg7[%c0_14, %c0_15] : memref<42x768xbf16, #tpu.memory_space<vmem>>, vector<42x768xbf16>
    tpu.vector_store %arg7[%c0_14, %c0_15], %30 {strides = array<i32>} : memref<42x768xbf16, #tpu.memory_space<vmem>>, vector<42x768xbf16>,
    return
  }
  func.func @transform_0(%arg0: i32, %arg1: i32) -> (i32, i32) {
    %c0_i32 = arith.constant 0 : i32
    %c0_i32_0 = arith.constant 0 : i32
    return %arg0, %c0_i32 : i32, i32
  }
  func.func @transform_1(%arg0: i32, %arg1: i32) -> (i32, i32) {
    %c0_i32 = arith.constant 0 : i32
    %c0_i32_0 = arith.constant 0 : i32
    %c0_i32_1 = arith.constant 0 : i32
    return %c0_i32, %c0_i32_0 : i32, i32
  }
  func.func @transform_2(%arg0: i32, %arg1: i32) -> (i32, i32) {
    %c0_i32 = arith.constant 0 : i32
    %c0_i32_0 = arith.constant 0 : i32
    %c0_i32_1 = arith.constant 0 : i32
    return %c0_i32, %c0_i32_0 : i32, i32
  }
  func.func @transform_3(%arg0: i32, %arg1: i32) -> (i32, i32) {
    %c0_i32 = arith.constant 0 : i32
    %c0_i32_0 = arith.constant 0 : i32
    return %c0_i32, %arg1 : i32, i32
  }
  func.func @transform_4(%arg0: i32, %arg1: i32) -> (i32, i32) {
    %c0_i32 = arith.constant 0 : i32
    %c0_i32_0 = arith.constant 0 : i32
    return %c0_i32, %arg1 : i32, i32
  }
  func.func @transform_5(%arg0: i32, %arg1: i32) -> (i32, i32) {
    %c0_i32 = arith.constant 0 : i32
    return %arg0, %arg1 : i32, i32
  }
}

module attributes {stable_mosaic.version = 11 : i64} {
  func.func @_attention_kernel(%arg0: i32, %arg1: i32, %arg2: i32, %arg3: i32, %arg4: memref<1x21x128xbf16, #tpu.memory_space<vmem>>, %arg5: memref<1x21x128xbf16, #tpu.memory_space<vmem>>, %arg6: memref<1x21x128xbf16, #tpu.memory_space<vmem>>, %arg7: memref<1x21x128xbf16, #tpu.memory_space<vmem>>, %arg8: memref<21x1xf32, #tpu.memory_space<vmem>>, %arg9: memref<21x1xf32, #tpu.memory_space<vmem>>, %arg10: memref<21x128xf32, #tpu.memory_space<vmem>>) attributes {dimension_semantics = [#tpu.dimension_semantics<parallel>, #tpu.dimension_semantics<parallel>, #tpu.dimension_semantics<parallel>, #tpu.dimension_semantics<arbitrary>], iteration_bounds = array<i64: 2, 2, 1, 1>, scalar_prefetch = 0 : i64, scratch_operands = 3 : i64, tpu.core_type = #tpu.core_type<tc>, window_params = [{transform_indices = @transform_0, window_bounds = array<i64: 1, 21, 128>}, {transform_indices = @transform_1, window_bounds = array<i64: 1, 21, 128>}, {transform_indices = @transform_2, window_bounds = array<i64: 1, 21, 128>}, {transform_indices = @transform_3, window_bounds = array<i64: 1, 21, 128>}]} {
    %c0_i32 = arith.constant 0 : i32
    %0 = arith.cmpi eq, %arg3, %c0_i32 : i32
    %1 = arith.extui %0 : i1 to i32
    %c0_i32_0 = arith.constant 0 : i32
    %2 = arith.cmpi ne, %1, %c0_i32_0 : i32
    scf.if %2 {
      %cst_27 = arith.constant 0xFF800000 : f32
      %40 = vector.broadcast %cst_27 : f32 to vector<21x1xf32>
      %c0_28 = arith.constant 0 : index
      %c0_29 = arith.constant 0 : index
      %41 = vector.load %arg8[%c0_28, %c0_29] : memref<21x1xf32, #tpu.memory_space<vmem>>, vector<21x1xf32>
      tpu.vector_store %arg8[%c0_28, %c0_29], %40 {strides = array<i32>} : memref<21x1xf32, #tpu.memory_space<vmem>>, vector<21x1xf32>,
      %cst_30 = arith.constant 0.000000e+00 : f32
      %42 = vector.broadcast %cst_30 : f32 to vector<21x1xf32>
      %c0_31 = arith.constant 0 : index
      %c0_32 = arith.constant 0 : index
      %43 = vector.load %arg9[%c0_31, %c0_32] : memref<21x1xf32, #tpu.memory_space<vmem>>, vector<21x1xf32>
      tpu.vector_store %arg9[%c0_31, %c0_32], %42 {strides = array<i32>} : memref<21x1xf32, #tpu.memory_space<vmem>>, vector<21x1xf32>,
      %cst_33 = arith.constant 0.000000e+00 : f32
      %44 = vector.broadcast %cst_33 : f32 to vector<21x128xf32>
      %c0_34 = arith.constant 0 : index
      %c0_35 = arith.constant 0 : index
      %45 = vector.load %arg10[%c0_34, %c0_35] : memref<21x128xf32, #tpu.memory_space<vmem>>, vector<21x128xf32>
      tpu.vector_store %arg10[%c0_34, %c0_35], %44 {strides = array<i32>} : memref<21x128xf32, #tpu.memory_space<vmem>>, vector<21x128xf32>,
    } else {
    }
    %c0 = arith.constant 0 : index
    %c0_1 = arith.constant 0 : index
    %c0_2 = arith.constant 0 : index
    %3 = vector.load %arg4[%c0, %c0_1, %c0_2] : memref<1x21x128xbf16, #tpu.memory_space<vmem>>, vector<1x21x128xbf16>
    %4 = vector.shape_cast %3 : vector<1x21x128xbf16> to vector<21x128xbf16>
    %5 = arith.extf %4 : vector<21x128xbf16> to vector<21x128xf32>
    %cst = arith.constant 0.0883883461 : f32
    %6 = vector.broadcast %cst : f32 to vector<21x128xf32>
    %7 = arith.mulf %5, %6 : vector<21x128xf32>
    %8 = arith.truncf %7 : vector<21x128xf32> to vector<21x128xbf16>
    %c0_3 = arith.constant 0 : index
    %c0_4 = arith.constant 0 : index
    %c0_5 = arith.constant 0 : index
    %9 = vector.load %arg5[%c0_3, %c0_4, %c0_5] : memref<1x21x128xbf16, #tpu.memory_space<vmem>>, vector<1x21x128xbf16>
    %10 = vector.shape_cast %9 : vector<1x21x128xbf16> to vector<21x128xbf16>
    %c0_6 = arith.constant 0 : index
    %c0_7 = arith.constant 0 : index
    %c0_8 = arith.constant 0 : index
    %11 = vector.load %arg6[%c0_6, %c0_7, %c0_8] : memref<1x21x128xbf16, #tpu.memory_space<vmem>>, vector<1x21x128xbf16>
    %12 = vector.shape_cast %11 : vector<1x21x128xbf16> to vector<21x128xbf16>
    %cst_9 = arith.constant dense<0.000000e+00> : vector<21x21xf32>
    %13 = tpu.matmul %8, %10, %cst_9 {dimension_numbers = #tpu.dot_dimension_numbers<[1], [1], [0], [0], [0, 0, 1, 0], [], []>} : vector<21x128xbf16>, vector<21x128xbf16>, vector<21x21xf32> -> vector<21x21xf32>
    %c0_10 = arith.constant 0 : index
    %c0_11 = arith.constant 0 : index
    %14 = vector.load %arg8[%c0_10, %c0_11] : memref<21x1xf32, #tpu.memory_space<vmem>>, vector<21x1xf32>
    %cst_12 = arith.constant dense<0xFF800000> : vector<21xf32>
    %15 = vector.multi_reduction <maximumf>, %13, %cst_12 [1] : vector<21x21xf32> to vector<21xf32>
    %16 = vector.shape_cast %15 : vector<21xf32> to vector<21x1xf32>
    %17 = arith.maximumf %14, %16 : vector<21x1xf32>
    %18 = arith.subf %14, %17 : vector<21x1xf32>
    %19 = math.exp %18 : vector<21x1xf32>
    %20 = vector.broadcast %17 : vector<21x1xf32> to vector<21x21xf32>
    %21 = arith.subf %13, %20 : vector<21x21xf32>
    %22 = math.exp %21 : vector<21x21xf32>
    %c0_13 = arith.constant 0 : index
    %c0_14 = arith.constant 0 : index
    %23 = vector.load %arg9[%c0_13, %c0_14] : memref<21x1xf32, #tpu.memory_space<vmem>>, vector<21x1xf32>
    %24 = arith.mulf %19, %23 : vector<21x1xf32>
    %cst_15 = arith.constant dense<0.000000e+00> : vector<21xf32>
    %25 = vector.multi_reduction <add>, %22, %cst_15 [1] : vector<21x21xf32> to vector<21xf32>
    %26 = vector.shape_cast %25 : vector<21xf32> to vector<21x1xf32>
    %27 = arith.addf %24, %26 : vector<21x1xf32>
    %c0_16 = arith.constant 0 : index
    %c0_17 = arith.constant 0 : index
    %28 = vector.load %arg9[%c0_16, %c0_17] : memref<21x1xf32, #tpu.memory_space<vmem>>, vector<21x1xf32>
    tpu.vector_store %arg9[%c0_16, %c0_17], %27 {strides = array<i32>} : memref<21x1xf32, #tpu.memory_space<vmem>>, vector<21x1xf32>,
    %c0_18 = arith.constant 0 : index
    %c0_19 = arith.constant 0 : index
    %29 = vector.load %arg10[%c0_18, %c0_19] : memref<21x128xf32, #tpu.memory_space<vmem>>, vector<21x128xf32>
    %30 = vector.broadcast %19 : vector<21x1xf32> to vector<21x128xf32>
    %31 = arith.mulf %30, %29 : vector<21x128xf32>
    %32 = arith.truncf %22 : vector<21x21xf32> to vector<21x21xbf16>
    %cst_20 = arith.constant dense<0.000000e+00> : vector<21x128xf32>
    %33 = tpu.matmul %32, %12, %cst_20 {dimension_numbers = #tpu.dot_dimension_numbers<[1], [0], [0], [1], [0, 0, 1, 1], [], []>} : vector<21x21xbf16>, vector<21x128xbf16>, vector<21x128xf32> -> vector<21x128xf32>
    %34 = arith.addf %31, %33 : vector<21x128xf32>
    %c0_21 = arith.constant 0 : index
    %c0_22 = arith.constant 0 : index
    %35 = vector.load %arg10[%c0_21, %c0_22] : memref<21x128xf32, #tpu.memory_space<vmem>>, vector<21x128xf32>
    tpu.vector_store %arg10[%c0_21, %c0_22], %34 {strides = array<i32>} : memref<21x128xf32, #tpu.memory_space<vmem>>, vector<21x128xf32>,
    %c0_23 = arith.constant 0 : index
    %c0_24 = arith.constant 0 : index
    %36 = vector.load %arg8[%c0_23, %c0_24] : memref<21x1xf32, #tpu.memory_space<vmem>>, vector<21x1xf32>
    tpu.vector_store %arg8[%c0_23, %c0_24], %17 {strides = array<i32>} : memref<21x1xf32, #tpu.memory_space<vmem>>, vector<21x1xf32>,
    %c0_i32_25 = arith.constant 0 : i32
    %37 = arith.cmpi eq, %arg3, %c0_i32_25 : i32
    %38 = arith.extui %37 : i1 to i32
    %c0_i32_26 = arith.constant 0 : i32
    %39 = arith.cmpi ne, %38, %c0_i32_26 : i32
    scf.if %39 {
      %c0_27 = arith.constant 0 : index
      %c0_28 = arith.constant 0 : index
      %40 = vector.load %arg9[%c0_27, %c0_28] : memref<21x1xf32, #tpu.memory_space<vmem>>, vector<21x1xf32>
      %41 = tpu.reciprocal %40 {approx = true} : vector<21x1xf32> -> vector<21x1xf32>
      %c0_29 = arith.constant 0 : index
      %c0_30 = arith.constant 0 : index
      %42 = vector.load %arg10[%c0_29, %c0_30] : memref<21x128xf32, #tpu.memory_space<vmem>>, vector<21x128xf32>
      %43 = vector.broadcast %41 : vector<21x1xf32> to vector<21x128xf32>
      %44 = arith.mulf %42, %43 : vector<21x128xf32>
      %45 = arith.truncf %44 : vector<21x128xf32> to vector<21x128xbf16>
      %c0_31 = arith.constant 0 : index
      %c0_32 = arith.constant 0 : index
      %c0_33 = arith.constant 0 : index
      %46 = vector.load %arg7[%c0_31, %c0_32, %c0_33] : memref<1x21x128xbf16, #tpu.memory_space<vmem>>, vector<1x21x128xbf16>
      %47 = vector.shape_cast %46 : vector<1x21x128xbf16> to vector<21x128xbf16>
      %48 = vector.shape_cast %45 : vector<21x128xbf16> to vector<1x21x128xbf16>
      tpu.vector_store %arg7[%c0_31, %c0_32, %c0_33], %48 {strides = array<i32>} : memref<1x21x128xbf16, #tpu.memory_space<vmem>>, vector<1x21x128xbf16>,
    } else {
    }
    return
  }
  func.func @transform_0(%arg0: i32, %arg1: i32, %arg2: i32, %arg3: i32) -> (i32, i32, i32) {
    %c0_i32 = arith.constant 0 : i32
    return %arg0, %arg2, %arg1 : i32, i32, i32
  }
  func.func @transform_1(%arg0: i32, %arg1: i32, %arg2: i32, %arg3: i32) -> (i32, i32, i32) {
    %c2_i32 = arith.constant 2 : i32
    %0 = arith.addi %c2_i32, %arg1 : i32
    %c0_i32 = arith.constant 0 : i32
    return %arg0, %arg3, %0 : i32, i32, i32
  }
  func.func @transform_2(%arg0: i32, %arg1: i32, %arg2: i32, %arg3: i32) -> (i32, i32, i32) {
    %c4_i32 = arith.constant 4 : i32
    %0 = arith.addi %c4_i32, %arg1 : i32
    %c0_i32 = arith.constant 0 : i32
    return %arg0, %arg3, %0 : i32, i32, i32
  }
  func.func @transform_3(%arg0: i32, %arg1: i32, %arg2: i32, %arg3: i32) -> (i32, i32, i32) {
    %c0_i32 = arith.constant 0 : i32
    return %arg0, %arg2, %arg1 : i32, i32, i32
  }
}

module attributes {stable_mosaic.version = 11 : i64} {
  func.func @_mm_res_kernel(%arg0: i32, %arg1: i32, %arg2: memref<42x256xbf16, #tpu.memory_space<vmem>>, %arg3: memref<256x256xbf16, #tpu.memory_space<vmem>>, %arg4: memref<1x256xf32, #tpu.memory_space<vmem>>, %arg5: memref<1x256xf32, #tpu.memory_space<vmem>>, %arg6: memref<42x256xbf16, #tpu.memory_space<vmem>>, %arg7: memref<42x256xbf16, #tpu.memory_space<vmem>>) attributes {dimension_semantics = [#tpu.dimension_semantics<parallel>, #tpu.dimension_semantics<parallel>], iteration_bounds = array<i64: 1, 1>, scalar_prefetch = 0 : i64, scratch_operands = 0 : i64, tpu.core_type = #tpu.core_type<tc>, window_params = [{transform_indices = @transform_0, window_bounds = array<i64: 42, 256>}, {transform_indices = @transform_1, window_bounds = array<i64: 256, 256>}, {transform_indices = @transform_2, window_bounds = array<i64: 1, 256>}, {transform_indices = @transform_3, window_bounds = array<i64: 1, 256>}, {transform_indices = @transform_4, window_bounds = array<i64: 42, 256>}, {transform_indices = @transform_5, window_bounds = array<i64: 42, 256>}]} {
    %c0 = arith.constant 0 : index
    %c0_0 = arith.constant 0 : index
    %0 = vector.load %arg2[%c0, %c0_0] : memref<42x256xbf16, #tpu.memory_space<vmem>>, vector<42x256xbf16>
    %c0_1 = arith.constant 0 : index
    %c0_2 = arith.constant 0 : index
    %1 = vector.load %arg3[%c0_1, %c0_2] : memref<256x256xbf16, #tpu.memory_space<vmem>>, vector<256x256xbf16>
    %cst = arith.constant dense<0.000000e+00> : vector<42x256xf32>
    %2 = tpu.matmul %0, %1, %cst {dimension_numbers = #tpu.dot_dimension_numbers<[1], [0], [0], [1], [0, 0, 1, 1], [], []>} : vector<42x256xbf16>, vector<256x256xbf16>, vector<42x256xf32> -> vector<42x256xf32>
    %c0_3 = arith.constant 0 : index
    %c0_4 = arith.constant 0 : index
    %3 = vector.load %arg4[%c0_3, %c0_4] : memref<1x256xf32, #tpu.memory_space<vmem>>, vector<1x256xf32>
    %4 = vector.broadcast %3 : vector<1x256xf32> to vector<42x256xf32>
    %5 = arith.addf %2, %4 : vector<42x256xf32>
    %c0_5 = arith.constant 0 : index
    %c0_6 = arith.constant 0 : index
    %6 = vector.load %arg5[%c0_5, %c0_6] : memref<1x256xf32, #tpu.memory_space<vmem>>, vector<1x256xf32>
    %7 = vector.broadcast %6 : vector<1x256xf32> to vector<42x256xf32>
    %8 = arith.mulf %5, %7 : vector<42x256xf32>
    %c0_7 = arith.constant 0 : index
    %c0_8 = arith.constant 0 : index
    %9 = vector.load %arg6[%c0_7, %c0_8] : memref<42x256xbf16, #tpu.memory_space<vmem>>, vector<42x256xbf16>
    %10 = arith.extf %9 : vector<42x256xbf16> to vector<42x256xf32>
    %11 = arith.addf %8, %10 : vector<42x256xf32>
    %12 = arith.truncf %11 : vector<42x256xf32> to vector<42x256xbf16>
    %c0_9 = arith.constant 0 : index
    %c0_10 = arith.constant 0 : index
    %13 = vector.load %arg7[%c0_9, %c0_10] : memref<42x256xbf16, #tpu.memory_space<vmem>>, vector<42x256xbf16>
    tpu.vector_store %arg7[%c0_9, %c0_10], %12 {strides = array<i32>} : memref<42x256xbf16, #tpu.memory_space<vmem>>, vector<42x256xbf16>,
    return
  }
  func.func @transform_0(%arg0: i32, %arg1: i32) -> (i32, i32) {
    %c0_i32 = arith.constant 0 : i32
    %c0_i32_0 = arith.constant 0 : i32
    return %arg0, %c0_i32 : i32, i32
  }
  func.func @transform_1(%arg0: i32, %arg1: i32) -> (i32, i32) {
    %c0_i32 = arith.constant 0 : i32
    %c0_i32_0 = arith.constant 0 : i32
    return %c0_i32, %arg1 : i32, i32
  }
  func.func @transform_2(%arg0: i32, %arg1: i32) -> (i32, i32) {
    %c0_i32 = arith.constant 0 : i32
    %c0_i32_0 = arith.constant 0 : i32
    return %c0_i32, %arg1 : i32, i32
  }
  func.func @transform_3(%arg0: i32, %arg1: i32) -> (i32, i32) {
    %c0_i32 = arith.constant 0 : i32
    %c0_i32_0 = arith.constant 0 : i32
    return %c0_i32, %arg1 : i32, i32
  }
  func.func @transform_4(%arg0: i32, %arg1: i32) -> (i32, i32) {
    %c0_i32 = arith.constant 0 : i32
    return %arg0, %arg1 : i32, i32
  }
  func.func @transform_5(%arg0: i32, %arg1: i32) -> (i32, i32) {
    %c0_i32 = arith.constant 0 : i32
    return %arg0, %arg1 : i32, i32
  }
}

module attributes {stable_mosaic.version = 11 : i64} {
  func.func @_mm_res_kernel(%arg0: i32, %arg1: i32, %arg2: memref<42x1024xbf16, #tpu.memory_space<vmem>>, %arg3: memref<1024x256xbf16, #tpu.memory_space<vmem>>, %arg4: memref<1x256xf32, #tpu.memory_space<vmem>>, %arg5: memref<1x256xf32, #tpu.memory_space<vmem>>, %arg6: memref<42x256xbf16, #tpu.memory_space<vmem>>, %arg7: memref<42x256xbf16, #tpu.memory_space<vmem>>) attributes {dimension_semantics = [#tpu.dimension_semantics<parallel>, #tpu.dimension_semantics<parallel>], iteration_bounds = array<i64: 1, 1>, scalar_prefetch = 0 : i64, scratch_operands = 0 : i64, tpu.core_type = #tpu.core_type<tc>, window_params = [{transform_indices = @transform_0, window_bounds = array<i64: 42, 1024>}, {transform_indices = @transform_1, window_bounds = array<i64: 1024, 256>}, {transform_indices = @transform_2, window_bounds = array<i64: 1, 256>}, {transform_indices = @transform_3, window_bounds = array<i64: 1, 256>}, {transform_indices = @transform_4, window_bounds = array<i64: 42, 256>}, {transform_indices = @transform_5, window_bounds = array<i64: 42, 256>}]} {
    %c0 = arith.constant 0 : index
    %c0_0 = arith.constant 0 : index
    %0 = vector.load %arg2[%c0, %c0_0] : memref<42x1024xbf16, #tpu.memory_space<vmem>>, vector<42x1024xbf16>
    %c0_1 = arith.constant 0 : index
    %c0_2 = arith.constant 0 : index
    %1 = vector.load %arg3[%c0_1, %c0_2] : memref<1024x256xbf16, #tpu.memory_space<vmem>>, vector<1024x256xbf16>
    %cst = arith.constant dense<0.000000e+00> : vector<42x256xf32>
    %2 = tpu.matmul %0, %1, %cst {dimension_numbers = #tpu.dot_dimension_numbers<[1], [0], [0], [1], [0, 0, 1, 1], [], []>} : vector<42x1024xbf16>, vector<1024x256xbf16>, vector<42x256xf32> -> vector<42x256xf32>
    %c0_3 = arith.constant 0 : index
    %c0_4 = arith.constant 0 : index
    %3 = vector.load %arg4[%c0_3, %c0_4] : memref<1x256xf32, #tpu.memory_space<vmem>>, vector<1x256xf32>
    %4 = vector.broadcast %3 : vector<1x256xf32> to vector<42x256xf32>
    %5 = arith.addf %2, %4 : vector<42x256xf32>
    %c0_5 = arith.constant 0 : index
    %c0_6 = arith.constant 0 : index
    %6 = vector.load %arg5[%c0_5, %c0_6] : memref<1x256xf32, #tpu.memory_space<vmem>>, vector<1x256xf32>
    %7 = vector.broadcast %6 : vector<1x256xf32> to vector<42x256xf32>
    %8 = arith.mulf %5, %7 : vector<42x256xf32>
    %c0_7 = arith.constant 0 : index
    %c0_8 = arith.constant 0 : index
    %9 = vector.load %arg6[%c0_7, %c0_8] : memref<42x256xbf16, #tpu.memory_space<vmem>>, vector<42x256xbf16>
    %10 = arith.extf %9 : vector<42x256xbf16> to vector<42x256xf32>
    %11 = arith.addf %8, %10 : vector<42x256xf32>
    %12 = arith.truncf %11 : vector<42x256xf32> to vector<42x256xbf16>
    %c0_9 = arith.constant 0 : index
    %c0_10 = arith.constant 0 : index
    %13 = vector.load %arg7[%c0_9, %c0_10] : memref<42x256xbf16, #tpu.memory_space<vmem>>, vector<42x256xbf16>
    tpu.vector_store %arg7[%c0_9, %c0_10], %12 {strides = array<i32>} : memref<42x256xbf16, #tpu.memory_space<vmem>>, vector<42x256xbf16>,
    return
  }
  func.func @transform_0(%arg0: i32, %arg1: i32) -> (i32, i32) {
    %c0_i32 = arith.constant 0 : i32
    %c0_i32_0 = arith.constant 0 : i32
    return %arg0, %c0_i32 : i32, i32
  }
  func.func @transform_1(%arg0: i32, %arg1: i32) -> (i32, i32) {
    %c0_i32 = arith.constant 0 : i32
    %c0_i32_0 = arith.constant 0 : i32
    return %c0_i32, %arg1 : i32, i32
  }
  func.func @transform_2(%arg0: i32, %arg1: i32) -> (i32, i32) {
    %c0_i32 = arith.constant 0 : i32
    %c0_i32_0 = arith.constant 0 : i32
    return %c0_i32, %arg1 : i32, i32
  }
  func.func @transform_3(%arg0: i32, %arg1: i32) -> (i32, i32) {
    %c0_i32 = arith.constant 0 : i32
    %c0_i32_0 = arith.constant 0 : i32
    return %c0_i32, %arg1 : i32, i32
  }
  func.func @transform_4(%arg0: i32, %arg1: i32) -> (i32, i32) {
    %c0_i32 = arith.constant 0 : i32
    return %arg0, %arg1 : i32, i32
  }
  func.func @transform_5(%arg0: i32, %arg1: i32) -> (i32, i32) {
    %c0_i32 = arith.constant 0 : i32
    return %arg0, %arg1 : i32, i32
  }
}

module attributes {stable_mosaic.version = 11 : i64} {
  func.func @_ln_mm_kernel(%arg0: i32, %arg1: i32, %arg2: memref<42x256xbf16, #tpu.memory_space<vmem>>, %arg3: memref<1x256xf32, #tpu.memory_space<vmem>>, %arg4: memref<1x256xf32, #tpu.memory_space<vmem>>, %arg5: memref<256x1024xbf16, #tpu.memory_space<vmem>>, %arg6: memref<1x1024xf32, #tpu.memory_space<vmem>>, %arg7: memref<42x1024xbf16, #tpu.memory_space<vmem>>) attributes {dimension_semantics = [#tpu.dimension_semantics<parallel>, #tpu.dimension_semantics<parallel>], iteration_bounds = array<i64: 1, 1>, scalar_prefetch = 0 : i64, scratch_operands = 0 : i64, tpu.core_type = #tpu.core_type<tc>, window_params = [{transform_indices = @transform_0, window_bounds = array<i64: 42, 256>}, {pipeline_mode = #tpu.pipeline_mode<synchronous>, transform_indices = @transform_1, window_bounds = array<i64: 1, 256>}, {pipeline_mode = #tpu.pipeline_mode<synchronous>, transform_indices = @transform_2, window_bounds = array<i64: 1, 256>}, {transform_indices = @transform_3, window_bounds = array<i64: 256, 1024>}, {transform_indices = @transform_4, window_bounds = array<i64: 1, 1024>}, {transform_indices = @transform_5, window_bounds = array<i64: 42, 1024>}]} {
    %c0 = arith.constant 0 : index
    %c0_0 = arith.constant 0 : index
    %0 = vector.load %arg2[%c0, %c0_0] : memref<42x256xbf16, #tpu.memory_space<vmem>>, vector<42x256xbf16>
    %1 = arith.extf %0 : vector<42x256xbf16> to vector<42x256xf32>
    %cst = arith.constant dense<0.000000e+00> : vector<42xf32>
    %2 = vector.multi_reduction <add>, %1, %cst [1] : vector<42x256xf32> to vector<42xf32>
    %3 = vector.shape_cast %2 : vector<42xf32> to vector<42x1xf32>
    %cst_1 = arith.constant 2.560000e+02 : f32
    %4 = vector.broadcast %cst_1 : f32 to vector<42x1xf32>
    %5 = arith.divf %3, %4 : vector<42x1xf32>
    %6 = vector.broadcast %5 : vector<42x1xf32> to vector<42x256xf32>
    %7 = arith.subf %1, %6 : vector<42x256xf32>
    %8 = arith.mulf %7, %7 : vector<42x256xf32>
    %cst_2 = arith.constant dense<0.000000e+00> : vector<42xf32>
    %9 = vector.multi_reduction <add>, %8, %cst_2 [1] : vector<42x256xf32> to vector<42xf32>
    %10 = vector.shape_cast %9 : vector<42xf32> to vector<42x1xf32>
    %cst_3 = arith.constant 2.560000e+02 : f32
    %11 = vector.broadcast %cst_3 : f32 to vector<42x1xf32>
    %12 = arith.divf %10, %11 : vector<42x1xf32>
    %cst_4 = arith.constant 9.99999997E-7 : f32
    %13 = vector.broadcast %cst_4 : f32 to vector<42x1xf32>
    %14 = arith.addf %12, %13 : vector<42x1xf32>
    %15 = math.rsqrt %14 : vector<42x1xf32>
    %16 = vector.broadcast %15 : vector<42x1xf32> to vector<42x256xf32>
    %17 = arith.mulf %7, %16 : vector<42x256xf32>
    %c0_5 = arith.constant 0 : index
    %c0_6 = arith.constant 0 : index
    %18 = vector.load %arg3[%c0_5, %c0_6] : memref<1x256xf32, #tpu.memory_space<vmem>>, vector<1x256xf32>
    %19 = vector.broadcast %18 : vector<1x256xf32> to vector<42x256xf32>
    %20 = arith.mulf %17, %19 : vector<42x256xf32>
    %c0_7 = arith.constant 0 : index
    %c0_8 = arith.constant 0 : index
    %21 = vector.load %arg4[%c0_7, %c0_8] : memref<1x256xf32, #tpu.memory_space<vmem>>, vector<1x256xf32>
    %22 = vector.broadcast %21 : vector<1x256xf32> to vector<42x256xf32>
    %23 = arith.addf %20, %22 : vector<42x256xf32>
    %24 = arith.truncf %23 : vector<42x256xf32> to vector<42x256xbf16>
    %c0_9 = arith.constant 0 : index
    %c0_10 = arith.constant 0 : index
    %25 = vector.load %arg5[%c0_9, %c0_10] : memref<256x1024xbf16, #tpu.memory_space<vmem>>, vector<256x1024xbf16>
    %cst_11 = arith.constant dense<0.000000e+00> : vector<42x1024xf32>
    %26 = tpu.matmul %24, %25, %cst_11 {dimension_numbers = #tpu.dot_dimension_numbers<[1], [0], [0], [1], [0, 0, 1, 1], [], []>} : vector<42x256xbf16>, vector<256x1024xbf16>, vector<42x1024xf32> -> vector<42x1024xf32>
    %c0_12 = arith.constant 0 : index
    %c0_13 = arith.constant 0 : index
    %27 = vector.load %arg6[%c0_12, %c0_13] : memref<1x1024xf32, #tpu.memory_space<vmem>>, vector<1x1024xf32>
    %28 = vector.broadcast %27 : vector<1x1024xf32> to vector<42x1024xf32>
    %29 = arith.addf %26, %28 : vector<42x1024xf32>
    %cst_14 = arith.constant 5.000000e-01 : f32
    %30 = vector.broadcast %cst_14 : f32 to vector<42x1024xf32>
    %31 = arith.mulf %30, %29 : vector<42x1024xf32>
    %cst_15 = arith.constant 4.471500e-02 : f32
    %32 = vector.broadcast %cst_15 : f32 to vector<42x1024xf32>
    %33 = arith.mulf %32, %29 : vector<42x1024xf32>
    %34 = arith.mulf %33, %29 : vector<42x1024xf32>
    %35 = arith.mulf %34, %29 : vector<42x1024xf32>
    %36 = arith.addf %29, %35 : vector<42x1024xf32>
    %cst_16 = arith.constant 0.797884583 : f32
    %37 = vector.broadcast %cst_16 : f32 to vector<42x1024xf32>
    %38 = arith.mulf %37, %36 : vector<42x1024xf32>
    %39 = math.tanh %38 : vector<42x1024xf32>
    %cst_17 = arith.constant 1.000000e+00 : f32
    %40 = vector.broadcast %cst_17 : f32 to vector<42x1024xf32>
    %41 = arith.addf %40, %39 : vector<42x1024xf32>
    %42 = arith.mulf %31, %41 : vector<42x1024xf32>
    %43 = arith.truncf %42 : vector<42x1024xf32> to vector<42x1024xbf16>
    %c0_18 = arith.constant 0 : index
    %c0_19 = arith.constant 0 : index
    %44 = vector.load %arg7[%c0_18, %c0_19] : memref<42x1024xbf16, #tpu.memory_space<vmem>>, vector<42x1024xbf16>
    tpu.vector_store %arg7[%c0_18, %c0_19], %43 {strides = array<i32>} : memref<42x1024xbf16, #tpu.memory_space<vmem>>, vector<42x1024xbf16>,
    return
  }
  func.func @transform_0(%arg0: i32, %arg1: i32) -> (i32, i32) {
    %c0_i32 = arith.constant 0 : i32
    %c0_i32_0 = arith.constant 0 : i32
    return %arg0, %c0_i32 : i32, i32
  }
  func.func @transform_1(%arg0: i32, %arg1: i32) -> (i32, i32) {
    %c0_i32 = arith.constant 0 : i32
    %c0_i32_0 = arith.constant 0 : i32
    %c0_i32_1 = arith.constant 0 : i32
    return %c0_i32, %c0_i32_0 : i32, i32
  }
  func.func @transform_2(%arg0: i32, %arg1: i32) -> (i32, i32) {
    %c0_i32 = arith.constant 0 : i32
    %c0_i32_0 = arith.constant 0 : i32
    %c0_i32_1 = arith.constant 0 : i32
    return %c0_i32, %c0_i32_0 : i32, i32
  }
  func.func @transform_3(%arg0: i32, %arg1: i32) -> (i32, i32) {
    %c0_i32 = arith.constant 0 : i32
    %c0_i32_0 = arith.constant 0 : i32
    return %c0_i32, %arg1 : i32, i32
  }
  func.func @transform_4(%arg0: i32, %arg1: i32) -> (i32, i32) {
    %c0_i32 = arith.constant 0 : i32
    %c0_i32_0 = arith.constant 0 : i32
    return %c0_i32, %arg1 : i32, i32
  }
  func.func @transform_5(%arg0: i32, %arg1: i32) -> (i32, i32) {
    %c0_i32 = arith.constant 0 : i32
    return %arg0, %arg1 : i32, i32
  }
}

</mosaic_0001>

<llo_original>
// kernel: dino_extractor_forward.61
$region0: #{dino_extractor_forward.61}
  #allocation0 [shape = 'u32[]', space=smem, size = 0x4, offset = 0x4, fixed_abs, tag = 'smem constant byte address 0x4 - core index']
  #allocation1 [shape = 'u32[144,128]{1,0:T(1,128)}', space=vmem, size = 0x12000, scoped, tag = 'internal scratch']
  %s0 = inlined_call_operand.vmem [shape: bf16[32,192], index: 0, kind: input, shape index: {}]
  %s1 = inlined_call_operand.vmem [shape: bf16[192,256], index: 1, kind: input, shape index: {}]
  %s2 = inlined_call_operand.vmem [shape: f32[1,256], index: 2, kind: input, shape index: {}]
  %s3 = inlined_call_operand.vmem [shape: bf16[32,256], index: 3, kind: output, shape index: {}]
  %s4 = sld [smem:[#allocation0]]
  $region22: #{dino_extractor_forward.61} parent=0
    _
  %s6 = ssub.s32 1, %s4
  %s7 = scalar_select 0, %s6, %s4
  // Predicated region
  $region2: #{dino_extractor_forward.61} parent=0 // pred_check
    _
  $region3: #{dino_extractor_forward.61} parent=0 // pred_check_branch
    %9 = sbr.rel (0) target = $region5
  $region4: #{dino_extractor_forward.61} parent=0 // pred_region
    _
  $region5: #{dino_extractor_forward.61} parent=0 // pred_fallthru
    _
  // Predicated region
  $region6: #{dino_extractor_forward.61} parent=0 // pred_check
    _
  $region7: #{dino_extractor_forward.61} parent=0 // pred_check_branch
    %11 = sbr.rel (0) target = $region9
  $region8: #{dino_extractor_forward.61} parent=0 // pred_region
    _
  $region9: #{dino_extractor_forward.61} parent=0 // pred_fallthru
    _
  // Predicated region
  $region10: #{dino_extractor_forward.61} parent=0 // pred_check
    _
  $region11: #{dino_extractor_forward.61} parent=0 // pred_check_branch
    %13 = sbr.rel (0) target = $region13
  $region12: #{dino_extractor_forward.61} parent=0 // pred_region
    _
  $region13: #{dino_extractor_forward.61} parent=0 // pred_fallthru
    _
  %v15 = vld [vmem:[%s0] sm:$0xff]
  %v16 = vld [vmem:[%s0 + $0x8] sm:$0xff]
  %v17 = vld [vmem:[%s0 + $0x10] sm:$0xff]
  %v18 = vld [vmem:[%s0 + $0x18] sm:$0xff]
  %v19 = vld [vmem:[%s1] sm:$0xff]
  %v20 = vld [vmem:[%s1 + $0x8] sm:$0xff]
  %v21 = vld [vmem:[%s1 + $0x10] sm:$0xff]
  %v22 = vld [vmem:[%s1 + $0x18] sm:$0xff]
  %v23 = vld [vmem:[%s1 + $0x20] sm:$0xff]
  %v24 = vld [vmem:[%s1 + $0x28] sm:$0xff]
  %v25 = vld [vmem:[%s1 + $0x30] sm:$0xff]
  %v26 = vld [vmem:[%s1 + $0x38] sm:$0xff]
  %v27 = vld [vmem:[%s1 + $0x40] sm:$0xff]
  %v28 = vld [vmem:[%s1 + $0x48] sm:$0xff]
  %v29 = vld [vmem:[%s1 + $0x50] sm:$0xff]
  %v30 = vld [vmem:[%s1 + $0x58] sm:$0xff]
  %v31 = vld [vmem:[%s1 + $0x60] sm:$0xff]
  %v32 = vld [vmem:[%s1 + $0x68] sm:$0xff]
  %v33 = vld [vmem:[%s1 + $0x70] sm:$0xff]
  %v34 = vld [vmem:[%s1 + $0x78] sm:$0xff]
  %v35 = vld [vmem:[%s1 + $0x80] sm:$0xff]
  %v36 = vld [vmem:[%s1 + $0x88] sm:$0xff]
  %v37 = vld [vmem:[%s1 + $0x90] sm:$0xff]
  %v38 = vld [vmem:[%s1 + $0x98] sm:$0xff]
  %v39 = vld [vmem:[%s1 + $0xa0] sm:$0xff]
  %v40 = vld [vmem:[%s1 + $0xa8] sm:$0xff]
  %v41 = vld [vmem:[%s1 + $0xb0] sm:$0xff]
  %v42 = vld [vmem:[%s1 + $0xb8] sm:$0xff]
  %v43 = vld [vmem:[%s2] sm:$0x3]
  %v45 = vlaneseq
  %v46 = vshrl.u32 %v45, 7
  %v47 = vsub.s32 0, %v46
  %v48 = vrot.slane %v43, %v47
  %v49 = vlaneseq
  %v50 = vshrl.u32 %v49, 7
  %v51 = vsub.s32 1, %v50
  %v52 = vrot.slane %v43, %v51
  %v59 = vunpack.c.l.b16 %v15
  %v60 = vunpack.c.h.b16 %v15
  %v61 = vunpack.c.l.b16 %v16
  %v62 = vunpack.c.h.b16 %v16
  %v63 = vunpack.c.l.b16 %v17
  %v64 = vunpack.c.h.b16 %v17
  %v65 = vunpack.c.l.b16 %v18
  %v66 = vunpack.c.h.b16 %v18
  %v67 = vpack.c.b16 %v61, %v59
  %v68 = vpack.c.b16 %v62, %v60
  %v69 = vpack.c.b16 %v65, %v63
  %v70 = vpack.c.b16 %v66, %v64
  %v97 = vunpack.c.l.b16 %v19
  %v98 = vunpack.c.h.b16 %v19
  %v99 = vunpack.c.l.b16 %v20
  %v100 = vunpack.c.h.b16 %v20
  %v101 = vunpack.c.l.b16 %v21
  %v102 = vunpack.c.h.b16 %v21
  %v103 = vunpack.c.l.b16 %v22
  %v104 = vunpack.c.h.b16 %v22
  %v105 = vunpack.c.l.b16 %v23
  %v106 = vunpack.c.h.b16 %v23
  %v107 = vunpack.c.l.b16 %v24
  %v108 = vunpack.c.h.b16 %v24
  %v109 = vunpack.c.l.b16 %v25
  %v110 = vunpack.c.h.b16 %v25
  %v111 = vunpack.c.l.b16 %v26
  %v112 = vunpack.c.h.b16 %v26
  %v113 = vunpack.c.l.b16 %v27
  %v114 = vunpack.c.h.b16 %v27
  %v115 = vunpack.c.l.b16 %v28
  %v116 = vunpack.c.h.b16 %v28
  %v117 = vunpack.c.l.b16 %v29
  %v118 = vunpack.c.h.b16 %v29
  %v119 = vunpack.c.l.b16 %v30
  %v120 = vunpack.c.h.b16 %v30
  %v121 = vunpack.c.l.b16 %v31
  %v122 = vunpack.c.h.b16 %v31
  %v123 = vunpack.c.l.b16 %v32
  %v124 = vunpack.c.h.b16 %v32
  %v125 = vunpack.c.l.b16 %v33
  %v126 = vunpack.c.h.b16 %v33
  %v127 = vunpack.c.l.b16 %v34
  %v128 = vunpack.c.h.b16 %v34
  %v129 = vunpack.c.l.b16 %v35
  %v130 = vunpack.c.h.b16 %v35
  %v131 = vunpack.c.l.b16 %v36
  %v132 = vunpack.c.h.b16 %v36
  %v133 = vunpack.c.l.b16 %v37
  %v134 = vunpack.c.h.b16 %v37
  %v135 = vunpack.c.l.b16 %v38
  %v136 = vunpack.c.h.b16 %v38
  %v137 = vunpack.c.l.b16 %v39
  %v138 = vunpack.c.h.b16 %v39
  %v139 = vunpack.c.l.b16 %v40
  %v140 = vunpack.c.h.b16 %v40
  %v141 = vunpack.c.l.b16 %v41
  %v142 = vunpack.c.h.b16 %v41
  %v143 = vunpack.c.l.b16 %v42
  %v144 = vunpack.c.h.b16 %v42
  %v145 = vpack.c.b16 %v99, %v97
  %v146 = vpack.c.b16 %v100, %v98
  %v147 = vpack.c.b16 %v103, %v101
  %v148 = vpack.c.b16 %v104, %v102
  %v149 = vpack.c.b16 %v107, %v105
  %v150 = vpack.c.b16 %v108, %v106
  %v151 = vpack.c.b16 %v111, %v109
  %v152 = vpack.c.b16 %v112, %v110
  %v153 = vpack.c.b16 %v115, %v113
  %v154 = vpack.c.b16 %v116, %v114
  %v155 = vpack.c.b16 %v119, %v117
  %v156 = vpack.c.b16 %v120, %v118
  %v157 = vpack.c.b16 %v123, %v121
  %v158 = vpack.c.b16 %v124, %v122
  %v159 = vpack.c.b16 %v127, %v125
  %v160 = vpack.c.b16 %v128, %v126
  %v161 = vpack.c.b16 %v131, %v129
  %v162 = vpack.c.b16 %v132, %v130
  %v163 = vpack.c.b16 %v135, %v133
  %v164 = vpack.c.b16 %v136, %v134
  %v165 = vpack.c.b16 %v139, %v137
  %v166 = vpack.c.b16 %v140, %v138
  %v167 = vpack.c.b16 %v143, %v141
  %v168 = vpack.c.b16 %v144, %v142
  %vm193 = vcmask 523264
  %v195 = vsel %vm193, %v68, 0
  %v198 = vsel %vm193, %v70, 0
  %200 = vmatprep.subr.bf16.mxu0 %v146
  %201 = vmatpush1.bf16.msra.mxu0 %v145
  %202 = vmatprep.subr.bf16.mxu0 %v148
  %203 = vmatpush1.bf16.msra.mxu0 %v147
  %204 = vmatprep.subr.bf16.mxu0 %v150
  %205 = vmatpush1.bf16.msra.mxu0 %v149
  %206 = vmatprep.subr.bf16.mxu0 %v152
  %207 = vmatpush1.bf16.msra.mxu0 %v151
  %208 = vmatprep.subr.bf16.mxu0 %v154
  %209 = vmatpush1.bf16.msra.mxu0 %v153
  %210 = vmatprep.subr.bf16.mxu0 %v156
  %211 = vmatpush1.bf16.msra.mxu0 %v155
  %212 = vmatprep.subr.bf16.mxu0 %v158
  %213 = vmatpush1.bf16.msra.mxu0 %v157
  %214 = vmatprep.subr.bf16.mxu0 %v160
  %215 = vmatpush1.bf16.msra.mxu0 %v159
  %216 = vmatprep.subr.bf16.mxu0 %v162
  %217 = vmatpush1.bf16.msra.mxu0 %v161
  %218 = vmatprep.subr.bf16.mxu0 %v164
  %219 = vmatpush1.bf16.msra.mxu0 %v163
  %220 = vmatprep.subr.bf16.mxu0 %v166
  %221 = vmatpush1.bf16.msra.mxu0 %v165
  %222 = vmatprep.subr.bf16.mxu0 %v168
  %223 = vmatpush1.bf16.msra.mxu0 %v167
  %224 = vmatprep.subr.bf16.mxu0 0
  %225 = vmatpush1.bf16.msra.mxu0 0
  %226 = vmatprep.subr.bf16.mxu0 0
  %227 = vmatpush1.bf16.msra.mxu0 0
  %228 = vmatprep.subr.bf16.mxu0 0
  %229 = vmatpush1.bf16.msra.mxu0 0
  %230 = vmatprep.subr.bf16.mxu0 0
  %231 = vmatpush1.bf16.msra.mxu0 0
  %232 = vmatprep.mubr.bf16.mxu0 %v195
  %233 = vmatmul.mubr.bf16.gmra.mrb[0].mxu0 %v67
  %v234 = vpop.f32.mrb[0].mxu0
  %v235 = vadd.f32 %v48, %v234
  %v236 = vpop.f32.mrb[0].mxu0
  %v237 = vadd.f32 %v52, %v236
  %v238 = vpop.f32.mrb[0].mxu0
  %v239 = vadd.f32 %v48, %v238
  %v240 = vpop.f32.mrb[0].mxu0
  %v241 = vadd.f32 %v52, %v240
  %242 = vmatprep.mubr.bf16.mxu0 %v198
  %243 = vmatmul.mubr.bf16.gmra.mrb[0].mxu0 %v69
  %v244 = vpop.f32.mrb[0].mxu0
  %v245 = vadd.f32 %v48, %v244
  %v246 = vpop.f32.mrb[0].mxu0
  %v247 = vadd.f32 %v52, %v246
  %v248 = vpop.f32.mrb[0].mxu0
  %v249 = vadd.f32 %v48, %v248
  %v250 = vpop.f32.mrb[0].mxu0
  %v251 = vadd.f32 %v52, %v250
  %252 = vdwg.mxu0
  %v253 = vpack.c.bf16 %v239, %v235
  %v254 = vpack.c.bf16 %v241, %v237
  %v255 = vpack.c.bf16 %v249, %v245
  %v256 = vpack.c.bf16 %v251, %v247
  %v261 = vunpack.c.l.b16 %v253
  %v262 = vunpack.c.l.b16 %v254
  %v263 = vunpack.c.h.b16 %v253
  %v264 = vunpack.c.h.b16 %v254
  %v265 = vunpack.c.l.b16 %v255
  %v266 = vunpack.c.l.b16 %v256
  %v267 = vunpack.c.h.b16 %v255
  %v268 = vunpack.c.h.b16 %v256
  %v269 = vpack.c.b16 %v262, %v261
  %v270 = vpack.c.b16 %v264, %v263
  %v271 = vpack.c.b16 %v266, %v265
  %v272 = vpack.c.b16 %v268, %v267
  %277 = vst [vmem:[%s3] sm:$0xff] %v269
  %278 = vst [vmem:[%s3 + $0x8] sm:$0xff] %v270
  %279 = vst [vmem:[%s3 + $0x10] sm:$0xff] %v271
  %280 = vst [vmem:[%s3 + $0x18] sm:$0xff] %v272
  // Predicated region
  $region14: #{dino_extractor_forward.61} parent=0 // pred_check
    _
  $region15: #{dino_extractor_forward.61} parent=0 // pred_check_branch
    %282 = sbr.rel (0) target = $region17
  $region16: #{dino_extractor_forward.61} parent=0 // pred_region
    _
  $region17: #{dino_extractor_forward.61} parent=0 // pred_fallthru
    _
  // Predicated region
  $region18: #{dino_extractor_forward.61} parent=0 // pred_check
    _
  $region19: #{dino_extractor_forward.61} parent=0 // pred_check_branch
    %284 = sbr.rel (0) target = $region21
  $region20: #{dino_extractor_forward.61} parent=0 // pred_region
    _
  $region21: #{dino_extractor_forward.61} parent=0 // pred_fallthru
    _

// kernel: dino_extractor_forward.62
$region0: #{dino_extractor_forward.62}
  #allocation0 [shape = 'u32[]', space=smem, size = 0x4, offset = 0x4, fixed_abs, tag = 'smem constant byte address 0x4 - core index']
  #allocation1 [shape = 'u32[144,128]{1,0:T(1,128)}', space=vmem, size = 0x12000, scoped, tag = 'internal scratch']
  %s0 = inlined_call_operand.vmem [shape: bf16[42,256], index: 0, kind: input, shape index: {}]
  %s1 = inlined_call_operand.vmem [shape: f32[1,256], index: 1, kind: input, shape index: {}]
  %s2 = inlined_call_operand.vmem [shape: f32[1,256], index: 2, kind: input, shape index: {}]
  %s3 = inlined_call_operand.vmem [shape: bf16[256,768], index: 3, kind: input, shape index: {}]
  %s4 = inlined_call_operand.vmem [shape: f32[1,768], index: 4, kind: input, shape index: {}]
  %s5 = inlined_call_operand.vmem [shape: bf16[42,768], index: 5, kind: output, shape index: {}]
  %s6 = sld [smem:[#allocation0]]
  $region30: #{dino_extractor_forward.62} parent=0
    _
  %s8 = ssub.s32 1, %s6
  %s9 = scalar_select 0, %s8, %s6
  // Predicated region
  $region2: #{dino_extractor_forward.62} parent=0 // pred_check
    _
  $region3: #{dino_extractor_forward.62} parent=0 // pred_check_branch
    %11 = sbr.rel (0) target = $region5
  $region4: #{dino_extractor_forward.62} parent=0 // pred_region
    _
  $region5: #{dino_extractor_forward.62} parent=0 // pred_fallthru
    _
  // Predicated region
  $region6: #{dino_extractor_forward.62} parent=0 // pred_check
    _
  $region7: #{dino_extractor_forward.62} parent=0 // pred_check_branch
    %13 = sbr.rel (0) target = $region9
  $region8: #{dino_extractor_forward.62} parent=0 // pred_region
    _
  $region9: #{dino_extractor_forward.62} parent=0 // pred_fallthru
    _
  // Predicated region
  $region10: #{dino_extractor_forward.62} parent=0 // pred_check
    _
  $region11: #{dino_extractor_forward.62} parent=0 // pred_check_branch
    %15 = sbr.rel (0) target = $region13
  $region12: #{dino_extractor_forward.62} parent=0 // pred_region
    _
  $region13: #{dino_extractor_forward.62} parent=0 // pred_fallthru
    _
  // Predicated region
  $region14: #{dino_extractor_forward.62} parent=0 // pred_check
    _
  $region15: #{dino_extractor_forward.62} parent=0 // pred_check_branch
    %17 = sbr.rel (0) target = $region17
  $region16: #{dino_extractor_forward.62} parent=0 // pred_region
    _
  $region17: #{dino_extractor_forward.62} parent=0 // pred_fallthru
    _
  // Predicated region
  $region18: #{dino_extractor_forward.62} parent=0 // pred_check
    _
  $region19: #{dino_extractor_forward.62} parent=0 // pred_check_branch
    %19 = sbr.rel (0) target = $region21
  $region20: #{dino_extractor_forward.62} parent=0 // pred_region
    _
  $region21: #{dino_extractor_forward.62} parent=0 // pred_fallthru
    _
  %v20 = vld [vmem:[%s0] sm:$0xff]
  %v21 = vld [vmem:[%s0 + $0x8] sm:$0xff]
  %v22 = vld [vmem:[%s0 + $0x10] sm:$0xff]
  %v23 = vld [vmem:[%s0 + $0x18] sm:$0xff]
  %v24 = vld [vmem:[%s0 + $0x20] sm:$0xff]
  %v25 = vld [vmem:[%s0 + $0x28] sm:$0x11]
  %v26 = vunpack.c.l.bf16 %v20
  %v27 = vunpack.c.h.bf16 %v20
  %v28 = vunpack.c.l.bf16 %v21
  %v29 = vunpack.c.h.bf16 %v21
  %v30 = vunpack.c.l.bf16 %v22
  %v31 = vunpack.c.h.bf16 %v22
  %v32 = vunpack.c.l.bf16 %v23
  %v33 = vunpack.c.h.bf16 %v23
  %v34 = vunpack.c.l.bf16 %v24
  %v35 = vunpack.c.h.bf16 %v24
  %v36 = vunpack.c.l.bf16 %v25
  %v37 = vunpack.c.h.bf16 %v25
  %v38 = vadd.f32 %v26, %v27
  %39 = vadd.xlane.f32.xlu0 %v38
  %v40 = vpop.xlane.xlu0 %39
  %v41 = vadd.f32 %v28, %v29
  %42 = vadd.xlane.f32.xlu0 %v41
  %v43 = vpop.xlane.xlu0 %42
  %v44 = vadd.f32 %v30, %v31
  %45 = vadd.xlane.f32.xlu0 %v44
  %v46 = vpop.xlane.xlu0 %45
  %v47 = vadd.f32 %v32, %v33
  %48 = vadd.xlane.f32.xlu0 %v47
  %v49 = vpop.xlane.xlu0 %48
  %v50 = vadd.f32 %v34, %v35
  %51 = vadd.xlane.f32.xlu0 %v50
  %v52 = vpop.xlane.xlu0 %51
  %vm53 = vcmask 1041408
  %v54 = vsel %vm53, %v36, 0.0
  %v55 = vsel %vm53, %v37, 0.0
  %v56 = vadd.f32 %v54, %v55
  %57 = vadd.xlane.f32.xlu0 %v56
  %v58 = vpop.xlane.xlu0 %57
  %v59 = vrcp.pop 256.0
  %v60 = vmul.f32 %v40, %v59
  %v61 = vmul.f32 %v43, %v59
  %v62 = vmul.f32 %v46, %v59
  %v63 = vmul.f32 %v49, %v59
  %v64 = vmul.f32 %v52, %v59
  %v65 = vmul.f32 %v58, %v59
  %v66 = vsub.f32 %v26, %v60
  %v67 = vsub.f32 %v27, %v60
  %v68 = vsub.f32 %v28, %v61
  %v69 = vsub.f32 %v29, %v61
  %v70 = vsub.f32 %v30, %v62
  %v71 = vsub.f32 %v31, %v62
  %v72 = vsub.f32 %v32, %v63
  %v73 = vsub.f32 %v33, %v63
  %v74 = vsub.f32 %v34, %v64
  %v75 = vsub.f32 %v35, %v64
  %v76 = vsub.f32 %v36, %v65
  %v77 = vsub.f32 %v37, %v65
  %v78 = vmul.f32 %v66, %v66
  %v79 = vmul.f32 %v67, %v67
  %v80 = vmul.f32 %v68, %v68
  %v81 = vmul.f32 %v69, %v69
  %v82 = vmul.f32 %v70, %v70
  %v83 = vmul.f32 %v71, %v71
  %v84 = vmul.f32 %v72, %v72
  %v85 = vmul.f32 %v73, %v73
  %v86 = vmul.f32 %v74, %v74
  %v87 = vmul.f32 %v75, %v75
  %v88 = vmul.f32 %v76, %v76
  %v89 = vmul.f32 %v77, %v77
  %v90 = vadd.f32 %v78, %v79
  %91 = vadd.xlane.f32.xlu0 %v90
  %v92 = vpop.xlane.xlu0 %91
  %v93 = vadd.f32 %v80, %v81
  %94 = vadd.xlane.f32.xlu0 %v93
  %v95 = vpop.xlane.xlu0 %94
  %v96 = vadd.f32 %v82, %v83
  %97 = vadd.xlane.f32.xlu0 %v96
  %v98 = vpop.xlane.xlu0 %97
  %v99 = vadd.f32 %v84, %v85
  %100 = vadd.xlane.f32.xlu0 %v99
  %v101 = vpop.xlane.xlu0 %100
  %v102 = vadd.f32 %v86, %v87
  %103 = vadd.xlane.f32.xlu0 %v102
  %v104 = vpop.xlane.xlu0 %103
  %v105 = vsel %vm53, %v88, 0.0
  %v106 = vsel %vm53, %v89, 0.0
  %v107 = vadd.f32 %v105, %v106
  %108 = vadd.xlane.f32.xlu0 %v107
  %v109 = vpop.xlane.xlu0 %108
  %v110 = vmul.f32 %v92, %v59
  %v111 = vmul.f32 %v95, %v59
  %v112 = vmul.f32 %v98, %v59
  %v113 = vmul.f32 %v101, %v59
  %v114 = vmul.f32 %v104, %v59
  %v115 = vmul.f32 %v109, %v59
  %v116 = vadd.f32 %v110, 1e-06
  %v117 = vadd.f32 %v111, 1e-06
  %v118 = vadd.f32 %v112, 1e-06
  %v119 = vadd.f32 %v113, 1e-06
  %v120 = vadd.f32 %v114, 1e-06
  %v121 = vadd.f32 %v115, 1e-06
  %v122 = vrsqrt.pop %v116
  %v123 = vrsqrt.pop %v117
  %v124 = vrsqrt.pop %v118
  %v125 = vrsqrt.pop %v119
  %v126 = vrsqrt.pop %v120
  %v127 = vrsqrt.pop %v121
  %v128 = vmul.f32 %v66, %v122
  %v129 = vmul.f32 %v67, %v122
  %v130 = vmul.f32 %v68, %v123
  %v131 = vmul.f32 %v69, %v123
  %v132 = vmul.f32 %v70, %v124
  %v133 = vmul.f32 %v71, %v124
  %v134 = vmul.f32 %v72, %v125
  %v135 = vmul.f32 %v73, %v125
  %v136 = vmul.f32 %v74, %v126
  %v137 = vmul.f32 %v75, %v126
  %v138 = vmul.f32 %v76, %v127
  %v139 = vmul.f32 %v77, %v127
  %v140 = vld [vmem:[%s1] sm:$0x3]
  %v142 = vlaneseq
  %v143 = vshrl.u32 %v142, 7
  %v144 = vsub.s32 0, %v143
  %v145 = vrot.slane %v140, %v144
  %v146 = vlaneseq
  %v147 = vshrl.u32 %v146, 7
  %v148 = vsub.s32 1, %v147
  %v149 = vrot.slane %v140, %v148
  %v152 = vmul.f32 %v128, %v145
  %v153 = vmul.f32 %v129, %v149
  %v154 = vmul.f32 %v130, %v145
  %v155 = vmul.f32 %v131, %v149
  %v156 = vmul.f32 %v132, %v145
  %v157 = vmul.f32 %v133, %v149
  %v158 = vmul.f32 %v134, %v145
  %v159 = vmul.f32 %v135, %v149
  %v160 = vmul.f32 %v136, %v145
  %v161 = vmul.f32 %v137, %v149
  %v162 = vmul.f32 %v138, %v145
  %v163 = vmul.f32 %v139, %v149
  %v164 = vld [vmem:[%s2] sm:$0x3]
  %v166 = vlaneseq
  %v167 = vshrl.u32 %v166, 7
  %v168 = vsub.s32 0, %v167
  %v169 = vrot.slane %v164, %v168
  %v170 = vlaneseq
  %v171 = vshrl.u32 %v170, 7
  %v172 = vsub.s32 1, %v171
  %v173 = vrot.slane %v164, %v172
  %v176 = vadd.f32 %v152, %v169
  %v177 = vadd.f32 %v153, %v173
  %v178 = vadd.f32 %v154, %v169
  %v179 = vadd.f32 %v155, %v173
  %v180 = vadd.f32 %v156, %v169
  %v181 = vadd.f32 %v157, %v173
  %v182 = vadd.f32 %v158, %v169
  %v183 = vadd.f32 %v159, %v173
  %v184 = vadd.f32 %v160, %v169
  %v185 = vadd.f32 %v161, %v173
  %v186 = vadd.f32 %v162, %v169
  %v187 = vadd.f32 %v163, %v173
  %v188 = vpack.c.bf16 %v178, %v176
  %v189 = vpack.c.bf16 %v179, %v177
  %v190 = vpack.c.bf16 %v182, %v180
  %v191 = vpack.c.bf16 %v183, %v181
  %v192 = vpack.c.bf16 %v186, %v184
  %v193 = vpack.c.bf16 %v187, %v185
  %v194 = vld [vmem:[%s3] sm:$0xff]
  %v195 = vld [vmem:[%s3 + $0x8] sm:$0xff]
  %v196 = vld [vmem:[%s3 + $0x10] sm:$0xff]
  %v197 = vld [vmem:[%s3 + $0x18] sm:$0xff]
  %v198 = vld [vmem:[%s3 + $0x20] sm:$0xff]
  %v199 = vld [vmem:[%s3 + $0x28] sm:$0xff]
  %v200 = vld [vmem:[%s3 + $0x30] sm:$0xff]
  %v201 = vld [vmem:[%s3 + $0x38] sm:$0xff]
  %v202 = vld [vmem:[%s3 + $0x40] sm:$0xff]
  %v203 = vld [vmem:[%s3 + $0x48] sm:$0xff]
  %v204 = vld [vmem:[%s3 + $0x50] sm:$0xff]
  %v205 = vld [vmem:[%s3 + $0x58] sm:$0xff]
  %v206 = vld [vmem:[%s3 + $0x60] sm:$0xff]
  %v207 = vld [vmem:[%s3 + $0x68] sm:$0xff]
  %v208 = vld [vmem:[%s3 + $0x70] sm:$0xff]
  %v209 = vld [vmem:[%s3 + $0x78] sm:$0xff]
  %v210 = vld [vmem:[%s3 + $0x80] sm:$0xff]
  %v211 = vld [vmem:[%s3 + $0x88] sm:$0xff]
  %v212 = vld [vmem:[%s3 + $0x90] sm:$0xff]
  %v213 = vld [vmem:[%s3 + $0x98] sm:$0xff]
  %v214 = vld [vmem:[%s3 + $0xa0] sm:$0xff]
  %v215 = vld [vmem:[%s3 + $0xa8] sm:$0xff]
  %v216 = vld [vmem:[%s3 + $0xb0] sm:$0xff]
  %v217 = vld [vmem:[%s3 + $0xb8] sm:$0xff]
  %v218 = vld [vmem:[%s3 + $0xc0] sm:$0xff]
  %v219 = vld [vmem:[%s3 + $0xc8] sm:$0xff]
  %v220 = vld [vmem:[%s3 + $0xd0] sm:$0xff]
  %v221 = vld [vmem:[%s3 + $0xd8] sm:$0xff]
  %v222 = vld [vmem:[%s3 + $0xe0] sm:$0xff]
  %v223 = vld [vmem:[%s3 + $0xe8] sm:$0xff]
  %v224 = vld [vmem:[%s3 + $0xf0] sm:$0xff]
  %v225 = vld [vmem:[%s3 + $0xf8] sm:$0xff]
  %v226 = vld [vmem:[%s3 + $0x100] sm:$0xff]
  %v227 = vld [vmem:[%s3 + $0x108] sm:$0xff]
  %v228 = vld [vmem:[%s3 + $0x110] sm:$0xff]
  %v229 = vld [vmem:[%s3 + $0x118] sm:$0xff]
  %v230 = vld [vmem:[%s3 + $0x120] sm:$0xff]
  %v231 = vld [vmem:[%s3 + $0x128] sm:$0xff]
  %v232 = vld [vmem:[%s3 + $0x130] sm:$0xff]
  %v233 = vld [vmem:[%s3 + $0x138] sm:$0xff]
  %v234 = vld [vmem:[%s3 + $0x140] sm:$0xff]
  %v235 = vld [vmem:[%s3 + $0x148] sm:$0xff]
  %v236 = vld [vmem:[%s3 + $0x150] sm:$0xff]
  %v237 = vld [vmem:[%s3 + $0x158] sm:$0xff]
  %v238 = vld [vmem:[%s3 + $0x160] sm:$0xff]
  %v239 = vld [vmem:[%s3 + $0x168] sm:$0xff]
  %v240 = vld [vmem:[%s3 + $0x170] sm:$0xff]
  %v241 = vld [vmem:[%s3 + $0x178] sm:$0xff]
  %v242 = vld [vmem:[%s3 + $0x180] sm:$0xff]
  %v243 = vld [vmem:[%s3 + $0x188] sm:$0xff]
  %v244 = vld [vmem:[%s3 + $0x190] sm:$0xff]
  %v245 = vld [vmem:[%s3 + $0x198] sm:$0xff]
  %v246 = vld [vmem:[%s3 + $0x1a0] sm:$0xff]
  %v247 = vld [vmem:[%s3 + $0x1a8] sm:$0xff]
  %v248 = vld [vmem:[%s3 + $0x1b0] sm:$0xff]
  %v249 = vld [vmem:[%s3 + $0x1b8] sm:$0xff]
  %v250 = vld [vmem:[%s3 + $0x1c0] sm:$0xff]
  %v251 = vld [vmem:[%s3 + $0x1c8] sm:$0xff]
  %v252 = vld [vmem:[%s3 + $0x1d0] sm:$0xff]
  %v253 = vld [vmem:[%s3 + $0x1d8] sm:$0xff]
  %v254 = vld [vmem:[%s3 + $0x1e0] sm:$0xff]
  %v255 = vld [vmem:[%s3 + $0x1e8] sm:$0xff]
  %v256 = vld [vmem:[%s3 + $0x1f0] sm:$0xff]
  %v257 = vld [vmem:[%s3 + $0x1f8] sm:$0xff]
  %v258 = vld [vmem:[%s3 + $0x200] sm:$0xff]
  %v259 = vld [vmem:[%s3 + $0x208] sm:$0xff]
  %v260 = vld [vmem:[%s3 + $0x210] sm:$0xff]
  %v261 = vld [vmem:[%s3 + $0x218] sm:$0xff]
  %v262 = vld [vmem:[%s3 + $0x220] sm:$0xff]
  %v263 = vld [vmem:[%s3 + $0x228] sm:$0xff]
  %v264 = vld [vmem:[%s3 + $0x230] sm:$0xff]
  %v265 = vld [vmem:[%s3 + $0x238] sm:$0xff]
  %v266 = vld [vmem:[%s3 + $0x240] sm:$0xff]
  %v267 = vld [vmem:[%s3 + $0x248] sm:$0xff]
  %v268 = vld [vmem:[%s3 + $0x250] sm:$0xff]
  %v269 = vld [vmem:[%s3 + $0x258] sm:$0xff]
  %v270 = vld [vmem:[%s3 + $0x260] sm:$0xff]
  %v271 = vld [vmem:[%s3 + $0x268] sm:$0xff]
  %v272 = vld [vmem:[%s3 + $0x270] sm:$0xff]
  %v273 = vld [vmem:[%s3 + $0x278] sm:$0xff]
  %v274 = vld [vmem:[%s3 + $0x280] sm:$0xff]
  %v275 = vld [vmem:[%s3 + $0x288] sm:$0xff]
  %v276 = vld [vmem:[%s3 + $0x290] sm:$0xff]
  %v277 = vld [vmem:[%s3 + $0x298] sm:$0xff]
  %v278 = vld [vmem:[%s3 + $0x2a0] sm:$0xff]
  %v279 = vld [vmem:[%s3 + $0x2a8] sm:$0xff]
  %v280 = vld [vmem:[%s3 + $0x2b0] sm:$0xff]
  %v281 = vld [vmem:[%s3 + $0x2b8] sm:$0xff]
  %v282 = vld [vmem:[%s3 + $0x2c0] sm:$0xff]
  %v283 = vld [vmem:[%s3 + $0x2c8] sm:$0xff]
  %v284 = vld [vmem:[%s3 + $0x2d0] sm:$0xff]
  %v285 = vld [vmem:[%s3 + $0x2d8] sm:$0xff]
  %v286 = vld [vmem:[%s3 + $0x2e0] sm:$0xff]
  %v287 = vld [vmem:[%s3 + $0x2e8] sm:$0xff]
  %v288 = vld [vmem:[%s3 + $0x2f0] sm:$0xff]
  %v289 = vld [vmem:[%s3 + $0x2f8] sm:$0xff]
  %v290 = vld [vmem:[%s4] sm:$0x3f]
  %v292 = vlaneseq
  %v293 = vshrl.u32 %v292, 7
  %v294 = vsub.s32 0, %v293
  %v295 = vrot.slane %v290, %v294
  %v296 = vlaneseq
  %v297 = vshrl.u32 %v296, 7
  %v298 = vsub.s32 1, %v297
  %v299 = vrot.slane %v290, %v298
  %v300 = vlaneseq
  %v301 = vshrl.u32 %v300, 7
  %v302 = vsub.s32 2, %v301
  %v303 = vrot.slane %v290, %v302
  %v304 = vlaneseq
  %v305 = vshrl.u32 %v304, 7
  %v306 = vsub.s32 3, %v305
  %v307 = vrot.slane %v290, %v306
  %v308 = vlaneseq
  %v309 = vshrl.u32 %v308, 7
  %v310 = vsub.s32 4, %v309
  %v311 = vrot.slane %v290, %v310
  %v312 = vlaneseq
  %v313 = vshrl.u32 %v312, 7
  %v314 = vsub.s32 5, %v313
  %v315 = vrot.slane %v290, %v314
  %v418 = vunpack.c.l.b16 %v194
  %v419 = vunpack.c.h.b16 %v194
  %v420 = vunpack.c.l.b16 %v195
  %v421 = vunpack.c.h.b16 %v195
  %v422 = vunpack.c.l.b16 %v196
  %v423 = vunpack.c.h.b16 %v196
  %v424 = vunpack.c.l.b16 %v197
  %v425 = vunpack.c.h.b16 %v197
  %v426 = vunpack.c.l.b16 %v198
  %v427 = vunpack.c.h.b16 %v198
  %v428 = vunpack.c.l.b16 %v199
  %v429 = vunpack.c.h.b16 %v199
  %v430 = vunpack.c.l.b16 %v200
  %v431 = vunpack.c.h.b16 %v200
  %v432 = vunpack.c.l.b16 %v201
  %v433 = vunpack.c.h.b16 %v201
  %v434 = vunpack.c.l.b16 %v202
  %v435 = vunpack.c.h.b16 %v202
  %v436 = vunpack.c.l.b16 %v203
  %v437 = vunpack.c.h.b16 %v203
  %v438 = vunpack.c.l.b16 %v204
  %v439 = vunpack.c.h.b16 %v204
  %v440 = vunpack.c.l.b16 %v205
  %v441 = vunpack.c.h.b16 %v205
  %v442 = vunpack.c.l.b16 %v206
  %v443 = vunpack.c.h.b16 %v206
  %v444 = vunpack.c.l.b16 %v207
  %v445 = vunpack.c.h.b16 %v207
  %v446 = vunpack.c.l.b16 %v208
  %v447 = vunpack.c.h.b16 %v208
  %v448 = vunpack.c.l.b16 %v209
  %v449 = vunpack.c.h.b16 %v209
  %v450 = vunpack.c.l.b16 %v210
  %v451 = vunpack.c.h.b16 %v210
  %v452 = vunpack.c.l.b16 %v211
  %v453 = vunpack.c.h.b16 %v211
  %v454 = vunpack.c.l.b16 %v212
  %v455 = vunpack.c.h.b16 %v212
  %v456 = vunpack.c.l.b16 %v213
  %v457 = vunpack.c.h.b16 %v213
  %v458 = vunpack.c.l.b16 %v214
  %v459 = vunpack.c.h.b16 %v214
  %v460 = vunpack.c.l.b16 %v215
  %v461 = vunpack.c.h.b16 %v215
  %v462 = vunpack.c.l.b16 %v216
  %v463 = vunpack.c.h.b16 %v216
  %v464 = vunpack.c.l.b16 %v217
  %v465 = vunpack.c.h.b16 %v217
  %v466 = vunpack.c.l.b16 %v218
  %v467 = vunpack.c.h.b16 %v218
  %v468 = vunpack.c.l.b16 %v219
  %v469 = vunpack.c.h.b16 %v219
  %v470 = vunpack.c.l.b16 %v220
  %v471 = vunpack.c.h.b16 %v220
  %v472 = vunpack.c.l.b16 %v221
  %v473 = vunpack.c.h.b16 %v221
  %v474 = vunpack.c.l.b16 %v222
  %v475 = vunpack.c.h.b16 %v222
  %v476 = vunpack.c.l.b16 %v223
  %v477 = vunpack.c.h.b16 %v223
  %v478 = vunpack.c.l.b16 %v224
  %v479 = vunpack.c.h.b16 %v224
  %v480 = vunpack.c.l.b16 %v225
  %v481 = vunpack.c.h.b16 %v225
  %v482 = vunpack.c.l.b16 %v226
  %v483 = vunpack.c.h.b16 %v226
  %v484 = vunpack.c.l.b16 %v227
  %v485 = vunpack.c.h.b16 %v227
  %v486 = vunpack.c.l.b16 %v228
  %v487 = vunpack.c.h.b16 %v228
  %v488 = vunpack.c.l.b16 %v229
  %v489 = vunpack.c.h.b16 %v229
  %v490 = vunpack.c.l.b16 %v230
  %v491 = vunpack.c.h.b16 %v230
  %v492 = vunpack.c.l.b16 %v231
  %v493 = vunpack.c.h.b16 %v231
  %v494 = vunpack.c.l.b16 %v232
  %v495 = vunpack.c.h.b16 %v232
  %v496 = vunpack.c.l.b16 %v233
  %v497 = vunpack.c.h.b16 %v233
  %v498 = vunpack.c.l.b16 %v234
  %v499 = vunpack.c.h.b16 %v234
  %v500 = vunpack.c.l.b16 %v235
  %v501 = vunpack.c.h.b16 %v235
  %v502 = vunpack.c.l.b16 %v236
  %v503 = vunpack.c.h.b16 %v236
  %v504 = vunpack.c.l.b16 %v237
  %v505 = vunpack.c.h.b16 %v237
  %v506 = vunpack.c.l.b16 %v238
  %v507 = vunpack.c.h.b16 %v238
  %v508 = vunpack.c.l.b16 %v239
  %v509 = vunpack.c.h.b16 %v239
  %v510 = vunpack.c.l.b16 %v240
  %v511 = vunpack.c.h.b16 %v240
  %v512 = vunpack.c.l.b16 %v241
  %v513 = vunpack.c.h.b16 %v241
  %v514 = vunpack.c.l.b16 %v242
  %v515 = vunpack.c.h.b16 %v242
  %v516 = vunpack.c.l.b16 %v243
  %v517 = vunpack.c.h.b16 %v243
  %v518 = vunpack.c.l.b16 %v244
  %v519 = vunpack.c.h.b16 %v244
  %v520 = vunpack.c.l.b16 %v245
  %v521 = vunpack.c.h.b16 %v245
  %v522 = vunpack.c.l.b16 %v246
  %v523 = vunpack.c.h.b16 %v246
  %v524 = vunpack.c.l.b16 %v247
  %v525 = vunpack.c.h.b16 %v247
  %v526 = vunpack.c.l.b16 %v248
  %v527 = vunpack.c.h.b16 %v248
  %v528 = vunpack.c.l.b16 %v249
  %v529 = vunpack.c.h.b16 %v249
  %v530 = vunpack.c.l.b16 %v250
  %v531 = vunpack.c.h.b16 %v250
  %v532 = vunpack.c.l.b16 %v251
  %v533 = vunpack.c.h.b16 %v251
  %v534 = vunpack.c.l.b16 %v252
  %v535 = vunpack.c.h.b16 %v252
  %v536 = vunpack.c.l.b16 %v253
  %v537 = vunpack.c.h.b16 %v253
  %v538 = vunpack.c.l.b16 %v254
  %v539 = vunpack.c.h.b16 %v254
  %v540 = vunpack.c.l.b16 %v255
  %v541 = vunpack.c.h.b16 %v255
  %v542 = vunpack.c.l.b16 %v256
  %v543 = vunpack.c.h.b16 %v256
  %v544 = vunpack.c.l.b16 %v257
  %v545 = vunpack.c.h.b16 %v257
  %v546 = vunpack.c.l.b16 %v258
  %v547 = vunpack.c.h.b16 %v258
  %v548 = vunpack.c.l.b16 %v259
  %v549 = vunpack.c.h.b16 %v259
  %v550 = vunpack.c.l.b16 %v260
  %v551 = vunpack.c.h.b16 %v260
  %v552 = vunpack.c.l.b16 %v261
  %v553 = vunpack.c.h.b16 %v261
  %v554 = vunpack.c.l.b16 %v262
  %v555 = vunpack.c.h.b16 %v262
  %v556 = vunpack.c.l.b16 %v263
  %v557 = vunpack.c.h.b16 %v263
  %v558 = vunpack.c.l.b16 %v264
  %v559 = vunpack.c.h.b16 %v264
  %v560 = vunpack.c.l.b16 %v265
  %v561 = vunpack.c.h.b16 %v265
  %v562 = vunpack.c.l.b16 %v266
  %v563 = vunpack.c.h.b16 %v266
  %v564 = vunpack.c.l.b16 %v267
  %v565 = vunpack.c.h.b16 %v267
  %v566 = vunpack.c.l.b16 %v268
  %v567 = vunpack.c.h.b16 %v268
  %v568 = vunpack.c.l.b16 %v269
  %v569 = vunpack.c.h.b16 %v269
  %v570 = vunpack.c.l.b16 %v270
  %v571 = vunpack.c.h.b16 %v270
  %v572 = vunpack.c.l.b16 %v271
  %v573 = vunpack.c.h.b16 %v271
  %v574 = vunpack.c.l.b16 %v272
  %v575 = vunpack.c.h.b16 %v272
  %v576 = vunpack.c.l.b16 %v273
  %v577 = vunpack.c.h.b16 %v273
  %v578 = vunpack.c.l.b16 %v274
  %v579 = vunpack.c.h.b16 %v274
  %v580 = vunpack.c.l.b16 %v275
  %v581 = vunpack.c.h.b16 %v275
  %v582 = vunpack.c.l.b16 %v276
  %v583 = vunpack.c.h.b16 %v276
  %v584 = vunpack.c.l.b16 %v277
  %v585 = vunpack.c.h.b16 %v277
  %v586 = vunpack.c.l.b16 %v278
  %v587 = vunpack.c.h.b16 %v278
  %v588 = vunpack.c.l.b16 %v279
  %v589 = vunpack.c.h.b16 %v279
  %v590 = vunpack.c.l.b16 %v280
  %v591 = vunpack.c.h.b16 %v280
  %v592 = vunpack.c.l.b16 %v281
  %v593 = vunpack.c.h.b16 %v281
  %v594 = vunpack.c.l.b16 %v282
  %v595 = vunpack.c.h.b16 %v282
  %v596 = vunpack.c.l.b16 %v283
  %v597 = vunpack.c.h.b16 %v283
  %v598 = vunpack.c.l.b16 %v284
  %v599 = vunpack.c.h.b16 %v284
  %v600 = vunpack.c.l.b16 %v285
  %v601 = vunpack.c.h.b16 %v285
  %v602 = vunpack.c.l.b16 %v286
  %v603 = vunpack.c.h.b16 %v286
  %v604 = vunpack.c.l.b16 %v287
  %v605 = vunpack.c.h.b16 %v287
  %v606 = vunpack.c.l.b16 %v288
  %v607 = vunpack.c.h.b16 %v288
  %v608 = vunpack.c.l.b16 %v289
  %v609 = vunpack.c.h.b16 %v289
  %v610 = vpack.c.b16 %v424, %v418
  %v611 = vpack.c.b16 %v425, %v419
  %v612 = vpack.c.b16 %v426, %v420
  %v613 = vpack.c.b16 %v427, %v421
  %v614 = vpack.c.b16 %v428, %v422
  %v615 = vpack.c.b16 %v429, %v423
  %v616 = vpack.c.b16 %v436, %v430
  %v617 = vpack.c.b16 %v437, %v431
  %v618 = vpack.c.b16 %v438, %v432
  %v619 = vpack.c.b16 %v439, %v433
  %v620 = vpack.c.b16 %v440, %v434
  %v621 = vpack.c.b16 %v441, %v435
  %v622 = vpack.c.b16 %v448, %v442
  %v623 = vpack.c.b16 %v449, %v443
  %v624 = vpack.c.b16 %v450, %v444
  %v625 = vpack.c.b16 %v451, %v445
  %v626 = vpack.c.b16 %v452, %v446
  %v627 = vpack.c.b16 %v453, %v447
  %v628 = vpack.c.b16 %v460, %v454
  %v629 = vpack.c.b16 %v461, %v455
  %v630 = vpack.c.b16 %v462, %v456
  %v631 = vpack.c.b16 %v463, %v457
  %v632 = vpack.c.b16 %v464, %v458
  %v633 = vpack.c.b16 %v465, %v459
  %v634 = vpack.c.b16 %v472, %v466
  %v635 = vpack.c.b16 %v473, %v467
  %v636 = vpack.c.b16 %v474, %v468
  %v637 = vpack.c.b16 %v475, %v469
  %v638 = vpack.c.b16 %v476, %v470
  %v639 = vpack.c.b16 %v477, %v471
  %v640 = vpack.c.b16 %v484, %v478
  %v641 = vpack.c.b16 %v485, %v479
  %v642 = vpack.c.b16 %v486, %v480
  %v643 = vpack.c.b16 %v487, %v481
  %v644 = vpack.c.b16 %v488, %v482
  %v645 = vpack.c.b16 %v489, %v483
  %v646 = vpack.c.b16 %v496, %v490
  %v647 = vpack.c.b16 %v497, %v491
  %v648 = vpack.c.b16 %v498, %v492
  %v649 = vpack.c.b16 %v499, %v493
  %v650 = vpack.c.b16 %v500, %v494
  %v651 = vpack.c.b16 %v501, %v495
  %v652 = vpack.c.b16 %v508, %v502
  %v653 = vpack.c.b16 %v509, %v503
  %v654 = vpack.c.b16 %v510, %v504
  %v655 = vpack.c.b16 %v511, %v505
  %v656 = vpack.c.b16 %v512, %v506
  %v657 = vpack.c.b16 %v513, %v507
  %v658 = vpack.c.b16 %v520, %v514
  %v659 = vpack.c.b16 %v521, %v515
  %v660 = vpack.c.b16 %v522, %v516
  %v661 = vpack.c.b16 %v523, %v517
  %v662 = vpack.c.b16 %v524, %v518
  %v663 = vpack.c.b16 %v525, %v519
  %v664 = vpack.c.b16 %v532, %v526
  %v665 = vpack.c.b16 %v533, %v527
  %v666 = vpack.c.b16 %v534, %v528
  %v667 = vpack.c.b16 %v535, %v529
  %v668 = vpack.c.b16 %v536, %v530
  %v669 = vpack.c.b16 %v537, %v531
  %v670 = vpack.c.b16 %v544, %v538
  %v671 = vpack.c.b16 %v545, %v539
  %v672 = vpack.c.b16 %v546, %v540
  %v673 = vpack.c.b16 %v547, %v541
  %v674 = vpack.c.b16 %v548, %v542
  %v675 = vpack.c.b16 %v549, %v543
  %v676 = vpack.c.b16 %v556, %v550
  %v677 = vpack.c.b16 %v557, %v551
  %v678 = vpack.c.b16 %v558, %v552
  %v679 = vpack.c.b16 %v559, %v553
  %v680 = vpack.c.b16 %v560, %v554
  %v681 = vpack.c.b16 %v561, %v555
  %v682 = vpack.c.b16 %v568, %v562
  %v683 = vpack.c.b16 %v569, %v563
  %v684 = vpack.c.b16 %v570, %v564
  %v685 = vpack.c.b16 %v571, %v565
  %v686 = vpack.c.b16 %v572, %v566
  %v687 = vpack.c.b16 %v573, %v567
  %v688 = vpack.c.b16 %v580, %v574
  %v689 = vpack.c.b16 %v581, %v575
  %v690 = vpack.c.b16 %v582, %v576
  %v691 = vpack.c.b16 %v583, %v577
  %v692 = vpack.c.b16 %v584, %v578
  %v693 = vpack.c.b16 %v585, %v579
  %v694 = vpack.c.b16 %v592, %v586
  %v695 = vpack.c.b16 %v593, %v587
  %v696 = vpack.c.b16 %v594, %v588
  %v697 = vpack.c.b16 %v595, %v589
  %v698 = vpack.c.b16 %v596, %v590
  %v699 = vpack.c.b16 %v597, %v591
  %v700 = vpack.c.b16 %v604, %v598
  %v701 = vpack.c.b16 %v605, %v599
  %v702 = vpack.c.b16 %v606, %v600
  %v703 = vpack.c.b16 %v607, %v601
  %v704 = vpack.c.b16 %v608, %v602
  %v705 = vpack.c.b16 %v609, %v603
  %802 = vmatprep.subr.bf16.mxu0 %v611
  %803 = vmatpush1.bf16.msra.mxu0 %v610
  %804 = vmatprep.subr.bf16.mxu0 %v617
  %805 = vmatpush1.bf16.msra.mxu0 %v616
  %806 = vmatprep.subr.bf16.mxu0 %v623
  %807 = vmatpush1.bf16.msra.mxu0 %v622
  %808 = vmatprep.subr.bf16.mxu0 %v629
  %809 = vmatpush1.bf16.msra.mxu0 %v628
  %810 = vmatprep.subr.bf16.mxu0 %v635
  %811 = vmatpush1.bf16.msra.mxu0 %v634
  %812 = vmatprep.subr.bf16.mxu0 %v641
  %813 = vmatpush1.bf16.msra.mxu0 %v640
  %814 = vmatprep.subr.bf16.mxu0 %v647
  %815 = vmatpush1.bf16.msra.mxu0 %v646
  %816 = vmatprep.subr.bf16.mxu0 %v653
  %817 = vmatpush1.bf16.msra.mxu0 %v652
  %818 = vmatprep.subr.bf16.mxu0 %v659
  %819 = vmatpush1.bf16.msra.mxu0 %v658
  %820 = vmatprep.subr.bf16.mxu0 %v665
  %821 = vmatpush1.bf16.msra.mxu0 %v664
  %822 = vmatprep.subr.bf16.mxu0 %v671
  %823 = vmatpush1.bf16.msra.mxu0 %v670
  %824 = vmatprep.subr.bf16.mxu0 %v677
  %825 = vmatpush1.bf16.msra.mxu0 %v676
  %826 = vmatprep.subr.bf16.mxu0 %v683
  %827 = vmatpush1.bf16.msra.mxu0 %v682
  %828 = vmatprep.subr.bf16.mxu0 %v689
  %829 = vmatpush1.bf16.msra.mxu0 %v688
  %830 = vmatprep.subr.bf16.mxu0 %v695
  %831 = vmatpush1.bf16.msra.mxu0 %v694
  %832 = vmatprep.subr.bf16.mxu0 %v701
  %833 = vmatpush1.bf16.msra.mxu0 %v700
  %834 = vmatprep.mubr.bf16.mxu0 %v189
  %835 = vmatmul.mubr.bf16.gmra.mrb[0].mxu0 %v188
  %v836 = vpop.f32.mrb[0].mxu0
  %v837 = vadd.f32 %v295, %v836
  %v838 = vpop.f32.mrb[0].mxu0
  %v839 = vadd.f32 %v299, %v838
  %v840 = vpop.f32.mrb[0].mxu0
  %v841 = vadd.f32 %v295, %v840
  %v842 = vpop.f32.mrb[0].mxu0
  %v843 = vadd.f32 %v299, %v842
  %844 = vmatprep.mubr.bf16.mxu0 %v191
  %845 = vmatmul.mubr.bf16.gmra.mrb[0].mxu0 %v190
  %v846 = vpop.f32.mrb[0].mxu0
  %v847 = vadd.f32 %v295, %v846
  %v848 = vpop.f32.mrb[0].mxu0
  %v849 = vadd.f32 %v299, %v848
  %v850 = vpop.f32.mrb[0].mxu0
  %v851 = vadd.f32 %v295, %v850
  %v852 = vpop.f32.mrb[0].mxu0
  %v853 = vadd.f32 %v299, %v852
  %854 = vmatprep.mubr.bf16.mxu0 %v193
  %855 = vmatmul.mubr.bf16.gmra.mrb[0].mxu0 %v192
  %v856 = vpop.f32.mrb[0].mxu0
  %v857 = vadd.f32 %v295, %v856
  %v858 = vpop.f32.mrb[0].mxu0
  %v859 = vadd.f32 %v299, %v858
  %v860 = vpop.f32.mrb[0].mxu0
  %v861 = vadd.f32 %v295, %v860
  %v862 = vpop.f32.mrb[0].mxu0
  %v863 = vadd.f32 %v299, %v862
  %864 = vdwg.mxu0
  %865 = vmatprep.subr.bf16.mxu0 %v613
  %866 = vmatpush1.bf16.msra.mxu0 %v612
  %867 = vmatprep.subr.bf16.mxu0 %v619
  %868 = vmatpush1.bf16.msra.mxu0 %v618
  %869 = vmatprep.subr.bf16.mxu0 %v625
  %870 = vmatpush1.bf16.msra.mxu0 %v624
  %871 = vmatprep.subr.bf16.mxu0 %v631
  %872 = vmatpush1.bf16.msra.mxu0 %v630
  %873 = vmatprep.subr.bf16.mxu0 %v637
  %874 = vmatpush1.bf16.msra.mxu0 %v636
  %875 = vmatprep.subr.bf16.mxu0 %v643
  %876 = vmatpush1.bf16.msra.mxu0 %v642
  %877 = vmatprep.subr.bf16.mxu0 %v649
  %878 = vmatpush1.bf16.msra.mxu0 %v648
  %879 = vmatprep.subr.bf16.mxu0 %v655
  %880 = vmatpush1.bf16.msra.mxu0 %v654
  %881 = vmatprep.subr.bf16.mxu0 %v661
  %882 = vmatpush1.bf16.msra.mxu0 %v660
  %883 = vmatprep.subr.bf16.mxu0 %v667
  %884 = vmatpush1.bf16.msra.mxu0 %v666
  %885 = vmatprep.subr.bf16.mxu0 %v673
  %886 = vmatpush1.bf16.msra.mxu0 %v672
  %887 = vmatprep.subr.bf16.mxu0 %v679
  %888 = vmatpush1.bf16.msra.mxu0 %v678
  %889 = vmatprep.subr.bf16.mxu0 %v685
  %890 = vmatpush1.bf16.msra.mxu0 %v684
  %891 = vmatprep.subr.bf16.mxu0 %v691
  %892 = vmatpush1.bf16.msra.mxu0 %v690
  %893 = vmatprep.subr.bf16.mxu0 %v697
  %894 = vmatpush1.bf16.msra.mxu0 %v696
  %895 = vmatprep.subr.bf16.mxu0 %v703
  %896 = vmatpush1.bf16.msra.mxu0 %v702
  %897 = vmatprep.mubr.bf16.mxu0 %v189
  %898 = vmatmul.mubr.bf16.gmra.mrb[0].mxu0 %v188
  %v899 = vpop.f32.mrb[0].mxu0
  %v900 = vadd.f32 %v303, %v899
  %v901 = vpop.f32.mrb[0].mxu0
  %v902 = vadd.f32 %v307, %v901
  %v903 = vpop.f32.mrb[0].mxu0
  %v904 = vadd.f32 %v303, %v903
  %v905 = vpop.f32.mrb[0].mxu0
  %v906 = vadd.f32 %v307, %v905
  %907 = vmatprep.mubr.bf16.mxu0 %v191
  %908 = vmatmul.mubr.bf16.gmra.mrb[0].mxu0 %v190
  %v909 = vpop.f32.mrb[0].mxu0
  %v910 = vadd.f32 %v303, %v909
  %v911 = vpop.f32.mrb[0].mxu0
  %v912 = vadd.f32 %v307, %v911
  %v913 = vpop.f32.mrb[0].mxu0
  %v914 = vadd.f32 %v303, %v913
  %v915 = vpop.f32.mrb[0].mxu0
  %v916 = vadd.f32 %v307, %v915
  %917 = vmatprep.mubr.bf16.mxu0 %v193
  %918 = vmatmul.mubr.bf16.gmra.mrb[0].mxu0 %v192
  %v919 = vpop.f32.mrb[0].mxu0
  %v920 = vadd.f32 %v303, %v919
  %v921 = vpop.f32.mrb[0].mxu0
  %v922 = vadd.f32 %v307, %v921
  %v923 = vpop.f32.mrb[0].mxu0
  %v924 = vadd.f32 %v303, %v923
  %v925 = vpop.f32.mrb[0].mxu0
  %v926 = vadd.f32 %v307, %v925
  %927 = vdwg.mxu0
  %928 = vmatprep.subr.bf16.mxu0 %v615
  %929 = vmatpush1.bf16.msra.mxu0 %v614
  %930 = vmatprep.subr.bf16.mxu0 %v621
  %931 = vmatpush1.bf16.msra.mxu0 %v620
  %932 = vmatprep.subr.bf16.mxu0 %v627
  %933 = vmatpush1.bf16.msra.mxu0 %v626
  %934 = vmatprep.subr.bf16.mxu0 %v633
  %935 = vmatpush1.bf16.msra.mxu0 %v632
  %936 = vmatprep.subr.bf16.mxu0 %v639
  %937 = vmatpush1.bf16.msra.mxu0 %v638
  %938 = vmatprep.subr.bf16.mxu0 %v645
  %939 = vmatpush1.bf16.msra.mxu0 %v644
  %940 = vmatprep.subr.bf16.mxu0 %v651
  %941 = vmatpush1.bf16.msra.mxu0 %v650
  %942 = vmatprep.subr.bf16.mxu0 %v657
  %943 = vmatpush1.bf16.msra.mxu0 %v656
  %944 = vmatprep.subr.bf16.mxu0 %v663
  %945 = vmatpush1.bf16.msra.mxu0 %v662
  %946 = vmatprep.subr.bf16.mxu0 %v669
  %947 = vmatpush1.bf16.msra.mxu0 %v668
  %948 = vmatprep.subr.bf16.mxu0 %v675
  %949 = vmatpush1.bf16.msra.mxu0 %v674
  %950 = vmatprep.subr.bf16.mxu0 %v681
  %951 = vmatpush1.bf16.msra.mxu0 %v680
  %952 = vmatprep.subr.bf16.mxu0 %v687
  %953 = vmatpush1.bf16.msra.mxu0 %v686
  %954 = vmatprep.subr.bf16.mxu0 %v693
  %955 = vmatpush1.bf16.msra.mxu0 %v692
  %956 = vmatprep.subr.bf16.mxu0 %v699
  %957 = vmatpush1.bf16.msra.mxu0 %v698
  %958 = vmatprep.subr.bf16.mxu0 %v705
  %959 = vmatpush1.bf16.msra.mxu0 %v704
  %960 = vmatprep.mubr.bf16.mxu0 %v189
  %961 = vmatmul.mubr.bf16.gmra.mrb[0].mxu0 %v188
  %v962 = vpop.f32.mrb[0].mxu0
  %v963 = vadd.f32 %v311, %v962
  %v964 = vpop.f32.mrb[0].mxu0
  %v965 = vadd.f32 %v315, %v964
  %v966 = vpop.f32.mrb[0].mxu0
  %v967 = vadd.f32 %v311, %v966
  %v968 = vpop.f32.mrb[0].mxu0
  %v969 = vadd.f32 %v315, %v968
  %970 = vmatprep.mubr.bf16.mxu0 %v191
  %971 = vmatmul.mubr.bf16.gmra.mrb[0].mxu0 %v190
  %v972 = vpop.f32.mrb[0].mxu0
  %v973 = vadd.f32 %v311, %v972
  %v974 = vpop.f32.mrb[0].mxu0
  %v975 = vadd.f32 %v315, %v974
  %v976 = vpop.f32.mrb[0].mxu0
  %v977 = vadd.f32 %v311, %v976
  %v978 = vpop.f32.mrb[0].mxu0
  %v979 = vadd.f32 %v315, %v978
  %980 = vmatprep.mubr.bf16.mxu0 %v193
  %981 = vmatmul.mubr.bf16.gmra.mrb[0].mxu0 %v192
  %v982 = vpop.f32.mrb[0].mxu0
  %v983 = vadd.f32 %v311, %v982
  %v984 = vpop.f32.mrb[0].mxu0
  %v985 = vadd.f32 %v315, %v984
  %v986 = vpop.f32.mrb[0].mxu0
  %v987 = vadd.f32 %v311, %v986
  %v988 = vpop.f32.mrb[0].mxu0
  %v989 = vadd.f32 %v315, %v988
  %990 = vdwg.mxu0
  %v991 = vpack.c.bf16 %v841, %v837
  %v992 = vpack.c.bf16 %v843, %v839
  %v993 = vpack.c.bf16 %v904, %v900
  %v994 = vpack.c.bf16 %v906, %v902
  %v995 = vpack.c.bf16 %v967, %v963
  %v996 = vpack.c.bf16 %v969, %v965
  %v997 = vpack.c.bf16 %v851, %v847
  %v998 = vpack.c.bf16 %v853, %v849
  %v999 = vpack.c.bf16 %v914, %v910
  %v1000 = vpack.c.bf16 %v916, %v912
  %v1001 = vpack.c.bf16 %v977, %v973
  %v1002 = vpack.c.bf16 %v979, %v975
  %v1003 = vpack.c.bf16 %v861, %v857
  %v1004 = vpack.c.bf16 %v863, %v859
  %v1005 = vpack.c.bf16 %v924, %v920
  %v1006 = vpack.c.bf16 %v926, %v922
  %v1007 = vpack.c.bf16 %v987, %v983
  %v1008 = vpack.c.bf16 %v989, %v985
  %v1027 = vunpack.c.l.b16 %v991
  %v1028 = vunpack.c.l.b16 %v992
  %v1029 = vunpack.c.l.b16 %v993
  %v1030 = vunpack.c.l.b16 %v994
  %v1031 = vunpack.c.l.b16 %v995
  %v1032 = vunpack.c.l.b16 %v996
  %v1033 = vunpack.c.h.b16 %v991
  %v1034 = vunpack.c.h.b16 %v992
  %v1035 = vunpack.c.h.b16 %v993
  %v1036 = vunpack.c.h.b16 %v994
  %v1037 = vunpack.c.h.b16 %v995
  %v1038 = vunpack.c.h.b16 %v996
  %v1039 = vunpack.c.l.b16 %v997
  %v1040 = vunpack.c.l.b16 %v998
  %v1041 = vunpack.c.l.b16 %v999
  %v1042 = vunpack.c.l.b16 %v1000
  %v1043 = vunpack.c.l.b16 %v1001
  %v1044 = vunpack.c.l.b16 %v1002
  %v1045 = vunpack.c.h.b16 %v997
  %v1046 = vunpack.c.h.b16 %v998
  %v1047 = vunpack.c.h.b16 %v999
  %v1048 = vunpack.c.h.b16 %v1000
  %v1049 = vunpack.c.h.b16 %v1001
  %v1050 = vunpack.c.h.b16 %v1002
  %v1051 = vunpack.c.l.b16 %v1003
  %v1052 = vunpack.c.l.b16 %v1004
  %v1053 = vunpack.c.l.b16 %v1005
  %v1054 = vunpack.c.l.b16 %v1006
  %v1055 = vunpack.c.l.b16 %v1007
  %v1056 = vunpack.c.l.b16 %v1008
  %v1057 = vunpack.c.h.b16 %v1003
  %v1058 = vunpack.c.h.b16 %v1004
  %v1059 = vunpack.c.h.b16 %v1005
  %v1060 = vunpack.c.h.b16 %v1006
  %v1061 = vunpack.c.h.b16 %v1007
  %v1062 = vunpack.c.h.b16 %v1008
  %v1063 = vpack.c.b16 %v1028, %v1027
  %v1064 = vpack.c.b16 %v1030, %v1029
  %v1065 = vpack.c.b16 %v1032, %v1031
  %v1066 = vpack.c.b16 %v1034, %v1033
  %v1067 = vpack.c.b16 %v1036, %v1035
  %v1068 = vpack.c.b16 %v1038, %v1037
  %v1069 = vpack.c.b16 %v1040, %v1039
  %v1070 = vpack.c.b16 %v1042, %v1041
  %v1071 = vpack.c.b16 %v1044, %v1043
  %v1072 = vpack.c.b16 %v1046, %v1045
  %v1073 = vpack.c.b16 %v1048, %v1047
  %v1074 = vpack.c.b16 %v1050, %v1049
  %v1075 = vpack.c.b16 %v1052, %v1051
  %v1076 = vpack.c.b16 %v1054, %v1053
  %v1077 = vpack.c.b16 %v1056, %v1055
  %v1078 = vpack.c.b16 %v1058, %v1057
  %v1079 = vpack.c.b16 %v1060, %v1059
  %v1080 = vpack.c.b16 %v1062, %v1061
  %1099 = vst [vmem:[%s5] sm:$0xff] %v1063
  %1100 = vst [vmem:[%s5 + $0x8] sm:$0xff] %v1064
  %1101 = vst [vmem:[%s5 + $0x10] sm:$0xff] %v1065
  %1102 = vst [vmem:[%s5 + $0x18] sm:$0xff] %v1066
  %1103 = vst [vmem:[%s5 + $0x20] sm:$0xff] %v1067
  %1104 = vst [vmem:[%s5 + $0x28] sm:$0xff] %v1068
  %1105 = vst [vmem:[%s5 + $0x30] sm:$0xff] %v1069
  %1106 = vst [vmem:[%s5 + $0x38] sm:$0xff] %v1070
  %1107 = vst [vmem:[%s5 + $0x40] sm:$0xff] %v1071
  %1108 = vst [vmem:[%s5 + $0x48] sm:$0xff] %v1072
  %1109 = vst [vmem:[%s5 + $0x50] sm:$0xff] %v1073
  %1110 = vst [vmem:[%s5 + $0x58] sm:$0xff] %v1074
  %1111 = vst [vmem:[%s5 + $0x60] sm:$0xff] %v1075
  %1112 = vst [vmem:[%s5 + $0x68] sm:$0xff] %v1076
  %1113 = vst [vmem:[%s5 + $0x70] sm:$0xff] %v1077
  %1114 = vst [vmem:[%s5 + $0x78] sm:$0x11] %v1078
  %1115 = vst [vmem:[%s5 + $0x80] sm:$0x11] %v1079
  %1116 = vst [vmem:[%s5 + $0x88] sm:$0x11] %v1080
  // Predicated region
  $region22: #{dino_extractor_forward.62} parent=0 // pred_check
    _
  $region23: #{dino_extractor_forward.62} parent=0 // pred_check_branch
    %1118 = sbr.rel (0) target = $region25
  $region24: #{dino_extractor_forward.62} parent=0 // pred_region
    _
  $region25: #{dino_extractor_forward.62} parent=0 // pred_fallthru
    _
  // Predicated region
  $region26: #{dino_extractor_forward.62} parent=0 // pred_check
    _
  $region27: #{dino_extractor_forward.62} parent=0 // pred_check_branch
    %1120 = sbr.rel (0) target = $region29
  $region28: #{dino_extractor_forward.62} parent=0 // pred_region
    _
  $region29: #{dino_extractor_forward.62} parent=0 // pred_fallthru
    _

// kernel: dino_extractor_forward.63
$region0: #{dino_extractor_forward.63}
  #allocation0 [shape = 'u32[]', space=smem, size = 0x4, offset = 0x4, fixed_abs, tag = 'smem constant byte address 0x4 - core index']
  #allocation1 [shape = 'u32[144,128]{1,0:T(1,128)}', space=vmem, size = 0x12000, scoped, tag = 'internal scratch']
  #allocation2 [shape = 'f32[21,1]{1,0:T(8,128)}', space=vmem, size = 0x3000, scoped, tag = 'scratch operand']
  #allocation3 [shape = 'f32[21,1]{1,0:T(8,128)}', space=vmem, size = 0x3000, scoped, tag = 'scratch operand']
  #allocation4 [shape = 'f32[21,128]{1,0:T(8,128)}', space=vmem, size = 0x3000, scoped, tag = 'scratch operand']
  %s0 = inlined_call_operand.vmem [shape: bf16[2,21,768], index: 0, kind: input, shape index: {}, may-alias: {0,1,2}]
  %s1 = inlined_call_operand.vmem [shape: bf16[2,21,768], index: 1, kind: input, shape index: {}, may-alias: {0,1,2}]
  %s2 = inlined_call_operand.vmem [shape: bf16[2,21,768], index: 2, kind: input, shape index: {}, may-alias: {0,1,2}]
  %s3 = inlined_call_operand.vmem [shape: bf16[2,21,256], index: 3, kind: output, shape index: {}]
  %s4 = sld [smem:[#allocation0]]
  $region213: #{dino_extractor_forward.63} parent=0
    _
  %s6 = ssub.s32 1, %s4
  %s7 = scalar_select 0, %s6, %s4
  $region1: #{dino_extractor_forward.63} parent=0
    #allocation5 [shape = 'u8[12288]{0}', space=vmem, size = 0x3000, scoped, tag = 'input window, operand 0']
    #allocation6 [shape = 'u8[12288]{0}', space=vmem, size = 0x3000, scoped, tag = 'input window, operand 1']
    #allocation7 [shape = 'u8[12288]{0}', space=vmem, size = 0x3000, scoped, tag = 'input window, operand 2']
    #allocation8 [shape = 'u8[12288]{0}', space=vmem, size = 0x3000, scoped, tag = 'output window, operand 0']
    loop: start=0, step=1, limit=6
    $region2: #{dino_extractor_forward.63} parent=1 // loop_pre_header
      _
    $region3: #{dino_extractor_forward.63} parent=1 // loop_header
      %s9 = sphi 0, %s13
      %p10 = scmp.ge.s32.totalorder %s9, 6
      %s16 = sphi 0, %s42
      %s17 = sphi 0, %s38
      %s18 = sphi 0, %s34
      %s19 = sphi 0, %s30
      %s20 = sphi 0, %s16
      %s21 = sphi 0, %s17
      %s22 = sphi 0, %s18
      %s23 = sphi 0, %s19
      %s24 = sphi 0, %s20
      %s25 = sphi 0, %s21
      %s26 = sphi 0, %s22
      %s27 = sphi 0, %s23
      %s49 = sphi 0, %s51
      %s52 = sphi 0, %s49
      %s53 = sphi 0, %s52
      %s69 = sphi 0, %s53
      %s81 = sphi 0, %s83
      %s84 = sphi 0, %s81
      %s85 = sphi 0, %s84
      %s101 = sphi 0, %s85
      %s113 = sphi 0, %s115
      %s116 = sphi 0, %s113
      %s117 = sphi 0, %s116
      %s133 = sphi 0, %s117
      %s143 = sphi 0, %s145
      %s146 = sphi 0, %s143
      %s147 = sphi 0, %s146
      %s163 = sphi 0, %s147
    $region4: #{dino_extractor_forward.63} parent=1 // loop_header_branch
      %12 = sbr.rel (%p10) target = $region8
    $region5: #{dino_extractor_forward.63} parent=1 // loop_body
      %s14 = ssub.s32 %s9, 1
      %s15 = ssub.s32 %s9, 2
      %s28 = sadd.s32 1, %s19
      %p29 = scmp.ge.s32.totalorder %s28, 1
      %s30 = scalar_select %p29, 0, %s28
      %s31 = sadd.s32 1, %s18
      %s32 = scalar_select %p29, %s31, %s18
      %p33 = scmp.ge.s32.totalorder %s32, 1
      %s34 = scalar_select %p33, 0, %s32
      %s35 = sadd.s32 1, %s17
      %s36 = scalar_select %p33, %s35, %s17
      %p37 = scmp.ge.s32.totalorder %s36, 2
      %s38 = scalar_select %p37, 0, %s36
      %s39 = sadd.s32 1, %s16
      %s40 = scalar_select %p37, %s39, %s16
      %p41 = scmp.ge.s32.totalorder %s40, 2
      %s42 = scalar_select %p41, 0, %s40
      %s43 = ssub.s32 %s16, %s42
      %s44 = ssub.s32 %s18, %s34
      %s45 = sor.u32 %s43, %s44
      %s46 = ssub.s32 %s17, %s38
      %s47 = sor.u32 %s45, %s46
      %p48 = scmp.eq.s32.totalorder %s47, 0
      %s50 = sadd.s32 %s49, 1
      %s51 = scalar_select %p48, %s49, %s50
      %p54 = pneg %p48
      %p55 = scmp.eq.s32.totalorder %s9, 3
      %p56 = por %p54, %p55
      %p57 = scmp.ne.s32.totalorder %s49, %s52
      %p58 = scmp.eq.s32.totalorder %s9, 0
      %p59 = por %p57, %p58
      %p60 = scmp.ne.s32.totalorder %s49, %s52
      %p61 = scmp.eq.s32.totalorder %s14, 3
      %p62 = por %p60, %p61
      %p63 = scmp.ne.s32.totalorder %s52, %s53
      %p64 = scmp.eq.s32.totalorder %s14, 0
      %p65 = por %p63, %p64
      %p66 = scmp.ne.s32.totalorder %s52, %s53
      %p67 = scmp.eq.s32.totalorder %s15, 3
      %p68 = por %p66, %p67
      %p70 = scmp.ne.s32.totalorder %s53, %s69
      %p71 = scmp.eq.s32.totalorder %s15, 0
      %p72 = por %p70, %p71
      %s73 = sadd.s32 %s17, 2
      %s74 = sadd.s32 %s38, 2
      %s75 = ssub.s32 %s16, %s42
      %s76 = ssub.s32 %s19, %s30
      %s77 = sor.u32 %s75, %s76
      %s78 = ssub.s32 %s73, %s74
      %s79 = sor.u32 %s77, %s78
      %p80 = scmp.eq.s32.totalorder %s79, 0
      %s82 = sadd.s32 %s81, 1
      %s83 = scalar_select %p80, %s81, %s82
      %p86 = pneg %p80
      %p87 = scmp.eq.s32.totalorder %s9, 3
      %p88 = por %p86, %p87
      %p89 = scmp.ne.s32.totalorder %s81, %s84
      %p90 = scmp.eq.s32.totalorder %s9, 0
      %p91 = por %p89, %p90
      %p92 = scmp.ne.s32.totalorder %s81, %s84
      %p93 = scmp.eq.s32.totalorder %s14, 3
      %p94 = por %p92, %p93
      %p95 = scmp.ne.s32.totalorder %s84, %s85
      %p96 = scmp.eq.s32.totalorder %s14, 0
      %p97 = por %p95, %p96
      %p98 = scmp.ne.s32.totalorder %s84, %s85
      %p99 = scmp.eq.s32.totalorder %s15, 3
      %p100 = por %p98, %p99
      %p102 = scmp.ne.s32.totalorder %s85, %s101
      %p103 = scmp.eq.s32.totalorder %s15, 0
      %p104 = por %p102, %p103
      %s105 = sadd.s32 %s17, 4
      %s106 = sadd.s32 %s38, 4
      %s107 = ssub.s32 %s16, %s42
      %s108 = ssub.s32 %s19, %s30
      %s109 = sor.u32 %s107, %s108
      %s110 = ssub.s32 %s105, %s106
      %s111 = sor.u32 %s109, %s110
      %p112 = scmp.eq.s32.totalorder %s111, 0
      %s114 = sadd.s32 %s113, 1
      %s115 = scalar_select %p112, %s113, %s114
      %p118 = pneg %p112
      %p119 = scmp.eq.s32.totalorder %s9, 3
      %p120 = por %p118, %p119
      %p121 = scmp.ne.s32.totalorder %s113, %s116
      %p122 = scmp.eq.s32.totalorder %s9, 0
      %p123 = por %p121, %p122
      %p124 = scmp.ne.s32.totalorder %s113, %s116
      %p125 = scmp.eq.s32.totalorder %s14, 3
      %p126 = por %p124, %p125
      %p127 = scmp.ne.s32.totalorder %s116, %s117
      %p128 = scmp.eq.s32.totalorder %s14, 0
      %p129 = por %p127, %p128
      %p130 = scmp.ne.s32.totalorder %s116, %s117
      %p131 = scmp.eq.s32.totalorder %s15, 3
      %p132 = por %p130, %p131
      %p134 = scmp.ne.s32.totalorder %s117, %s133
      %p135 = scmp.eq.s32.totalorder %s15, 0
      %p136 = por %p134, %p135
      %s137 = ssub.s32 %s16, %s42
      %s138 = ssub.s32 %s18, %s34
      %s139 = sor.u32 %s137, %s138
      %s140 = ssub.s32 %s17, %s38
      %s141 = sor.u32 %s139, %s140
      %p142 = scmp.eq.s32.totalorder %s141, 0
      %s144 = sadd.s32 %s143, 1
      %s145 = scalar_select %p142, %s143, %s144
      %p148 = pneg %p142
      %p149 = scmp.eq.s32.totalorder %s9, 3
      %p150 = por %p148, %p149
      %p151 = scmp.ne.s32.totalorder %s143, %s146
      %p152 = scmp.eq.s32.totalorder %s9, 0
      %p153 = por %p151, %p152
      %p154 = scmp.ne.s32.totalorder %s143, %s146
      %p155 = scmp.eq.s32.totalorder %s14, 3
      %p156 = por %p154, %p155
      %p157 = scmp.ne.s32.totalorder %s146, %s147
      %p158 = scmp.eq.s32.totalorder %s14, 0
      %p159 = por %p157, %p158
      %p160 = scmp.ne.s32.totalorder %s146, %s147
      %p161 = scmp.eq.s32.totalorder %s15, 3
      %p162 = por %p160, %p161
      %p164 = scmp.ne.s32.totalorder %s147, %s163
      %p165 = scmp.eq.s32.totalorder %s15, 0
      %p166 = por %p164, %p165
      %p167 = scmp.le.s32.totalorder 1, %s9
      %p168 = scmp.lt.s32.totalorder %s9, 5
      %p169 = pnand %p167, %p168
      %p170 = pneg %p169
      // Predicated region
      $region9: #{dino_extractor_forward.63} parent=5 // pred_check
        _
      $region10: #{dino_extractor_forward.63} parent=5 // pred_check_branch
        %172 = sbr.rel (%p169) target = $region12
      $region11: #{dino_extractor_forward.63} parent=5 // pred_region
        %s173 = ssub.s32 %s9, 1
      $region12: #{dino_extractor_forward.63} parent=5 // pred_fallthru
        _
      %p174 = scmp.lt.s32.totalorder %s9, 4
      // Predicated region
      $region13: #{dino_extractor_forward.63} parent=5 // pred_check
        %p175 = pneg %p174
      $region14: #{dino_extractor_forward.63} parent=5 // pred_check_branch
        %177 = sbr.rel (%p175) target = $region16
      $region15: #{dino_extractor_forward.63} parent=5 // pred_region
        // Predicated region
        $region17: #{dino_extractor_forward.63} parent=15 // pred_check
          %p178 = pneg %p59
        $region18: #{dino_extractor_forward.63} parent=15 // pred_check_branch
          %180 = sbr.rel (%p178) target = $region20
        $region19: #{dino_extractor_forward.63} parent=15 // pred_region
          %s181 = sand.u32 %s49, 1
          %s182 = sand.u32 %s49, 1
          %s183 = smul.addr %s182, 12
          %s184 = scalar_lea.vmem [#allocation5], %s183
          %s185 = smul.u32 3, %s18
          %s186 = smul.addr %s185, 6
          %s187 = sadd.s32 %s17, %s186
          %s188 = smul.addr %s16, 18
          %s189 = sadd.s32 %s187, %s188
          %s190 = smul.addr %s189, 4
          %s191 = scalar_lea.vmem %s0, %s190
          // Predicated region
          $region21: #{dino_extractor_forward.63} parent=19 // pred_check
            _
          $region22: #{dino_extractor_forward.63} parent=19 // pred_check_branch
            %193 = sbr.rel (0) target = $region24
          $region23: #{dino_extractor_forward.63} parent=19 // pred_region
            // Predicated region
            $region25: #{dino_extractor_forward.63} parent=23 // pred_check
              _
            $region26: #{dino_extractor_forward.63} parent=23 // pred_check_branch
              %195 = sbr.rel target = $region28
            $region27: #{dino_extractor_forward.63} parent=23 // pred_region
              // Predicated region
              $region40: #{dino_extractor_forward.63} parent=27 // pred_check
                _
              $region41: #{dino_extractor_forward.63} parent=27 // pred_check_branch
                %214 = sbr.rel (0) target = $region43
              $region42: #{dino_extractor_forward.63} parent=27 // pred_region
                loop: start=0, step=1, limit=1
                $region44: #{dino_extractor_forward.63} parent=42 // loop_pre_header
                  _
                $region45: #{dino_extractor_forward.63} parent=42 // loop_header
                  %s216 = sphi 0, %s220
                  %p217 = scmp.ge.s32.totalorder %s216, 1
                  %s221 = sphi %s191, %s191
                  %s222 = sphi %s184, %s184
                $region46: #{dino_extractor_forward.63} parent=42 // loop_header_branch
                  %219 = sbr.rel (%p217) target = $region50
                $region47: #{dino_extractor_forward.63} parent=42 // loop_body
                  _
                $region48: #{dino_extractor_forward.63} parent=42 // loop_footer
                  %s220 = sadd.s32 1, %s216
                $region49: #{dino_extractor_forward.63} parent=42 // loop_footer_branch
                  %215 = sbr.rel target = $region45
                $region50: #{dino_extractor_forward.63} parent=42 // loop_exit
                  _
                loop: start=0, step=1, limit=1
                $region51: #{dino_extractor_forward.63} parent=42 // loop_pre_header
                  _
                $region52: #{dino_extractor_forward.63} parent=42 // loop_header
                  %s225 = sphi 0, %s229
                  %p226 = scmp.ge.s32.totalorder %s225, 1
                  %s230 = sphi %s191, %s191
                  %s231 = sphi %s184, %s184
                $region53: #{dino_extractor_forward.63} parent=42 // loop_header_branch
                  %228 = sbr.rel (%p226) target = $region57
                $region54: #{dino_extractor_forward.63} parent=42 // loop_body
                  %v232 = vld [vmem:[%s230] sm:$0xf]
                  %233 = vst [vmem:[%s231] sm:$0xf] %v232
                  %v234 = vld [vmem:[%s230 + $0x18] sm:$0xf]
                  %235 = vst [vmem:[%s231 + $0x4] sm:$0xf] %v234
                  %v236 = vld [vmem:[%s230 + $0x30] sm:$0xf]
                  %237 = vst [vmem:[%s231 + $0x8] sm:$0xf] %v236
                $region55: #{dino_extractor_forward.63} parent=42 // loop_footer
                  %s229 = sadd.s32 1, %s225
                $region56: #{dino_extractor_forward.63} parent=42 // loop_footer_branch
                  %224 = sbr.rel target = $region52
                $region57: #{dino_extractor_forward.63} parent=42 // loop_exit
                  _
              $region43: #{dino_extractor_forward.63} parent=27 // pred_fallthru
                _
            $region28: #{dino_extractor_forward.63} parent=23 // pred_fallthru
              _
            // Predicated region
            $region29: #{dino_extractor_forward.63} parent=23 // pred_check
              _
            $region30: #{dino_extractor_forward.63} parent=23 // pred_check_branch
              %197 = sbr.rel (0) target = $region32
            $region31: #{dino_extractor_forward.63} parent=23 // pred_region
              loop: start=0, step=1, limit=1
              $region33: #{dino_extractor_forward.63} parent=31 // loop_pre_header
                _
              $region34: #{dino_extractor_forward.63} parent=31 // loop_header
                %s200 = sphi 0, %s204
                %p201 = scmp.ge.s32.totalorder %s200, 1
                %s205 = sphi %s191, %s191
                %s206 = sphi %s184, %s184
              $region35: #{dino_extractor_forward.63} parent=31 // loop_header_branch
                %203 = sbr.rel (%p201) target = $region39
              $region36: #{dino_extractor_forward.63} parent=31 // loop_body
                %v207 = vld [vmem:[%s205] sm:$0xf]
                %208 = vst [vmem:[%s206] sm:$0xf] %v207
                %v209 = vld [vmem:[%s205 + $0x18] sm:$0xf]
                %210 = vst [vmem:[%s206 + $0x4] sm:$0xf] %v209
                %v211 = vld [vmem:[%s205 + $0x30] sm:$0xf]
                %212 = vst [vmem:[%s206 + $0x8] sm:$0xf] %v211
              $region37: #{dino_extractor_forward.63} parent=31 // loop_footer
                %s204 = sadd.s32 1, %s200
              $region38: #{dino_extractor_forward.63} parent=31 // loop_footer_branch
                %199 = sbr.rel target = $region34
              $region39: #{dino_extractor_forward.63} parent=31 // loop_exit
                _
            $region32: #{dino_extractor_forward.63} parent=23 // pred_fallthru
              _
          $region24: #{dino_extractor_forward.63} parent=19 // pred_fallthru
            _
          %238 = vnop
        $region20: #{dino_extractor_forward.63} parent=15 // pred_fallthru
          _
        // Predicated region
        $region58: #{dino_extractor_forward.63} parent=15 // pred_check
          %p239 = pneg %p91
        $region59: #{dino_extractor_forward.63} parent=15 // pred_check_branch
          %241 = sbr.rel (%p239) target = $region61
        $region60: #{dino_extractor_forward.63} parent=15 // pred_region
          %s242 = sand.u32 %s81, 1
          %s243 = sand.u32 %s81, 1
          %s244 = smul.addr %s243, 12
          %s245 = scalar_lea.vmem [#allocation6], %s244
          %s246 = sadd.s32 %s17, 2
          %s247 = smul.u32 3, %s19
          %s248 = smul.addr %s247, 6
          %s249 = sadd.s32 %s246, %s248
          %s250 = smul.addr %s16, 18
          %s251 = sadd.s32 %s249, %s250
          %s252 = smul.addr %s251, 4
          %s253 = scalar_lea.vmem %s1, %s252
          // Predicated region
          $region62: #{dino_extractor_forward.63} parent=60 // pred_check
            _
          $region63: #{dino_extractor_forward.63} parent=60 // pred_check_branch
            %255 = sbr.rel (0) target = $region65
          $region64: #{dino_extractor_forward.63} parent=60 // pred_region
            // Predicated region
            $region66: #{dino_extractor_forward.63} parent=64 // pred_check
              _
            $region67: #{dino_extractor_forward.63} parent=64 // pred_check_branch
              %257 = sbr.rel target = $region69
            $region68: #{dino_extractor_forward.63} parent=64 // pred_region
              // Predicated region
              $region81: #{dino_extractor_forward.63} parent=68 // pred_check
                _
              $region82: #{dino_extractor_forward.63} parent=68 // pred_check_branch
                %276 = sbr.rel (0) target = $region84
              $region83: #{dino_extractor_forward.63} parent=68 // pred_region
                loop: start=0, step=1, limit=1
                $region85: #{dino_extractor_forward.63} parent=83 // loop_pre_header
                  _
                $region86: #{dino_extractor_forward.63} parent=83 // loop_header
                  %s278 = sphi 0, %s282
                  %p279 = scmp.ge.s32.totalorder %s278, 1
                  %s283 = sphi %s253, %s253
                  %s284 = sphi %s245, %s245
                $region87: #{dino_extractor_forward.63} parent=83 // loop_header_branch
                  %281 = sbr.rel (%p279) target = $region91
                $region88: #{dino_extractor_forward.63} parent=83 // loop_body
                  _
                $region89: #{dino_extractor_forward.63} parent=83 // loop_footer
                  %s282 = sadd.s32 1, %s278
                $region90: #{dino_extractor_forward.63} parent=83 // loop_footer_branch
                  %277 = sbr.rel target = $region86
                $region91: #{dino_extractor_forward.63} parent=83 // loop_exit
                  _
                loop: start=0, step=1, limit=1
                $region92: #{dino_extractor_forward.63} parent=83 // loop_pre_header
                  _
                $region93: #{dino_extractor_forward.63} parent=83 // loop_header
                  %s287 = sphi 0, %s291
                  %p288 = scmp.ge.s32.totalorder %s287, 1
                  %s292 = sphi %s253, %s253
                  %s293 = sphi %s245, %s245
                $region94: #{dino_extractor_forward.63} parent=83 // loop_header_branch
                  %290 = sbr.rel (%p288) target = $region98
                $region95: #{dino_extractor_forward.63} parent=83 // loop_body
                  %v294 = vld [vmem:[%s292] sm:$0xf]
                  %295 = vst [vmem:[%s293] sm:$0xf] %v294
                  %v296 = vld [vmem:[%s292 + $0x18] sm:$0xf]
                  %297 = vst [vmem:[%s293 + $0x4] sm:$0xf] %v296
                  %v298 = vld [vmem:[%s292 + $0x30] sm:$0xf]
                  %299 = vst [vmem:[%s293 + $0x8] sm:$0xf] %v298
                $region96: #{dino_extractor_forward.63} parent=83 // loop_footer
                  %s291 = sadd.s32 1, %s287
                $region97: #{dino_extractor_forward.63} parent=83 // loop_footer_branch
                  %286 = sbr.rel target = $region93
                $region98: #{dino_extractor_forward.63} parent=83 // loop_exit
                  _
              $region84: #{dino_extractor_forward.63} parent=68 // pred_fallthru
                _
            $region69: #{dino_extractor_forward.63} parent=64 // pred_fallthru
              _
            // Predicated region
            $region70: #{dino_extractor_forward.63} parent=64 // pred_check
              _
            $region71: #{dino_extractor_forward.63} parent=64 // pred_check_branch
              %259 = sbr.rel (0) target = $region73
            $region72: #{dino_extractor_forward.63} parent=64 // pred_region
              loop: start=0, step=1, limit=1
              $region74: #{dino_extractor_forward.63} parent=72 // loop_pre_header
                _
              $region75: #{dino_extractor_forward.63} parent=72 // loop_header
                %s262 = sphi 0, %s266
                %p263 = scmp.ge.s32.totalorder %s262, 1
                %s267 = sphi %s253, %s253
                %s268 = sphi %s245, %s245
              $region76: #{dino_extractor_forward.63} parent=72 // loop_header_branch
                %265 = sbr.rel (%p263) target = $region80
              $region77: #{dino_extractor_forward.63} parent=72 // loop_body
                %v269 = vld [vmem:[%s267] sm:$0xf]
                %270 = vst [vmem:[%s268] sm:$0xf] %v269
                %v271 = vld [vmem:[%s267 + $0x18] sm:$0xf]
                %272 = vst [vmem:[%s268 + $0x4] sm:$0xf] %v271
                %v273 = vld [vmem:[%s267 + $0x30] sm:$0xf]
                %274 = vst [vmem:[%s268 + $0x8] sm:$0xf] %v273
              $region78: #{dino_extractor_forward.63} parent=72 // loop_footer
                %s266 = sadd.s32 1, %s262
              $region79: #{dino_extractor_forward.63} parent=72 // loop_footer_branch
                %261 = sbr.rel target = $region75
              $region80: #{dino_extractor_forward.63} parent=72 // loop_exit
                _
            $region73: #{dino_extractor_forward.63} parent=64 // pred_fallthru
              _
          $region65: #{dino_extractor_forward.63} parent=60 // pred_fallthru
            _
          %300 = vnop
        $region61: #{dino_extractor_forward.63} parent=15 // pred_fallthru
          _
        // Predicated region
        $region99: #{dino_extractor_forward.63} parent=15 // pred_check
          %p301 = pneg %p123
        $region100: #{dino_extractor_forward.63} parent=15 // pred_check_branch
          %303 = sbr.rel (%p301) target = $region102
        $region101: #{dino_extractor_forward.63} parent=15 // pred_region
          %s304 = sand.u32 %s113, 1
          %s305 = sand.u32 %s113, 1
          %s306 = smul.addr %s305, 12
          %s307 = scalar_lea.vmem [#allocation7], %s306
          %s308 = sadd.s32 %s17, 4
          %s309 = smul.u32 3, %s19
          %s310 = smul.addr %s309, 6
          %s311 = sadd.s32 %s308, %s310
          %s312 = smul.addr %s16, 18
          %s313 = sadd.s32 %s311, %s312
          %s314 = smul.addr %s313, 4
          %s315 = scalar_lea.vmem %s2, %s314
          // Predicated region
          $region103: #{dino_extractor_forward.63} parent=101 // pred_check
            _
          $region104: #{dino_extractor_forward.63} parent=101 // pred_check_branch
            %317 = sbr.rel (0) target = $region106
          $region105: #{dino_extractor_forward.63} parent=101 // pred_region
            // Predicated region
            $region107: #{dino_extractor_forward.63} parent=105 // pred_check
              _
            $region108: #{dino_extractor_forward.63} parent=105 // pred_check_branch
              %319 = sbr.rel target = $region110
            $region109: #{dino_extractor_forward.63} parent=105 // pred_region
              // Predicated region
              $region122: #{dino_extractor_forward.63} parent=109 // pred_check
                _
              $region123: #{dino_extractor_forward.63} parent=109 // pred_check_branch
                %338 = sbr.rel (0) target = $region125
              $region124: #{dino_extractor_forward.63} parent=109 // pred_region
                loop: start=0, step=1, limit=1
                $region126: #{dino_extractor_forward.63} parent=124 // loop_pre_header
                  _
                $region127: #{dino_extractor_forward.63} parent=124 // loop_header
                  %s340 = sphi 0, %s344
                  %p341 = scmp.ge.s32.totalorder %s340, 1
                  %s345 = sphi %s315, %s315
                  %s346 = sphi %s307, %s307
                $region128: #{dino_extractor_forward.63} parent=124 // loop_header_branch
                  %343 = sbr.rel (%p341) target = $region132
                $region129: #{dino_extractor_forward.63} parent=124 // loop_body
                  _
                $region130: #{dino_extractor_forward.63} parent=124 // loop_footer
                  %s344 = sadd.s32 1, %s340
                $region131: #{dino_extractor_forward.63} parent=124 // loop_footer_branch
                  %339 = sbr.rel target = $region127
                $region132: #{dino_extractor_forward.63} parent=124 // loop_exit
                  _
                loop: start=0, step=1, limit=1
                $region133: #{dino_extractor_forward.63} parent=124 // loop_pre_header
                  _
                $region134: #{dino_extractor_forward.63} parent=124 // loop_header
                  %s349 = sphi 0, %s353
                  %p350 = scmp.ge.s32.totalorder %s349, 1
                  %s354 = sphi %s315, %s315
                  %s355 = sphi %s307, %s307
                $region135: #{dino_extractor_forward.63} parent=124 // loop_header_branch
                  %352 = sbr.rel (%p350) target = $region139
                $region136: #{dino_extractor_forward.63} parent=124 // loop_body
                  %v356 = vld [vmem:[%s354] sm:$0xf]
                  %357 = vst [vmem:[%s355] sm:$0xf] %v356
                  %v358 = vld [vmem:[%s354 + $0x18] sm:$0xf]
                  %359 = vst [vmem:[%s355 + $0x4] sm:$0xf] %v358
                  %v360 = vld [vmem:[%s354 + $0x30] sm:$0xf]
                  %361 = vst [vmem:[%s355 + $0x8] sm:$0xf] %v360
                $region137: #{dino_extractor_forward.63} parent=124 // loop_footer
                  %s353 = sadd.s32 1, %s349
                $region138: #{dino_extractor_forward.63} parent=124 // loop_footer_branch
                  %348 = sbr.rel target = $region134
                $region139: #{dino_extractor_forward.63} parent=124 // loop_exit
                  _
              $region125: #{dino_extractor_forward.63} parent=109 // pred_fallthru
                _
            $region110: #{dino_extractor_forward.63} parent=105 // pred_fallthru
              _
            // Predicated region
            $region111: #{dino_extractor_forward.63} parent=105 // pred_check
              _
            $region112: #{dino_extractor_forward.63} parent=105 // pred_check_branch
              %321 = sbr.rel (0) target = $region114
            $region113: #{dino_extractor_forward.63} parent=105 // pred_region
              loop: start=0, step=1, limit=1
              $region115: #{dino_extractor_forward.63} parent=113 // loop_pre_header
                _
              $region116: #{dino_extractor_forward.63} parent=113 // loop_header
                %s324 = sphi 0, %s328
                %p325 = scmp.ge.s32.totalorder %s324, 1
                %s329 = sphi %s315, %s315
                %s330 = sphi %s307, %s307
              $region117: #{dino_extractor_forward.63} parent=113 // loop_header_branch
                %327 = sbr.rel (%p325) target = $region121
              $region118: #{dino_extractor_forward.63} parent=113 // loop_body
                %v331 = vld [vmem:[%s329] sm:$0xf]
                %332 = vst [vmem:[%s330] sm:$0xf] %v331
                %v333 = vld [vmem:[%s329 + $0x18] sm:$0xf]
                %334 = vst [vmem:[%s330 + $0x4] sm:$0xf] %v333
                %v335 = vld [vmem:[%s329 + $0x30] sm:$0xf]
                %336 = vst [vmem:[%s330 + $0x8] sm:$0xf] %v335
              $region119: #{dino_extractor_forward.63} parent=113 // loop_footer
                %s328 = sadd.s32 1, %s324
              $region120: #{dino_extractor_forward.63} parent=113 // loop_footer_branch
                %323 = sbr.rel target = $region116
              $region121: #{dino_extractor_forward.63} parent=113 // loop_exit
                _
            $region114: #{dino_extractor_forward.63} parent=105 // pred_fallthru
              _
          $region106: #{dino_extractor_forward.63} parent=101 // pred_fallthru
            _
          %362 = vnop
        $region102: #{dino_extractor_forward.63} parent=15 // pred_fallthru
          _
      $region16: #{dino_extractor_forward.63} parent=5 // pred_fallthru
        _
      %p363 = scmp.le.s32.totalorder 1, %s9
      %p364 = scmp.lt.s32.totalorder %s9, 5
      %p365 = pnand %p363, %p364
      %p366 = pneg %p365
      // Predicated region
      $region140: #{dino_extractor_forward.63} parent=5 // pred_check
        _
      $region141: #{dino_extractor_forward.63} parent=5 // pred_check_branch
        %368 = sbr.rel (%p365) target = $region143
      $region142: #{dino_extractor_forward.63} parent=5 // pred_region
        %s369 = ssub.s32 %s9, 1
        %s370 = sand.u32 %s52, 1
        %s371 = sand.u32 %s52, 1
        %s372 = smul.addr %s371, 12
        %s373 = scalar_lea.vmem [#allocation5], %s372
        // Predicated region
        $region144: #{dino_extractor_forward.63} parent=142 // pred_check
          %p374 = pneg %p65
        $region145: #{dino_extractor_forward.63} parent=142 // pred_check_branch
          %376 = sbr.rel (%p374) target = $region147
        $region146: #{dino_extractor_forward.63} parent=142 // pred_region
          _
        $region147: #{dino_extractor_forward.63} parent=142 // pred_fallthru
          _
        %s377 = sand.u32 %s84, 1
        %s378 = sand.u32 %s84, 1
        %s379 = smul.addr %s378, 12
        %s380 = scalar_lea.vmem [#allocation6], %s379
        // Predicated region
        $region148: #{dino_extractor_forward.63} parent=142 // pred_check
          %p381 = pneg %p97
        $region149: #{dino_extractor_forward.63} parent=142 // pred_check_branch
          %383 = sbr.rel (%p381) target = $region151
        $region150: #{dino_extractor_forward.63} parent=142 // pred_region
          _
        $region151: #{dino_extractor_forward.63} parent=142 // pred_fallthru
          _
        %s384 = sand.u32 %s116, 1
        %s385 = sand.u32 %s116, 1
        %s386 = smul.addr %s385, 12
        %s387 = scalar_lea.vmem [#allocation7], %s386
        // Predicated region
        $region152: #{dino_extractor_forward.63} parent=142 // pred_check
          %p388 = pneg %p129
        $region153: #{dino_extractor_forward.63} parent=142 // pred_check_branch
          %390 = sbr.rel (%p388) target = $region155
        $region154: #{dino_extractor_forward.63} parent=142 // pred_region
          _
        $region155: #{dino_extractor_forward.63} parent=142 // pred_fallthru
          _
        %s391 = sand.u32 %s52, 1
        %s392 = sand.u32 %s52, 1
        %s393 = smul.addr %s392, 12
        %s394 = scalar_lea.vmem [#allocation5], %s393
        %p395 = pneg %p65
        %p396 = pneg %p62
        %s397 = sand.u32 %s84, 1
        %s398 = sand.u32 %s84, 1
        %s399 = smul.addr %s398, 12
        %s400 = scalar_lea.vmem [#allocation6], %s399
        %p401 = pneg %p97
        %p402 = pneg %p94
        %s403 = sand.u32 %s116, 1
        %s404 = sand.u32 %s116, 1
        %s405 = smul.addr %s404, 12
        %s406 = scalar_lea.vmem [#allocation7], %s405
        %p407 = pneg %p129
        %p408 = pneg %p126
        %p409 = pneg %p159
        %p410 = pneg %p156
        %s411 = sand.u32 %s146, 1
        %s412 = sand.u32 %s146, 1
        %s413 = smul.addr %s412, 12
        %s414 = scalar_lea.vmem [#allocation8], %s413
        %s415 = smul.u32 3, %s22
        %s416 = sadd.s32 %s21, 2
        %s417 = smul.u32 3, %s23
        %s418 = sadd.s32 %s21, 4
        %s419 = smul.u32 3, %s23
        %s420 = smul.u32 3, %s22
        %p422 = scmp.eq.s32.totalorder %s23, 0
        // Predicated region
        $region156: #{dino_extractor_forward.63} parent=142 // pred_check
          %p423 = pneg %p422
        $region157: #{dino_extractor_forward.63} parent=142 // pred_check_branch
          %425 = sbr.rel (%p423) target = $region159
        $region158: #{dino_extractor_forward.63} parent=142 // pred_region
          %vm426 = vcmask 7168
          %427 = vst.msk [vmem:[#allocation2] sm:$0xff] %vm426, -inf
          %428 = vst.msk [vmem:[#allocation2 + $0x8] sm:$0xff] %vm426, -inf
          %vm429 = vcmask 4096
          %430 = vst.msk [vmem:[#allocation2 + $0x10] sm:$0x1f] %vm429, -inf
          %431 = vst.msk [vmem:[#allocation3] sm:$0xff] %vm426, 0.0
          %432 = vst.msk [vmem:[#allocation3 + $0x8] sm:$0xff] %vm426, 0.0
          %433 = vst.msk [vmem:[#allocation3 + $0x10] sm:$0x1f] %vm429, 0.0
          %434 = vst [vmem:[#allocation4] sm:$0xff] 0.0
          %435 = vst [vmem:[#allocation4 + $0x8] sm:$0xff] 0.0
          %436 = vst [vmem:[#allocation4 + $0x10] sm:$0x1f] 0.0
        $region159: #{dino_extractor_forward.63} parent=142 // pred_fallthru
          _
        %v437 = vld [vmem:[%s373] sm:$0xf]
        %v438 = vld [vmem:[%s373 + $0x4] sm:$0xf]
        %v439 = vld [vmem:[%s373 + $0x8] sm:$0x7]
        %v440 = vunpack.c.l.bf16 %v437
        %v441 = vunpack.c.l.bf16 %v438
        %v442 = vunpack.c.l.bf16 %v439
        %v443 = vmul.f32 %v440, 0.088388346
        %v444 = vmul.f32 %v441, 0.088388346
        %v445 = vmul.f32 %v442, 0.088388346
        %v446 = vpack.c.bf16 %v444, %v443
        %v447 = vpack.c.bf16 %v445, %v445
        %v448 = vld [vmem:[%s380] sm:$0xf]
        %v449 = vld [vmem:[%s380 + $0x4] sm:$0xf]
        %v450 = vld [vmem:[%s380 + $0x8] sm:$0x7]
        %v451 = vld [vmem:[%s387] sm:$0xf]
        %v452 = vld [vmem:[%s387 + $0x4] sm:$0xf]
        %v453 = vld [vmem:[%s387 + $0x8] sm:$0x7]
        %v457 = vunpack.c.l.b16 %v448
        %v458 = vunpack.c.l.b16 %v449
        %v459 = vunpack.c.l.b16 %v450
        %v460 = vpack.c.b16 %v458, %v457
        %v461 = vpack.c.b16 %v459, %v459
        %464 = vmatprep.subr.bf16.mxu0 0
        %465 = vmatpush1.bf16.xpose.msra.mxu0 %v460
        %466 = vmatprep.subr.bf16.mxu0 0
        %467 = vmatpush1.bf16.xpose.msra.mxu0 %v461
        %468 = vmatprep.subr.bf16.mxu0 0
        %469 = vmatpush1.bf16.xpose.msra.mxu0 0
        %470 = vmatprep.subr.bf16.mxu0 0
        %471 = vmatpush1.bf16.xpose.msra.mxu0 0
        %472 = vmatprep.subr.bf16.mxu0 0
        %473 = vmatpush1.bf16.xpose.msra.mxu0 0
        %474 = vmatprep.subr.bf16.mxu0 0
        %475 = vmatpush1.bf16.xpose.msra.mxu0 0
        %476 = vmatprep.subr.bf16.mxu0 0
        %477 = vmatpush1.bf16.xpose.msra.mxu0 0
        %478 = vmatprep.subr.bf16.mxu0 0
        %479 = vmatpush1.bf16.xpose.msra.mxu0 0
        %480 = vmatprep.subr.bf16.mxu0 0
        %481 = vmatpush1.bf16.xpose.msra.mxu0 0
        %482 = vmatprep.subr.bf16.mxu0 0
        %483 = vmatpush1.bf16.xpose.msra.mxu0 0
        %484 = vmatprep.subr.bf16.mxu0 0
        %485 = vmatpush1.bf16.xpose.msra.mxu0 0
        %486 = vmatprep.subr.bf16.mxu0 0
        %487 = vmatpush1.bf16.xpose.msra.mxu0 0
        %488 = vmatprep.subr.bf16.mxu0 0
        %489 = vmatpush1.bf16.xpose.msra.mxu0 0
        %490 = vmatprep.subr.bf16.mxu0 0
        %491 = vmatpush1.bf16.xpose.msra.mxu0 0
        %492 = vmatprep.subr.bf16.mxu0 0
        %493 = vmatpush1.bf16.xpose.msra.mxu0 0
        %494 = vmatprep.subr.bf16.mxu0 0
        %495 = vmatpush1.bf16.xpose.msra.mxu0 0
        %496 = vmatprep.mubr.bf16.mxu0 0
        %497 = vmatmul.mubr.bf16.gmra.mrb[0].mxu0 %v446
        %v498 = vpop.f32.mrb[0].mxu0
        %v499 = vadd.f32 0.0, %v498
        %v500 = vpop.f32.mrb[0].mxu0
        %v501 = vpop.f32.mrb[0].mxu0
        %v502 = vadd.f32 0.0, %v501
        %v503 = vpop.f32.mrb[0].mxu0
        %504 = vmatprep.mubr.bf16.mxu0 0
        %505 = vmatmul.mubr.bf16.gmra.mrb[0].mxu0 %v447
        %v506 = vpop.f32.mrb[0].mxu0
        %v507 = vadd.f32 0.0, %v506
        %v508 = vpop.f32.mrb[0].mxu0
        %v509 = vpop.f32.mrb[0].mxu0
        %v510 = vpop.f32.mrb[0].mxu0
        %511 = vdwg.mxu0
        %v512 = vld [vmem:[#allocation2] sm:$0xff]
        %v513 = vld [vmem:[#allocation2 + $0x8] sm:$0xff]
        %v514 = vld [vmem:[#allocation2 + $0x10] sm:$0x1f]
        %vm515 = vcmask 171008
        %v516 = vsel %vm515, %v499, -inf
        %517 = vmax.xlane.f32.xlu0 %v516
        %v518 = vpop.xlane.xlu0 %517
        %v519 = vsel %vm515, %v502, -inf
        %520 = vmax.xlane.f32.xlu0 %v519
        %v521 = vpop.xlane.xlu0 %520
        %vm522 = vcmask 167936
        %v523 = vsel %vm522, %v507, -inf
        %524 = vmax.xlane.f32.xlu0 %v523
        %v525 = vpop.xlane.xlu0 %524
        %v526 = vmax.f32 %v512, %v518
        %v527 = vmax.f32 %v513, %v521
        %v528 = vmax.f32 %v514, %v525
        %v529 = vsub.f32 %v512, %v526
        %v530 = vsub.f32 %v513, %v527
        %v531 = vsub.f32 %v514, %v528
        %v532 = vmul.f32 %v529, 1.442695
        %v533 = vpow.pop %v532
        %v534 = vmul.f32 %v530, 1.442695
        %v535 = vpow.pop %v534
        %v536 = vmul.f32 %v531, 1.442695
        %v537 = vpow.pop %v536
        %539 = vset.pattern.permute.xlu0 0
        %540 = vperm.xlu0 %539, %v526
        %v541 = vpop.permute.xlu0 %540
        %544 = vset.pattern.permute.xlu0 0
        %545 = vperm.xlu0 %544, %v527
        %v546 = vpop.permute.xlu0 %545
        %549 = vset.pattern.permute.xlu0 0
        %550 = vperm.xlu0 %549, %v528
        %v551 = vpop.permute.xlu0 %550
        %v553 = vsub.f32 %v499, %v541
        %v554 = vsub.f32 %v502, %v546
        %v555 = vsub.f32 %v507, %v551
        %v556 = vmul.f32 %v553, 1.442695
        %v557 = vpow.pop %v556
        %v558 = vmul.f32 %v554, 1.442695
        %v559 = vpow.pop %v558
        %v560 = vmul.f32 %v555, 1.442695
        %v561 = vpow.pop %v560
        %v562 = vld [vmem:[#allocation3] sm:$0xff]
        %v563 = vld [vmem:[#allocation3 + $0x8] sm:$0xff]
        %v564 = vld [vmem:[#allocation3 + $0x10] sm:$0x1f]
        %v565 = vmul.f32 %v533, %v562
        %v566 = vmul.f32 %v535, %v563
        %v567 = vmul.f32 %v537, %v564
        %v568 = vsel %vm515, %v557, 0.0
        %569 = vadd.xlane.f32.xlu0 %v568
        %v570 = vpop.xlane.xlu0 %569
        %v571 = vsel %vm515, %v559, 0.0
        %572 = vadd.xlane.f32.xlu0 %v571
        %v573 = vpop.xlane.xlu0 %572
        %v574 = vsel %vm522, %v561, 0.0
        %575 = vadd.xlane.f32.xlu0 %v574
        %v576 = vpop.xlane.xlu0 %575
        %v577 = vadd.f32 %v565, %v570
        %v578 = vadd.f32 %v566, %v573
        %v579 = vadd.f32 %v567, %v576
        %vm580 = vcmask 7168
        %581 = vst.msk [vmem:[#allocation3] sm:$0xff] %vm580, %v577
        %582 = vst.msk [vmem:[#allocation3 + $0x8] sm:$0xff] %vm580, %v578
        %vm583 = vcmask 4096
        %584 = vst.msk [vmem:[#allocation3 + $0x10] sm:$0x1f] %vm583, %v579
        %v585 = vld [vmem:[#allocation4] sm:$0xff]
        %v586 = vld [vmem:[#allocation4 + $0x8] sm:$0xff]
        %v587 = vld [vmem:[#allocation4 + $0x10] sm:$0x1f]
        %589 = vset.pattern.permute.xlu0 0
        %590 = vperm.xlu0 %589, %v533
        %v591 = vpop.permute.xlu0 %590
        %594 = vset.pattern.permute.xlu0 0
        %595 = vperm.xlu0 %594, %v535
        %v596 = vpop.permute.xlu0 %595
        %599 = vset.pattern.permute.xlu0 0
        %600 = vperm.xlu0 %599, %v537
        %v601 = vpop.permute.xlu0 %600
        %v603 = vmul.f32 %v591, %v585
        %v604 = vmul.f32 %v596, %v586
        %v605 = vmul.f32 %v601, %v587
        %v606 = vpack.c.bf16 %v559, %v557
        %v607 = vpack.c.bf16 %v561, %v561
        %v611 = vunpack.c.l.b16 %v451
        %v612 = vunpack.c.l.b16 %v452
        %v613 = vunpack.c.l.b16 %v453
        %v614 = vpack.c.b16 %v612, %v611
        %v615 = vpack.c.b16 %v613, %v613
        %v618 = vsel %vm515, %v606, 0
        %v621 = vsel %vm515, %v607, 0
        %vm623 = vcmask 1041408
        %vm624 = vcmask 1042432
        %v625 = vsel %vm623, 4294967295, 65535
        %v626 = vsel %vm624, %v625, 0
        %v628 = vand.u32 %v615, %v626
        %630 = vmatprep.subr.bf16.mxu0 0
        %631 = vmatpush1.bf16.msra.mxu0 %v614
        %632 = vmatprep.subr.bf16.mxu0 0
        %633 = vmatpush1.bf16.msra.mxu0 %v628
        %634 = vmatprep.subr.bf16.mxu0 0
        %635 = vmatpush1.bf16.msra.mxu0 0
        %636 = vmatprep.subr.bf16.mxu0 0
        %637 = vmatpush1.bf16.msra.mxu0 0
        %638 = vmatprep.subr.bf16.mxu0 0
        %639 = vmatpush1.bf16.msra.mxu0 0
        %640 = vmatprep.subr.bf16.mxu0 0
        %641 = vmatpush1.bf16.msra.mxu0 0
        %642 = vmatprep.subr.bf16.mxu0 0
        %643 = vmatpush1.bf16.msra.mxu0 0
        %644 = vmatprep.subr.bf16.mxu0 0
        %645 = vmatpush1.bf16.msra.mxu0 0
        %646 = vmatprep.subr.bf16.mxu0 0
        %647 = vmatpush1.bf16.msra.mxu0 0
        %648 = vmatprep.subr.bf16.mxu0 0
        %649 = vmatpush1.bf16.msra.mxu0 0
        %650 = vmatprep.subr.bf16.mxu0 0
        %651 = vmatpush1.bf16.msra.mxu0 0
        %652 = vmatprep.subr.bf16.mxu0 0
        %653 = vmatpush1.bf16.msra.mxu0 0
        %654 = vmatprep.subr.bf16.mxu0 0
        %655 = vmatpush1.bf16.msra.mxu0 0
        %656 = vmatprep.subr.bf16.mxu0 0
        %657 = vmatpush1.bf16.msra.mxu0 0
        %658 = vmatprep.subr.bf16.mxu0 0
        %659 = vmatpush1.bf16.msra.mxu0 0
        %660 = vmatprep.subr.bf16.mxu0 0
        %661 = vmatpush1.bf16.msra.mxu0 0
        %662 = vmatprep.mubr.bf16.mxu0 0
        %663 = vmatmul.mubr.bf16.gmra.mrb[0].mxu0 %v618
        %v664 = vpop.f32.mrb[0].mxu0
        %v665 = vadd.f32 0.0, %v664
        %v666 = vpop.f32.mrb[0].mxu0
        %v667 = vpop.f32.mrb[0].mxu0
        %v668 = vadd.f32 0.0, %v667
        %v669 = vpop.f32.mrb[0].mxu0
        %670 = vmatprep.mubr.bf16.mxu0 0
        %671 = vmatmul.mubr.bf16.gmra.mrb[0].mxu0 %v621
        %v672 = vpop.f32.mrb[0].mxu0
        %v673 = vadd.f32 0.0, %v672
        %v674 = vpop.f32.mrb[0].mxu0
        %v675 = vpop.f32.mrb[0].mxu0
        %v676 = vpop.f32.mrb[0].mxu0
        %677 = vdwg.mxu0
        %v678 = vadd.f32 %v603, %v665
        %v679 = vadd.f32 %v604, %v668
        %v680 = vadd.f32 %v605, %v673
        %681 = vst [vmem:[#allocation4] sm:$0xff] %v678
        %682 = vst [vmem:[#allocation4 + $0x8] sm:$0xff] %v679
        %683 = vst [vmem:[#allocation4 + $0x10] sm:$0x1f] %v680
        %684 = vst.msk [vmem:[#allocation2] sm:$0xff] %vm580, %v526
        %685 = vst.msk [vmem:[#allocation2 + $0x8] sm:$0xff] %vm580, %v527
        %686 = vst.msk [vmem:[#allocation2 + $0x10] sm:$0x1f] %vm583, %v528
        // Predicated region
        $region160: #{dino_extractor_forward.63} parent=142 // pred_check
          %p687 = pneg %p422
        $region161: #{dino_extractor_forward.63} parent=142 // pred_check_branch
          %689 = sbr.rel (%p687) target = $region163
        $region162: #{dino_extractor_forward.63} parent=142 // pred_region
          %v690 = vld [vmem:[#allocation3] sm:$0xff]
          %v691 = vld [vmem:[#allocation3 + $0x8] sm:$0xff]
          %v692 = vld [vmem:[#allocation3 + $0x10] sm:$0x1f]
          %v693 = vrcp.pop %v690
          %v694 = vrcp.pop %v691
          %v695 = vrcp.pop %v692
          %v696 = vld [vmem:[#allocation4] sm:$0xff]
          %v697 = vld [vmem:[#allocation4 + $0x8] sm:$0xff]
          %v698 = vld [vmem:[#allocation4 + $0x10] sm:$0x1f]
          %700 = vset.pattern.permute.xlu0 0
          %701 = vperm.xlu0 %700, %v693
          %v702 = vpop.permute.xlu0 %701
          %705 = vset.pattern.permute.xlu0 0
          %706 = vperm.xlu0 %705, %v694
          %v707 = vpop.permute.xlu0 %706
          %710 = vset.pattern.permute.xlu0 0
          %711 = vperm.xlu0 %710, %v695
          %v712 = vpop.permute.xlu0 %711
          %v714 = vmul.f32 %v696, %v702
          %v715 = vmul.f32 %v697, %v707
          %v716 = vmul.f32 %v698, %v712
          %v717 = vpack.c.bf16 %v715, %v714
          %v718 = vpack.c.bf16 %v716, %v716
          %v721 = vunpack.c.l.b16 %v717
          %v722 = vunpack.c.h.b16 %v717
          %v723 = vunpack.c.l.b16 %v718
          %v724 = vpack.c.b16 %v721, %v721
          %v725 = vpack.c.b16 %v722, %v722
          %v726 = vpack.c.b16 %v723, %v723
          %730 = vst [vmem:[%s414] sm:$0xf] %v724
          %731 = vst [vmem:[%s414 + $0x4] sm:$0xf] %v725
          %vm732 = vcmask 1042432
          %vm733 = vsmask.f32 2304
          %vm734 = vmand %vm732, %vm733
          %v735 = vld [vmem:[%s414 + $0x8] sm:$0x7]
          %v736 = vsel %vm734, %v726, %v735
          %737 = vst [vmem:[%s414 + $0x8] sm:$0x7] %v736
        $region163: #{dino_extractor_forward.63} parent=142 // pred_fallthru
          _
        %s738 = sand.u32 %s146, 1
        %s739 = sand.u32 %s146, 1
        %s740 = smul.addr %s739, 12
        %s741 = scalar_lea.vmem [#allocation8], %s740
        // Predicated region
        $region164: #{dino_extractor_forward.63} parent=142 // pred_check
          %p742 = pneg %p156
        $region165: #{dino_extractor_forward.63} parent=142 // pred_check_branch
          %744 = sbr.rel (%p742) target = $region167
        $region166: #{dino_extractor_forward.63} parent=142 // pred_region
          %s745 = smul.u32 3, %s22
          %s746 = smul.addr %s745, 2
          %s747 = sadd.s32 %s21, %s746
          %s748 = smul.addr %s20, 6
          %s749 = sadd.s32 %s747, %s748
          %s750 = smul.addr %s749, 4
          %s751 = scalar_lea.vmem %s3, %s750
          // Predicated region
          $region168: #{dino_extractor_forward.63} parent=166 // pred_check
            _
          $region169: #{dino_extractor_forward.63} parent=166 // pred_check_branch
            %753 = sbr.rel (0) target = $region171
          $region170: #{dino_extractor_forward.63} parent=166 // pred_region
            // Predicated region
            $region172: #{dino_extractor_forward.63} parent=170 // pred_check
              _
            $region173: #{dino_extractor_forward.63} parent=170 // pred_check_branch
              %755 = sbr.rel target = $region175
            $region174: #{dino_extractor_forward.63} parent=170 // pred_region
              // Predicated region
              $region187: #{dino_extractor_forward.63} parent=174 // pred_check
                _
              $region188: #{dino_extractor_forward.63} parent=174 // pred_check_branch
                %774 = sbr.rel (0) target = $region190
              $region189: #{dino_extractor_forward.63} parent=174 // pred_region
                loop: start=0, step=1, limit=1
                $region191: #{dino_extractor_forward.63} parent=189 // loop_pre_header
                  _
                $region192: #{dino_extractor_forward.63} parent=189 // loop_header
                  %s776 = sphi 0, %s780
                  %p777 = scmp.ge.s32.totalorder %s776, 1
                  %s781 = sphi %s741, %s741
                  %s782 = sphi %s751, %s751
                $region193: #{dino_extractor_forward.63} parent=189 // loop_header_branch
                  %779 = sbr.rel (%p777) target = $region197
                $region194: #{dino_extractor_forward.63} parent=189 // loop_body
                  _
                $region195: #{dino_extractor_forward.63} parent=189 // loop_footer
                  %s780 = sadd.s32 1, %s776
                $region196: #{dino_extractor_forward.63} parent=189 // loop_footer_branch
                  %775 = sbr.rel target = $region192
                $region197: #{dino_extractor_forward.63} parent=189 // loop_exit
                  _
                loop: start=0, step=1, limit=1
                $region198: #{dino_extractor_forward.63} parent=189 // loop_pre_header
                  _
                $region199: #{dino_extractor_forward.63} parent=189 // loop_header
                  %s785 = sphi 0, %s789
                  %p786 = scmp.ge.s32.totalorder %s785, 1
                  %s790 = sphi %s741, %s741
                  %s791 = sphi %s751, %s751
                $region200: #{dino_extractor_forward.63} parent=189 // loop_header_branch
                  %788 = sbr.rel (%p786) target = $region204
                $region201: #{dino_extractor_forward.63} parent=189 // loop_body
                  %v792 = vld [vmem:[%s790] sm:$0xf]
                  %793 = vst [vmem:[%s791] sm:$0xf] %v792
                  %v794 = vld [vmem:[%s790 + $0x4] sm:$0xf]
                  %795 = vst [vmem:[%s791 + $0x8] sm:$0xf] %v794
                  %v796 = vld [vmem:[%s790 + $0x8] sm:$0xf]
                  %797 = vst [vmem:[%s791 + $0x10] sm:$0xf] %v796
                $region202: #{dino_extractor_forward.63} parent=189 // loop_footer
                  %s789 = sadd.s32 1, %s785
                $region203: #{dino_extractor_forward.63} parent=189 // loop_footer_branch
                  %784 = sbr.rel target = $region199
                $region204: #{dino_extractor_forward.63} parent=189 // loop_exit
                  _
              $region190: #{dino_extractor_forward.63} parent=174 // pred_fallthru
                _
            $region175: #{dino_extractor_forward.63} parent=170 // pred_fallthru
              _
            // Predicated region
            $region176: #{dino_extractor_forward.63} parent=170 // pred_check
              _
            $region177: #{dino_extractor_forward.63} parent=170 // pred_check_branch
              %757 = sbr.rel (0) target = $region179
            $region178: #{dino_extractor_forward.63} parent=170 // pred_region
              loop: start=0, step=1, limit=1
              $region180: #{dino_extractor_forward.63} parent=178 // loop_pre_header
                _
              $region181: #{dino_extractor_forward.63} parent=178 // loop_header
                %s760 = sphi 0, %s764
                %p761 = scmp.ge.s32.totalorder %s760, 1
                %s765 = sphi %s741, %s741
                %s766 = sphi %s751, %s751
              $region182: #{dino_extractor_forward.63} parent=178 // loop_header_branch
                %763 = sbr.rel (%p761) target = $region186
              $region183: #{dino_extractor_forward.63} parent=178 // loop_body
                %v767 = vld [vmem:[%s765] sm:$0xf]
                %768 = vst [vmem:[%s766] sm:$0xf] %v767
                %v769 = vld [vmem:[%s765 + $0x4] sm:$0xf]
                %770 = vst [vmem:[%s766 + $0x8] sm:$0xf] %v769
                %v771 = vld [vmem:[%s765 + $0x8] sm:$0xf]
                %772 = vst [vmem:[%s766 + $0x10] sm:$0xf] %v771
              $region184: #{dino_extractor_forward.63} parent=178 // loop_footer
                %s764 = sadd.s32 1, %s760
              $region185: #{dino_extractor_forward.63} parent=178 // loop_footer_branch
                %759 = sbr.rel target = $region181
              $region186: #{dino_extractor_forward.63} parent=178 // loop_exit
                _
            $region179: #{dino_extractor_forward.63} parent=170 // pred_fallthru
              _
          $region171: #{dino_extractor_forward.63} parent=166 // pred_fallthru
            _
          %798 = vnop
        $region167: #{dino_extractor_forward.63} parent=142 // pred_fallthru
          _
      $region143: #{dino_extractor_forward.63} parent=5 // pred_fallthru
        _
      %p799 = scmp.le.s32.totalorder 2, %s9
      // Predicated region
      $region205: #{dino_extractor_forward.63} parent=5 // pred_check
        %p800 = pneg %p799
      $region206: #{dino_extractor_forward.63} parent=5 // pred_check_branch
        %802 = sbr.rel (%p800) target = $region208
      $region207: #{dino_extractor_forward.63} parent=5 // pred_region
        %s803 = ssub.s32 %s9, 2
        // Predicated region
        $region209: #{dino_extractor_forward.63} parent=207 // pred_check
          %p804 = pneg %p162
        $region210: #{dino_extractor_forward.63} parent=207 // pred_check_branch
          %806 = sbr.rel (%p804) target = $region212
        $region211: #{dino_extractor_forward.63} parent=207 // pred_region
          %s807 = sand.u32 %s147, 1
          %s808 = sand.u32 %s147, 1
          %s809 = smul.addr %s808, 12
          %s810 = scalar_lea.vmem [#allocation8], %s809
        $region212: #{dino_extractor_forward.63} parent=207 // pred_fallthru
          _
      $region208: #{dino_extractor_forward.63} parent=5 // pred_fallthru
        _
    $region6: #{dino_extractor_forward.63} parent=1 // loop_footer
      %s13 = sadd.s32 1, %s9
    $region7: #{dino_extractor_forward.63} parent=1 // loop_footer_branch
      %8 = sbr.rel target = $region3
    $region8: #{dino_extractor_forward.63} parent=1 // loop_exit
      _

// kernel: dino_extractor_forward.64
$region0: #{dino_extractor_forward.64}
  #allocation0 [shape = 'u32[]', space=smem, size = 0x4, offset = 0x4, fixed_abs, tag = 'smem constant byte address 0x4 - core index']
  #allocation1 [shape = 'u32[144,128]{1,0:T(1,128)}', space=vmem, size = 0x12000, scoped, tag = 'internal scratch']
  %s0 = inlined_call_operand.vmem [shape: bf16[42,256], index: 0, kind: input, shape index: {}]
  %s1 = inlined_call_operand.vmem [shape: bf16[256,256], index: 1, kind: input, shape index: {}]
  %s2 = inlined_call_operand.vmem [shape: f32[1,256], index: 2, kind: input, shape index: {}]
  %s3 = inlined_call_operand.vmem [shape: f32[1,256], index: 3, kind: input, shape index: {}]
  %s4 = inlined_call_operand.vmem [shape: bf16[42,256], index: 4, kind: input, shape index: {}]
  %s5 = inlined_call_operand.vmem [shape: bf16[42,256], index: 5, kind: output, shape index: {}]
  %s6 = sld [smem:[#allocation0]]
  $region30: #{dino_extractor_forward.64} parent=0
    _
  %s8 = ssub.s32 1, %s6
  %s9 = scalar_select 0, %s8, %s6
  // Predicated region
  $region2: #{dino_extractor_forward.64} parent=0 // pred_check
    _
  $region3: #{dino_extractor_forward.64} parent=0 // pred_check_branch
    %11 = sbr.rel (0) target = $region5
  $region4: #{dino_extractor_forward.64} parent=0 // pred_region
    _
  $region5: #{dino_extractor_forward.64} parent=0 // pred_fallthru
    _
  // Predicated region
  $region6: #{dino_extractor_forward.64} parent=0 // pred_check
    _
  $region7: #{dino_extractor_forward.64} parent=0 // pred_check_branch
    %13 = sbr.rel (0) target = $region9
  $region8: #{dino_extractor_forward.64} parent=0 // pred_region
    _
  $region9: #{dino_extractor_forward.64} parent=0 // pred_fallthru
    _
  // Predicated region
  $region10: #{dino_extractor_forward.64} parent=0 // pred_check
    _
  $region11: #{dino_extractor_forward.64} parent=0 // pred_check_branch
    %15 = sbr.rel (0) target = $region13
  $region12: #{dino_extractor_forward.64} parent=0 // pred_region
    _
  $region13: #{dino_extractor_forward.64} parent=0 // pred_fallthru
    _
  // Predicated region
  $region14: #{dino_extractor_forward.64} parent=0 // pred_check
    _
  $region15: #{dino_extractor_forward.64} parent=0 // pred_check_branch
    %17 = sbr.rel (0) target = $region17
  $region16: #{dino_extractor_forward.64} parent=0 // pred_region
    _
  $region17: #{dino_extractor_forward.64} parent=0 // pred_fallthru
    _
  // Predicated region
  $region18: #{dino_extractor_forward.64} parent=0 // pred_check
    _
  $region19: #{dino_extractor_forward.64} parent=0 // pred_check_branch
    %19 = sbr.rel (0) target = $region21
  $region20: #{dino_extractor_forward.64} parent=0 // pred_region
    _
  $region21: #{dino_extractor_forward.64} parent=0 // pred_fallthru
    _
  %v20 = vld [vmem:[%s0] sm:$0xff]
  %v21 = vld [vmem:[%s0 + $0x8] sm:$0xff]
  %v22 = vld [vmem:[%s0 + $0x10] sm:$0xff]
  %v23 = vld [vmem:[%s0 + $0x18] sm:$0xff]
  %v24 = vld [vmem:[%s0 + $0x20] sm:$0xff]
  %v25 = vld [vmem:[%s0 + $0x28] sm:$0x11]
  %v26 = vld [vmem:[%s1] sm:$0xff]
  %v27 = vld [vmem:[%s1 + $0x8] sm:$0xff]
  %v28 = vld [vmem:[%s1 + $0x10] sm:$0xff]
  %v29 = vld [vmem:[%s1 + $0x18] sm:$0xff]
  %v30 = vld [vmem:[%s1 + $0x20] sm:$0xff]
  %v31 = vld [vmem:[%s1 + $0x28] sm:$0xff]
  %v32 = vld [vmem:[%s1 + $0x30] sm:$0xff]
  %v33 = vld [vmem:[%s1 + $0x38] sm:$0xff]
  %v34 = vld [vmem:[%s1 + $0x40] sm:$0xff]
  %v35 = vld [vmem:[%s1 + $0x48] sm:$0xff]
  %v36 = vld [vmem:[%s1 + $0x50] sm:$0xff]
  %v37 = vld [vmem:[%s1 + $0x58] sm:$0xff]
  %v38 = vld [vmem:[%s1 + $0x60] sm:$0xff]
  %v39 = vld [vmem:[%s1 + $0x68] sm:$0xff]
  %v40 = vld [vmem:[%s1 + $0x70] sm:$0xff]
  %v41 = vld [vmem:[%s1 + $0x78] sm:$0xff]
  %v42 = vld [vmem:[%s1 + $0x80] sm:$0xff]
  %v43 = vld [vmem:[%s1 + $0x88] sm:$0xff]
  %v44 = vld [vmem:[%s1 + $0x90] sm:$0xff]
  %v45 = vld [vmem:[%s1 + $0x98] sm:$0xff]
  %v46 = vld [vmem:[%s1 + $0xa0] sm:$0xff]
  %v47 = vld [vmem:[%s1 + $0xa8] sm:$0xff]
  %v48 = vld [vmem:[%s1 + $0xb0] sm:$0xff]
  %v49 = vld [vmem:[%s1 + $0xb8] sm:$0xff]
  %v50 = vld [vmem:[%s1 + $0xc0] sm:$0xff]
  %v51 = vld [vmem:[%s1 + $0xc8] sm:$0xff]
  %v52 = vld [vmem:[%s1 + $0xd0] sm:$0xff]
  %v53 = vld [vmem:[%s1 + $0xd8] sm:$0xff]
  %v54 = vld [vmem:[%s1 + $0xe0] sm:$0xff]
  %v55 = vld [vmem:[%s1 + $0xe8] sm:$0xff]
  %v56 = vld [vmem:[%s1 + $0xf0] sm:$0xff]
  %v57 = vld [vmem:[%s1 + $0xf8] sm:$0xff]
  %v58 = vld [vmem:[%s2] sm:$0x3]
  %v60 = vlaneseq
  %v61 = vshrl.u32 %v60, 7
  %v62 = vsub.s32 0, %v61
  %v63 = vrot.slane %v58, %v62
  %v64 = vlaneseq
  %v65 = vshrl.u32 %v64, 7
  %v66 = vsub.s32 1, %v65
  %v67 = vrot.slane %v58, %v66
  %v76 = vunpack.c.l.b16 %v20
  %v77 = vunpack.c.h.b16 %v20
  %v78 = vunpack.c.l.b16 %v21
  %v79 = vunpack.c.h.b16 %v21
  %v80 = vunpack.c.l.b16 %v22
  %v81 = vunpack.c.h.b16 %v22
  %v82 = vunpack.c.l.b16 %v23
  %v83 = vunpack.c.h.b16 %v23
  %v84 = vunpack.c.l.b16 %v24
  %v85 = vunpack.c.h.b16 %v24
  %v86 = vunpack.c.l.b16 %v25
  %v87 = vunpack.c.h.b16 %v25
  %v88 = vpack.c.b16 %v78, %v76
  %v89 = vpack.c.b16 %v79, %v77
  %v90 = vpack.c.b16 %v82, %v80
  %v91 = vpack.c.b16 %v83, %v81
  %v92 = vpack.c.b16 %v86, %v84
  %v93 = vpack.c.b16 %v87, %v85
  %v132 = vunpack.c.l.b16 %v26
  %v133 = vunpack.c.h.b16 %v26
  %v134 = vunpack.c.l.b16 %v27
  %v135 = vunpack.c.h.b16 %v27
  %v136 = vunpack.c.l.b16 %v28
  %v137 = vunpack.c.h.b16 %v28
  %v138 = vunpack.c.l.b16 %v29
  %v139 = vunpack.c.h.b16 %v29
  %v140 = vunpack.c.l.b16 %v30
  %v141 = vunpack.c.h.b16 %v30
  %v142 = vunpack.c.l.b16 %v31
  %v143 = vunpack.c.h.b16 %v31
  %v144 = vunpack.c.l.b16 %v32
  %v145 = vunpack.c.h.b16 %v32
  %v146 = vunpack.c.l.b16 %v33
  %v147 = vunpack.c.h.b16 %v33
  %v148 = vunpack.c.l.b16 %v34
  %v149 = vunpack.c.h.b16 %v34
  %v150 = vunpack.c.l.b16 %v35
  %v151 = vunpack.c.h.b16 %v35
  %v152 = vunpack.c.l.b16 %v36
  %v153 = vunpack.c.h.b16 %v36
  %v154 = vunpack.c.l.b16 %v37
  %v155 = vunpack.c.h.b16 %v37
  %v156 = vunpack.c.l.b16 %v38
  %v157 = vunpack.c.h.b16 %v38
  %v158 = vunpack.c.l.b16 %v39
  %v159 = vunpack.c.h.b16 %v39
  %v160 = vunpack.c.l.b16 %v40
  %v161 = vunpack.c.h.b16 %v40
  %v162 = vunpack.c.l.b16 %v41
  %v163 = vunpack.c.h.b16 %v41
  %v164 = vunpack.c.l.b16 %v42
  %v165 = vunpack.c.h.b16 %v42
  %v166 = vunpack.c.l.b16 %v43
  %v167 = vunpack.c.h.b16 %v43
  %v168 = vunpack.c.l.b16 %v44
  %v169 = vunpack.c.h.b16 %v44
  %v170 = vunpack.c.l.b16 %v45
  %v171 = vunpack.c.h.b16 %v45
  %v172 = vunpack.c.l.b16 %v46
  %v173 = vunpack.c.h.b16 %v46
  %v174 = vunpack.c.l.b16 %v47
  %v175 = vunpack.c.h.b16 %v47
  %v176 = vunpack.c.l.b16 %v48
  %v177 = vunpack.c.h.b16 %v48
  %v178 = vunpack.c.l.b16 %v49
  %v179 = vunpack.c.h.b16 %v49
  %v180 = vunpack.c.l.b16 %v50
  %v181 = vunpack.c.h.b16 %v50
  %v182 = vunpack.c.l.b16 %v51
  %v183 = vunpack.c.h.b16 %v51
  %v184 = vunpack.c.l.b16 %v52
  %v185 = vunpack.c.h.b16 %v52
  %v186 = vunpack.c.l.b16 %v53
  %v187 = vunpack.c.h.b16 %v53
  %v188 = vunpack.c.l.b16 %v54
  %v189 = vunpack.c.h.b16 %v54
  %v190 = vunpack.c.l.b16 %v55
  %v191 = vunpack.c.h.b16 %v55
  %v192 = vunpack.c.l.b16 %v56
  %v193 = vunpack.c.h.b16 %v56
  %v194 = vunpack.c.l.b16 %v57
  %v195 = vunpack.c.h.b16 %v57
  %v196 = vpack.c.b16 %v134, %v132
  %v197 = vpack.c.b16 %v135, %v133
  %v198 = vpack.c.b16 %v138, %v136
  %v199 = vpack.c.b16 %v139, %v137
  %v200 = vpack.c.b16 %v142, %v140
  %v201 = vpack.c.b16 %v143, %v141
  %v202 = vpack.c.b16 %v146, %v144
  %v203 = vpack.c.b16 %v147, %v145
  %v204 = vpack.c.b16 %v150, %v148
  %v205 = vpack.c.b16 %v151, %v149
  %v206 = vpack.c.b16 %v154, %v152
  %v207 = vpack.c.b16 %v155, %v153
  %v208 = vpack.c.b16 %v158, %v156
  %v209 = vpack.c.b16 %v159, %v157
  %v210 = vpack.c.b16 %v162, %v160
  %v211 = vpack.c.b16 %v163, %v161
  %v212 = vpack.c.b16 %v166, %v164
  %v213 = vpack.c.b16 %v167, %v165
  %v214 = vpack.c.b16 %v170, %v168
  %v215 = vpack.c.b16 %v171, %v169
  %v216 = vpack.c.b16 %v174, %v172
  %v217 = vpack.c.b16 %v175, %v173
  %v218 = vpack.c.b16 %v178, %v176
  %v219 = vpack.c.b16 %v179, %v177
  %v220 = vpack.c.b16 %v182, %v180
  %v221 = vpack.c.b16 %v183, %v181
  %v222 = vpack.c.b16 %v186, %v184
  %v223 = vpack.c.b16 %v187, %v185
  %v224 = vpack.c.b16 %v190, %v188
  %v225 = vpack.c.b16 %v191, %v189
  %v226 = vpack.c.b16 %v194, %v192
  %v227 = vpack.c.b16 %v195, %v193
  %260 = vmatprep.subr.bf16.mxu0 %v197
  %261 = vmatpush1.bf16.msra.mxu0 %v196
  %262 = vmatprep.subr.bf16.mxu0 %v199
  %263 = vmatpush1.bf16.msra.mxu0 %v198
  %264 = vmatprep.subr.bf16.mxu0 %v201
  %265 = vmatpush1.bf16.msra.mxu0 %v200
  %266 = vmatprep.subr.bf16.mxu0 %v203
  %267 = vmatpush1.bf16.msra.mxu0 %v202
  %268 = vmatprep.subr.bf16.mxu0 %v205
  %269 = vmatpush1.bf16.msra.mxu0 %v204
  %270 = vmatprep.subr.bf16.mxu0 %v207
  %271 = vmatpush1.bf16.msra.mxu0 %v206
  %272 = vmatprep.subr.bf16.mxu0 %v209
  %273 = vmatpush1.bf16.msra.mxu0 %v208
  %274 = vmatprep.subr.bf16.mxu0 %v211
  %275 = vmatpush1.bf16.msra.mxu0 %v210
  %276 = vmatprep.subr.bf16.mxu0 %v213
  %277 = vmatpush1.bf16.msra.mxu0 %v212
  %278 = vmatprep.subr.bf16.mxu0 %v215
  %279 = vmatpush1.bf16.msra.mxu0 %v214
  %280 = vmatprep.subr.bf16.mxu0 %v217
  %281 = vmatpush1.bf16.msra.mxu0 %v216
  %282 = vmatprep.subr.bf16.mxu0 %v219
  %283 = vmatpush1.bf16.msra.mxu0 %v218
  %284 = vmatprep.subr.bf16.mxu0 %v221
  %285 = vmatpush1.bf16.msra.mxu0 %v220
  %286 = vmatprep.subr.bf16.mxu0 %v223
  %287 = vmatpush1.bf16.msra.mxu0 %v222
  %288 = vmatprep.subr.bf16.mxu0 %v225
  %289 = vmatpush1.bf16.msra.mxu0 %v224
  %290 = vmatprep.subr.bf16.mxu0 %v227
  %291 = vmatpush1.bf16.msra.mxu0 %v226
  %292 = vmatprep.mubr.bf16.mxu0 %v89
  %293 = vmatmul.mubr.bf16.gmra.mrb[0].mxu0 %v88
  %v294 = vpop.f32.mrb[0].mxu0
  %v295 = vadd.f32 %v63, %v294
  %v296 = vpop.f32.mrb[0].mxu0
  %v297 = vadd.f32 %v67, %v296
  %v298 = vpop.f32.mrb[0].mxu0
  %v299 = vadd.f32 %v63, %v298
  %v300 = vpop.f32.mrb[0].mxu0
  %v301 = vadd.f32 %v67, %v300
  %302 = vmatprep.mubr.bf16.mxu0 %v91
  %303 = vmatmul.mubr.bf16.gmra.mrb[0].mxu0 %v90
  %v304 = vpop.f32.mrb[0].mxu0
  %v305 = vadd.f32 %v63, %v304
  %v306 = vpop.f32.mrb[0].mxu0
  %v307 = vadd.f32 %v67, %v306
  %v308 = vpop.f32.mrb[0].mxu0
  %v309 = vadd.f32 %v63, %v308
  %v310 = vpop.f32.mrb[0].mxu0
  %v311 = vadd.f32 %v67, %v310
  %312 = vmatprep.mubr.bf16.mxu0 %v93
  %313 = vmatmul.mubr.bf16.gmra.mrb[0].mxu0 %v92
  %v314 = vpop.f32.mrb[0].mxu0
  %v315 = vadd.f32 %v63, %v314
  %v316 = vpop.f32.mrb[0].mxu0
  %v317 = vadd.f32 %v67, %v316
  %v318 = vpop.f32.mrb[0].mxu0
  %v319 = vadd.f32 %v63, %v318
  %v320 = vpop.f32.mrb[0].mxu0
  %v321 = vadd.f32 %v67, %v320
  %322 = vdwg.mxu0
  %v323 = vld [vmem:[%s3] sm:$0x3]
  %v325 = vlaneseq
  %v326 = vshrl.u32 %v325, 7
  %v327 = vsub.s32 0, %v326
  %v328 = vrot.slane %v323, %v327
  %v329 = vlaneseq
  %v330 = vshrl.u32 %v329, 7
  %v331 = vsub.s32 1, %v330
  %v332 = vrot.slane %v323, %v331
  %v335 = vmul.f32 %v295, %v328
  %v336 = vmul.f32 %v297, %v332
  %v337 = vmul.f32 %v299, %v328
  %v338 = vmul.f32 %v301, %v332
  %v339 = vmul.f32 %v305, %v328
  %v340 = vmul.f32 %v307, %v332
  %v341 = vmul.f32 %v309, %v328
  %v342 = vmul.f32 %v311, %v332
  %v343 = vmul.f32 %v315, %v328
  %v344 = vmul.f32 %v317, %v332
  %v345 = vmul.f32 %v319, %v328
  %v346 = vmul.f32 %v321, %v332
  %v347 = vld [vmem:[%s4] sm:$0xff]
  %v348 = vld [vmem:[%s4 + $0x8] sm:$0xff]
  %v349 = vld [vmem:[%s4 + $0x10] sm:$0xff]
  %v350 = vld [vmem:[%s4 + $0x18] sm:$0xff]
  %v351 = vld [vmem:[%s4 + $0x20] sm:$0xff]
  %v352 = vld [vmem:[%s4 + $0x28] sm:$0x11]
  %v353 = vunpack.c.l.bf16 %v347
  %v354 = vunpack.c.h.bf16 %v347
  %v355 = vunpack.c.l.bf16 %v348
  %v356 = vunpack.c.h.bf16 %v348
  %v357 = vunpack.c.l.bf16 %v349
  %v358 = vunpack.c.h.bf16 %v349
  %v359 = vunpack.c.l.bf16 %v350
  %v360 = vunpack.c.h.bf16 %v350
  %v361 = vunpack.c.l.bf16 %v351
  %v362 = vunpack.c.h.bf16 %v351
  %v363 = vunpack.c.l.bf16 %v352
  %v364 = vunpack.c.h.bf16 %v352
  %v365 = vadd.f32 %v335, %v353
  %v366 = vadd.f32 %v336, %v354
  %v367 = vadd.f32 %v337, %v355
  %v368 = vadd.f32 %v338, %v356
  %v369 = vadd.f32 %v339, %v357
  %v370 = vadd.f32 %v340, %v358
  %v371 = vadd.f32 %v341, %v359
  %v372 = vadd.f32 %v342, %v360
  %v373 = vadd.f32 %v343, %v361
  %v374 = vadd.f32 %v344, %v362
  %v375 = vadd.f32 %v345, %v363
  %v376 = vadd.f32 %v346, %v364
  %v377 = vpack.c.bf16 %v367, %v365
  %v378 = vpack.c.bf16 %v368, %v366
  %v379 = vpack.c.bf16 %v371, %v369
  %v380 = vpack.c.bf16 %v372, %v370
  %v381 = vpack.c.bf16 %v375, %v373
  %v382 = vpack.c.bf16 %v376, %v374
  %v389 = vunpack.c.l.b16 %v377
  %v390 = vunpack.c.l.b16 %v378
  %v391 = vunpack.c.h.b16 %v377
  %v392 = vunpack.c.h.b16 %v378
  %v393 = vunpack.c.l.b16 %v379
  %v394 = vunpack.c.l.b16 %v380
  %v395 = vunpack.c.h.b16 %v379
  %v396 = vunpack.c.h.b16 %v380
  %v397 = vunpack.c.l.b16 %v381
  %v398 = vunpack.c.l.b16 %v382
  %v399 = vunpack.c.h.b16 %v381
  %v400 = vunpack.c.h.b16 %v382
  %v401 = vpack.c.b16 %v390, %v389
  %v402 = vpack.c.b16 %v392, %v391
  %v403 = vpack.c.b16 %v394, %v393
  %v404 = vpack.c.b16 %v396, %v395
  %v405 = vpack.c.b16 %v398, %v397
  %v406 = vpack.c.b16 %v400, %v399
  %413 = vst [vmem:[%s5] sm:$0xff] %v401
  %414 = vst [vmem:[%s5 + $0x8] sm:$0xff] %v402
  %415 = vst [vmem:[%s5 + $0x10] sm:$0xff] %v403
  %416 = vst [vmem:[%s5 + $0x18] sm:$0xff] %v404
  %417 = vst [vmem:[%s5 + $0x20] sm:$0xff] %v405
  %418 = vst [vmem:[%s5 + $0x28] sm:$0x11] %v406
  // Predicated region
  $region22: #{dino_extractor_forward.64} parent=0 // pred_check
    _
  $region23: #{dino_extractor_forward.64} parent=0 // pred_check_branch
    %420 = sbr.rel (0) target = $region25
  $region24: #{dino_extractor_forward.64} parent=0 // pred_region
    _
  $region25: #{dino_extractor_forward.64} parent=0 // pred_fallthru
    _
  // Predicated region
  $region26: #{dino_extractor_forward.64} parent=0 // pred_check
    _
  $region27: #{dino_extractor_forward.64} parent=0 // pred_check_branch
    %422 = sbr.rel (0) target = $region29
  $region28: #{dino_extractor_forward.64} parent=0 // pred_region
    _
  $region29: #{dino_extractor_forward.64} parent=0 // pred_fallthru
    _

// kernel: dino_extractor_forward.66
$region0: #{dino_extractor_forward.66}
  #allocation0 [shape = 'u32[]', space=smem, size = 0x4, offset = 0x4, fixed_abs, tag = 'smem constant byte address 0x4 - core index']
  #allocation1 [shape = 'u32[144,128]{1,0:T(1,128)}', space=vmem, size = 0x12000, scoped, tag = 'internal scratch']
  %s0 = inlined_call_operand.vmem [shape: bf16[42,1024], index: 0, kind: input, shape index: {}]
  %s1 = inlined_call_operand.vmem [shape: bf16[1024,256], index: 1, kind: input, shape index: {}]
  %s2 = inlined_call_operand.vmem [shape: f32[1,256], index: 2, kind: input, shape index: {}]
  %s3 = inlined_call_operand.vmem [shape: f32[1,256], index: 3, kind: input, shape index: {}]
  %s4 = inlined_call_operand.vmem [shape: bf16[42,256], index: 4, kind: input, shape index: {}]
  %s5 = inlined_call_operand.vmem [shape: bf16[42,256], index: 5, kind: output, shape index: {}]
  %s6 = sld [smem:[#allocation0]]
  $region30: #{dino_extractor_forward.66} parent=0
    _
  %s8 = ssub.s32 1, %s6
  %s9 = scalar_select 0, %s8, %s6
  // Predicated region
  $region2: #{dino_extractor_forward.66} parent=0 // pred_check
    _
  $region3: #{dino_extractor_forward.66} parent=0 // pred_check_branch
    %11 = sbr.rel (0) target = $region5
  $region4: #{dino_extractor_forward.66} parent=0 // pred_region
    _
  $region5: #{dino_extractor_forward.66} parent=0 // pred_fallthru
    _
  // Predicated region
  $region6: #{dino_extractor_forward.66} parent=0 // pred_check
    _
  $region7: #{dino_extractor_forward.66} parent=0 // pred_check_branch
    %13 = sbr.rel (0) target = $region9
  $region8: #{dino_extractor_forward.66} parent=0 // pred_region
    _
  $region9: #{dino_extractor_forward.66} parent=0 // pred_fallthru
    _
  // Predicated region
  $region10: #{dino_extractor_forward.66} parent=0 // pred_check
    _
  $region11: #{dino_extractor_forward.66} parent=0 // pred_check_branch
    %15 = sbr.rel (0) target = $region13
  $region12: #{dino_extractor_forward.66} parent=0 // pred_region
    _
  $region13: #{dino_extractor_forward.66} parent=0 // pred_fallthru
    _
  // Predicated region
  $region14: #{dino_extractor_forward.66} parent=0 // pred_check
    _
  $region15: #{dino_extractor_forward.66} parent=0 // pred_check_branch
    %17 = sbr.rel (0) target = $region17
  $region16: #{dino_extractor_forward.66} parent=0 // pred_region
    _
  $region17: #{dino_extractor_forward.66} parent=0 // pred_fallthru
    _
  // Predicated region
  $region18: #{dino_extractor_forward.66} parent=0 // pred_check
    _
  $region19: #{dino_extractor_forward.66} parent=0 // pred_check_branch
    %19 = sbr.rel (0) target = $region21
  $region20: #{dino_extractor_forward.66} parent=0 // pred_region
    _
  $region21: #{dino_extractor_forward.66} parent=0 // pred_fallthru
    _
  %v20 = vld [vmem:[%s0] sm:$0xff]
  %v21 = vld [vmem:[%s0 + $0x8] sm:$0xff]
  %v22 = vld [vmem:[%s0 + $0x10] sm:$0xff]
  %v23 = vld [vmem:[%s0 + $0x18] sm:$0xff]
  %v24 = vld [vmem:[%s0 + $0x20] sm:$0xff]
  %v25 = vld [vmem:[%s0 + $0x28] sm:$0xff]
  %v26 = vld [vmem:[%s0 + $0x30] sm:$0xff]
  %v27 = vld [vmem:[%s0 + $0x38] sm:$0xff]
  %v28 = vld [vmem:[%s0 + $0x40] sm:$0xff]
  %v29 = vld [vmem:[%s0 + $0x48] sm:$0xff]
  %v30 = vld [vmem:[%s0 + $0x50] sm:$0xff]
  %v31 = vld [vmem:[%s0 + $0x58] sm:$0xff]
  %v32 = vld [vmem:[%s0 + $0x60] sm:$0xff]
  %v33 = vld [vmem:[%s0 + $0x68] sm:$0xff]
  %v34 = vld [vmem:[%s0 + $0x70] sm:$0xff]
  %v35 = vld [vmem:[%s0 + $0x78] sm:$0xff]
  %v36 = vld [vmem:[%s0 + $0x80] sm:$0xff]
  %v37 = vld [vmem:[%s0 + $0x88] sm:$0xff]
  %v38 = vld [vmem:[%s0 + $0x90] sm:$0xff]
  %v39 = vld [vmem:[%s0 + $0x98] sm:$0xff]
  %v40 = vld [vmem:[%s0 + $0xa0] sm:$0x11]
  %v41 = vld [vmem:[%s0 + $0xa8] sm:$0x11]
  %v42 = vld [vmem:[%s0 + $0xb0] sm:$0x11]
  %v43 = vld [vmem:[%s0 + $0xb8] sm:$0x11]
  %v44 = vld [vmem:[%s1] sm:$0xff]
  %v45 = vld [vmem:[%s1 + $0x8] sm:$0xff]
  %v46 = vld [vmem:[%s1 + $0x10] sm:$0xff]
  %v47 = vld [vmem:[%s1 + $0x18] sm:$0xff]
  %v48 = vld [vmem:[%s1 + $0x20] sm:$0xff]
  %v49 = vld [vmem:[%s1 + $0x28] sm:$0xff]
  %v50 = vld [vmem:[%s1 + $0x30] sm:$0xff]
  %v51 = vld [vmem:[%s1 + $0x38] sm:$0xff]
  %v52 = vld [vmem:[%s1 + $0x40] sm:$0xff]
  %v53 = vld [vmem:[%s1 + $0x48] sm:$0xff]
  %v54 = vld [vmem:[%s1 + $0x50] sm:$0xff]
  %v55 = vld [vmem:[%s1 + $0x58] sm:$0xff]
  %v56 = vld [vmem:[%s1 + $0x60] sm:$0xff]
  %v57 = vld [vmem:[%s1 + $0x68] sm:$0xff]
  %v58 = vld [vmem:[%s1 + $0x70] sm:$0xff]
  %v59 = vld [vmem:[%s1 + $0x78] sm:$0xff]
  %v60 = vld [vmem:[%s1 + $0x80] sm:$0xff]
  %v61 = vld [vmem:[%s1 + $0x88] sm:$0xff]
  %v62 = vld [vmem:[%s1 + $0x90] sm:$0xff]
  %v63 = vld [vmem:[%s1 + $0x98] sm:$0xff]
  %v64 = vld [vmem:[%s1 + $0xa0] sm:$0xff]
  %v65 = vld [vmem:[%s1 + $0xa8] sm:$0xff]
  %v66 = vld [vmem:[%s1 + $0xb0] sm:$0xff]
  %v67 = vld [vmem:[%s1 + $0xb8] sm:$0xff]
  %v68 = vld [vmem:[%s1 + $0xc0] sm:$0xff]
  %v69 = vld [vmem:[%s1 + $0xc8] sm:$0xff]
  %v70 = vld [vmem:[%s1 + $0xd0] sm:$0xff]
  %v71 = vld [vmem:[%s1 + $0xd8] sm:$0xff]
  %v72 = vld [vmem:[%s1 + $0xe0] sm:$0xff]
  %v73 = vld [vmem:[%s1 + $0xe8] sm:$0xff]
  %v74 = vld [vmem:[%s1 + $0xf0] sm:$0xff]
  %v75 = vld [vmem:[%s1 + $0xf8] sm:$0xff]
  %v76 = vld [vmem:[%s1 + $0x100] sm:$0xff]
  %v77 = vld [vmem:[%s1 + $0x108] sm:$0xff]
  %v78 = vld [vmem:[%s1 + $0x110] sm:$0xff]
  %v79 = vld [vmem:[%s1 + $0x118] sm:$0xff]
  %v80 = vld [vmem:[%s1 + $0x120] sm:$0xff]
  %v81 = vld [vmem:[%s1 + $0x128] sm:$0xff]
  %v82 = vld [vmem:[%s1 + $0x130] sm:$0xff]
  %v83 = vld [vmem:[%s1 + $0x138] sm:$0xff]
  %v84 = vld [vmem:[%s1 + $0x140] sm:$0xff]
  %v85 = vld [vmem:[%s1 + $0x148] sm:$0xff]
  %v86 = vld [vmem:[%s1 + $0x150] sm:$0xff]
  %v87 = vld [vmem:[%s1 + $0x158] sm:$0xff]
  %v88 = vld [vmem:[%s1 + $0x160] sm:$0xff]
  %v89 = vld [vmem:[%s1 + $0x168] sm:$0xff]
  %v90 = vld [vmem:[%s1 + $0x170] sm:$0xff]
  %v91 = vld [vmem:[%s1 + $0x178] sm:$0xff]
  %v92 = vld [vmem:[%s1 + $0x180] sm:$0xff]
  %v93 = vld [vmem:[%s1 + $0x188] sm:$0xff]
  %v94 = vld [vmem:[%s1 + $0x190] sm:$0xff]
  %v95 = vld [vmem:[%s1 + $0x198] sm:$0xff]
  %v96 = vld [vmem:[%s1 + $0x1a0] sm:$0xff]
  %v97 = vld [vmem:[%s1 + $0x1a8] sm:$0xff]
  %v98 = vld [vmem:[%s1 + $0x1b0] sm:$0xff]
  %v99 = vld [vmem:[%s1 + $0x1b8] sm:$0xff]
  %v100 = vld [vmem:[%s1 + $0x1c0] sm:$0xff]
  %v101 = vld [vmem:[%s1 + $0x1c8] sm:$0xff]
  %v102 = vld [vmem:[%s1 + $0x1d0] sm:$0xff]
  %v103 = vld [vmem:[%s1 + $0x1d8] sm:$0xff]
  %v104 = vld [vmem:[%s1 + $0x1e0] sm:$0xff]
  %v105 = vld [vmem:[%s1 + $0x1e8] sm:$0xff]
  %v106 = vld [vmem:[%s1 + $0x1f0] sm:$0xff]
  %v107 = vld [vmem:[%s1 + $0x1f8] sm:$0xff]
  %v108 = vld [vmem:[%s1 + $0x200] sm:$0xff]
  %v109 = vld [vmem:[%s1 + $0x208] sm:$0xff]
  %v110 = vld [vmem:[%s1 + $0x210] sm:$0xff]
  %v111 = vld [vmem:[%s1 + $0x218] sm:$0xff]
  %v112 = vld [vmem:[%s1 + $0x220] sm:$0xff]
  %v113 = vld [vmem:[%s1 + $0x228] sm:$0xff]
  %v114 = vld [vmem:[%s1 + $0x230] sm:$0xff]
  %v115 = vld [vmem:[%s1 + $0x238] sm:$0xff]
  %v116 = vld [vmem:[%s1 + $0x240] sm:$0xff]
  %v117 = vld [vmem:[%s1 + $0x248] sm:$0xff]
  %v118 = vld [vmem:[%s1 + $0x250] sm:$0xff]
  %v119 = vld [vmem:[%s1 + $0x258] sm:$0xff]
  %v120 = vld [vmem:[%s1 + $0x260] sm:$0xff]
  %v121 = vld [vmem:[%s1 + $0x268] sm:$0xff]
  %v122 = vld [vmem:[%s1 + $0x270] sm:$0xff]
  %v123 = vld [vmem:[%s1 + $0x278] sm:$0xff]
  %v124 = vld [vmem:[%s1 + $0x280] sm:$0xff]
  %v125 = vld [vmem:[%s1 + $0x288] sm:$0xff]
  %v126 = vld [vmem:[%s1 + $0x290] sm:$0xff]
  %v127 = vld [vmem:[%s1 + $0x298] sm:$0xff]
  %v128 = vld [vmem:[%s1 + $0x2a0] sm:$0xff]
  %v129 = vld [vmem:[%s1 + $0x2a8] sm:$0xff]
  %v130 = vld [vmem:[%s1 + $0x2b0] sm:$0xff]
  %v131 = vld [vmem:[%s1 + $0x2b8] sm:$0xff]
  %v132 = vld [vmem:[%s1 + $0x2c0] sm:$0xff]
  %v133 = vld [vmem:[%s1 + $0x2c8] sm:$0xff]
  %v134 = vld [vmem:[%s1 + $0x2d0] sm:$0xff]
  %v135 = vld [vmem:[%s1 + $0x2d8] sm:$0xff]
  %v136 = vld [vmem:[%s1 + $0x2e0] sm:$0xff]
  %v137 = vld [vmem:[%s1 + $0x2e8] sm:$0xff]
  %v138 = vld [vmem:[%s1 + $0x2f0] sm:$0xff]
  %v139 = vld [vmem:[%s1 + $0x2f8] sm:$0xff]
  %v140 = vld [vmem:[%s1 + $0x300] sm:$0xff]
  %v141 = vld [vmem:[%s1 + $0x308] sm:$0xff]
  %v142 = vld [vmem:[%s1 + $0x310] sm:$0xff]
  %v143 = vld [vmem:[%s1 + $0x318] sm:$0xff]
  %v144 = vld [vmem:[%s1 + $0x320] sm:$0xff]
  %v145 = vld [vmem:[%s1 + $0x328] sm:$0xff]
  %v146 = vld [vmem:[%s1 + $0x330] sm:$0xff]
  %v147 = vld [vmem:[%s1 + $0x338] sm:$0xff]
  %v148 = vld [vmem:[%s1 + $0x340] sm:$0xff]
  %v149 = vld [vmem:[%s1 + $0x348] sm:$0xff]
  %v150 = vld [vmem:[%s1 + $0x350] sm:$0xff]
  %v151 = vld [vmem:[%s1 + $0x358] sm:$0xff]
  %v152 = vld [vmem:[%s1 + $0x360] sm:$0xff]
  %v153 = vld [vmem:[%s1 + $0x368] sm:$0xff]
  %v154 = vld [vmem:[%s1 + $0x370] sm:$0xff]
  %v155 = vld [vmem:[%s1 + $0x378] sm:$0xff]
  %v156 = vld [vmem:[%s1 + $0x380] sm:$0xff]
  %v157 = vld [vmem:[%s1 + $0x388] sm:$0xff]
  %v158 = vld [vmem:[%s1 + $0x390] sm:$0xff]
  %v159 = vld [vmem:[%s1 + $0x398] sm:$0xff]
  %v160 = vld [vmem:[%s1 + $0x3a0] sm:$0xff]
  %v161 = vld [vmem:[%s1 + $0x3a8] sm:$0xff]
  %v162 = vld [vmem:[%s1 + $0x3b0] sm:$0xff]
  %v163 = vld [vmem:[%s1 + $0x3b8] sm:$0xff]
  %v164 = vld [vmem:[%s1 + $0x3c0] sm:$0xff]
  %v165 = vld [vmem:[%s1 + $0x3c8] sm:$0xff]
  %v166 = vld [vmem:[%s1 + $0x3d0] sm:$0xff]
  %v167 = vld [vmem:[%s1 + $0x3d8] sm:$0xff]
  %v168 = vld [vmem:[%s1 + $0x3e0] sm:$0xff]
  %v169 = vld [vmem:[%s1 + $0x3e8] sm:$0xff]
  %v170 = vld [vmem:[%s1 + $0x3f0] sm:$0xff]
  %v171 = vld [vmem:[%s1 + $0x3f8] sm:$0xff]
  %v172 = vld [vmem:[%s2] sm:$0x3]
  %v174 = vlaneseq
  %v175 = vshrl.u32 %v174, 7
  %v176 = vsub.s32 0, %v175
  %v177 = vrot.slane %v172, %v176
  %v178 = vlaneseq
  %v179 = vshrl.u32 %v178, 7
  %v180 = vsub.s32 1, %v179
  %v181 = vrot.slane %v172, %v180
  %v208 = vunpack.c.l.b16 %v20
  %v209 = vunpack.c.h.b16 %v20
  %v210 = vunpack.c.l.b16 %v21
  %v211 = vunpack.c.h.b16 %v21
  %v212 = vunpack.c.l.b16 %v22
  %v213 = vunpack.c.h.b16 %v22
  %v214 = vunpack.c.l.b16 %v23
  %v215 = vunpack.c.h.b16 %v23
  %v216 = vunpack.c.l.b16 %v24
  %v217 = vunpack.c.h.b16 %v24
  %v218 = vunpack.c.l.b16 %v25
  %v219 = vunpack.c.h.b16 %v25
  %v220 = vunpack.c.l.b16 %v26
  %v221 = vunpack.c.h.b16 %v26
  %v222 = vunpack.c.l.b16 %v27
  %v223 = vunpack.c.h.b16 %v27
  %v224 = vunpack.c.l.b16 %v28
  %v225 = vunpack.c.h.b16 %v28
  %v226 = vunpack.c.l.b16 %v29
  %v227 = vunpack.c.h.b16 %v29
  %v228 = vunpack.c.l.b16 %v30
  %v229 = vunpack.c.h.b16 %v30
  %v230 = vunpack.c.l.b16 %v31
  %v231 = vunpack.c.h.b16 %v31
  %v232 = vunpack.c.l.b16 %v32
  %v233 = vunpack.c.h.b16 %v32
  %v234 = vunpack.c.l.b16 %v33
  %v235 = vunpack.c.h.b16 %v33
  %v236 = vunpack.c.l.b16 %v34
  %v237 = vunpack.c.h.b16 %v34
  %v238 = vunpack.c.l.b16 %v35
  %v239 = vunpack.c.h.b16 %v35
  %v240 = vunpack.c.l.b16 %v36
  %v241 = vunpack.c.h.b16 %v36
  %v242 = vunpack.c.l.b16 %v37
  %v243 = vunpack.c.h.b16 %v37
  %v244 = vunpack.c.l.b16 %v38
  %v245 = vunpack.c.h.b16 %v38
  %v246 = vunpack.c.l.b16 %v39
  %v247 = vunpack.c.h.b16 %v39
  %v248 = vunpack.c.l.b16 %v40
  %v249 = vunpack.c.h.b16 %v40
  %v250 = vunpack.c.l.b16 %v41
  %v251 = vunpack.c.h.b16 %v41
  %v252 = vunpack.c.l.b16 %v42
  %v253 = vunpack.c.h.b16 %v42
  %v254 = vunpack.c.l.b16 %v43
  %v255 = vunpack.c.h.b16 %v43
  %v256 = vpack.c.b16 %v216, %v208
  %v257 = vpack.c.b16 %v217, %v209
  %v258 = vpack.c.b16 %v218, %v210
  %v259 = vpack.c.b16 %v219, %v211
  %v260 = vpack.c.b16 %v220, %v212
  %v261 = vpack.c.b16 %v221, %v213
  %v262 = vpack.c.b16 %v222, %v214
  %v263 = vpack.c.b16 %v223, %v215
  %v264 = vpack.c.b16 %v232, %v224
  %v265 = vpack.c.b16 %v233, %v225
  %v266 = vpack.c.b16 %v234, %v226
  %v267 = vpack.c.b16 %v235, %v227
  %v268 = vpack.c.b16 %v236, %v228
  %v269 = vpack.c.b16 %v237, %v229
  %v270 = vpack.c.b16 %v238, %v230
  %v271 = vpack.c.b16 %v239, %v231
  %v272 = vpack.c.b16 %v248, %v240
  %v273 = vpack.c.b16 %v249, %v241
  %v274 = vpack.c.b16 %v250, %v242
  %v275 = vpack.c.b16 %v251, %v243
  %v276 = vpack.c.b16 %v252, %v244
  %v277 = vpack.c.b16 %v253, %v245
  %v278 = vpack.c.b16 %v254, %v246
  %v279 = vpack.c.b16 %v255, %v247
  %v432 = vunpack.c.l.b16 %v44
  %v433 = vunpack.c.h.b16 %v44
  %v434 = vunpack.c.l.b16 %v45
  %v435 = vunpack.c.h.b16 %v45
  %v436 = vunpack.c.l.b16 %v46
  %v437 = vunpack.c.h.b16 %v46
  %v438 = vunpack.c.l.b16 %v47
  %v439 = vunpack.c.h.b16 %v47
  %v440 = vunpack.c.l.b16 %v48
  %v441 = vunpack.c.h.b16 %v48
  %v442 = vunpack.c.l.b16 %v49
  %v443 = vunpack.c.h.b16 %v49
  %v444 = vunpack.c.l.b16 %v50
  %v445 = vunpack.c.h.b16 %v50
  %v446 = vunpack.c.l.b16 %v51
  %v447 = vunpack.c.h.b16 %v51
  %v448 = vunpack.c.l.b16 %v52
  %v449 = vunpack.c.h.b16 %v52
  %v450 = vunpack.c.l.b16 %v53
  %v451 = vunpack.c.h.b16 %v53
  %v452 = vunpack.c.l.b16 %v54
  %v453 = vunpack.c.h.b16 %v54
  %v454 = vunpack.c.l.b16 %v55
  %v455 = vunpack.c.h.b16 %v55
  %v456 = vunpack.c.l.b16 %v56
  %v457 = vunpack.c.h.b16 %v56
  %v458 = vunpack.c.l.b16 %v57
  %v459 = vunpack.c.h.b16 %v57
  %v460 = vunpack.c.l.b16 %v58
  %v461 = vunpack.c.h.b16 %v58
  %v462 = vunpack.c.l.b16 %v59
  %v463 = vunpack.c.h.b16 %v59
  %v464 = vunpack.c.l.b16 %v60
  %v465 = vunpack.c.h.b16 %v60
  %v466 = vunpack.c.l.b16 %v61
  %v467 = vunpack.c.h.b16 %v61
  %v468 = vunpack.c.l.b16 %v62
  %v469 = vunpack.c.h.b16 %v62
  %v470 = vunpack.c.l.b16 %v63
  %v471 = vunpack.c.h.b16 %v63
  %v472 = vunpack.c.l.b16 %v64
  %v473 = vunpack.c.h.b16 %v64
  %v474 = vunpack.c.l.b16 %v65
  %v475 = vunpack.c.h.b16 %v65
  %v476 = vunpack.c.l.b16 %v66
  %v477 = vunpack.c.h.b16 %v66
  %v478 = vunpack.c.l.b16 %v67
  %v479 = vunpack.c.h.b16 %v67
  %v480 = vunpack.c.l.b16 %v68
  %v481 = vunpack.c.h.b16 %v68
  %v482 = vunpack.c.l.b16 %v69
  %v483 = vunpack.c.h.b16 %v69
  %v484 = vunpack.c.l.b16 %v70
  %v485 = vunpack.c.h.b16 %v70
  %v486 = vunpack.c.l.b16 %v71
  %v487 = vunpack.c.h.b16 %v71
  %v488 = vunpack.c.l.b16 %v72
  %v489 = vunpack.c.h.b16 %v72
  %v490 = vunpack.c.l.b16 %v73
  %v491 = vunpack.c.h.b16 %v73
  %v492 = vunpack.c.l.b16 %v74
  %v493 = vunpack.c.h.b16 %v74
  %v494 = vunpack.c.l.b16 %v75
  %v495 = vunpack.c.h.b16 %v75
  %v496 = vunpack.c.l.b16 %v76
  %v497 = vunpack.c.h.b16 %v76
  %v498 = vunpack.c.l.b16 %v77
  %v499 = vunpack.c.h.b16 %v77
  %v500 = vunpack.c.l.b16 %v78
  %v501 = vunpack.c.h.b16 %v78
  %v502 = vunpack.c.l.b16 %v79
  %v503 = vunpack.c.h.b16 %v79
  %v504 = vunpack.c.l.b16 %v80
  %v505 = vunpack.c.h.b16 %v80
  %v506 = vunpack.c.l.b16 %v81
  %v507 = vunpack.c.h.b16 %v81
  %v508 = vunpack.c.l.b16 %v82
  %v509 = vunpack.c.h.b16 %v82
  %v510 = vunpack.c.l.b16 %v83
  %v511 = vunpack.c.h.b16 %v83
  %v512 = vunpack.c.l.b16 %v84
  %v513 = vunpack.c.h.b16 %v84
  %v514 = vunpack.c.l.b16 %v85
  %v515 = vunpack.c.h.b16 %v85
  %v516 = vunpack.c.l.b16 %v86
  %v517 = vunpack.c.h.b16 %v86
  %v518 = vunpack.c.l.b16 %v87
  %v519 = vunpack.c.h.b16 %v87
  %v520 = vunpack.c.l.b16 %v88
  %v521 = vunpack.c.h.b16 %v88
  %v522 = vunpack.c.l.b16 %v89
  %v523 = vunpack.c.h.b16 %v89
  %v524 = vunpack.c.l.b16 %v90
  %v525 = vunpack.c.h.b16 %v90
  %v526 = vunpack.c.l.b16 %v91
  %v527 = vunpack.c.h.b16 %v91
  %v528 = vunpack.c.l.b16 %v92
  %v529 = vunpack.c.h.b16 %v92
  %v530 = vunpack.c.l.b16 %v93
  %v531 = vunpack.c.h.b16 %v93
  %v532 = vunpack.c.l.b16 %v94
  %v533 = vunpack.c.h.b16 %v94
  %v534 = vunpack.c.l.b16 %v95
  %v535 = vunpack.c.h.b16 %v95
  %v536 = vunpack.c.l.b16 %v96
  %v537 = vunpack.c.h.b16 %v96
  %v538 = vunpack.c.l.b16 %v97
  %v539 = vunpack.c.h.b16 %v97
  %v540 = vunpack.c.l.b16 %v98
  %v541 = vunpack.c.h.b16 %v98
  %v542 = vunpack.c.l.b16 %v99
  %v543 = vunpack.c.h.b16 %v99
  %v544 = vunpack.c.l.b16 %v100
  %v545 = vunpack.c.h.b16 %v100
  %v546 = vunpack.c.l.b16 %v101
  %v547 = vunpack.c.h.b16 %v101
  %v548 = vunpack.c.l.b16 %v102
  %v549 = vunpack.c.h.b16 %v102
  %v550 = vunpack.c.l.b16 %v103
  %v551 = vunpack.c.h.b16 %v103
  %v552 = vunpack.c.l.b16 %v104
  %v553 = vunpack.c.h.b16 %v104
  %v554 = vunpack.c.l.b16 %v105
  %v555 = vunpack.c.h.b16 %v105
  %v556 = vunpack.c.l.b16 %v106
  %v557 = vunpack.c.h.b16 %v106
  %v558 = vunpack.c.l.b16 %v107
  %v559 = vunpack.c.h.b16 %v107
  %v560 = vunpack.c.l.b16 %v108
  %v561 = vunpack.c.h.b16 %v108
  %v562 = vunpack.c.l.b16 %v109
  %v563 = vunpack.c.h.b16 %v109
  %v564 = vunpack.c.l.b16 %v110
  %v565 = vunpack.c.h.b16 %v110
  %v566 = vunpack.c.l.b16 %v111
  %v567 = vunpack.c.h.b16 %v111
  %v568 = vunpack.c.l.b16 %v112
  %v569 = vunpack.c.h.b16 %v112
  %v570 = vunpack.c.l.b16 %v113
  %v571 = vunpack.c.h.b16 %v113
  %v572 = vunpack.c.l.b16 %v114
  %v573 = vunpack.c.h.b16 %v114
  %v574 = vunpack.c.l.b16 %v115
  %v575 = vunpack.c.h.b16 %v115
  %v576 = vunpack.c.l.b16 %v116
  %v577 = vunpack.c.h.b16 %v116
  %v578 = vunpack.c.l.b16 %v117
  %v579 = vunpack.c.h.b16 %v117
  %v580 = vunpack.c.l.b16 %v118
  %v581 = vunpack.c.h.b16 %v118
  %v582 = vunpack.c.l.b16 %v119
  %v583 = vunpack.c.h.b16 %v119
  %v584 = vunpack.c.l.b16 %v120
  %v585 = vunpack.c.h.b16 %v120
  %v586 = vunpack.c.l.b16 %v121
  %v587 = vunpack.c.h.b16 %v121
  %v588 = vunpack.c.l.b16 %v122
  %v589 = vunpack.c.h.b16 %v122
  %v590 = vunpack.c.l.b16 %v123
  %v591 = vunpack.c.h.b16 %v123
  %v592 = vunpack.c.l.b16 %v124
  %v593 = vunpack.c.h.b16 %v124
  %v594 = vunpack.c.l.b16 %v125
  %v595 = vunpack.c.h.b16 %v125
  %v596 = vunpack.c.l.b16 %v126
  %v597 = vunpack.c.h.b16 %v126
  %v598 = vunpack.c.l.b16 %v127
  %v599 = vunpack.c.h.b16 %v127
  %v600 = vunpack.c.l.b16 %v128
  %v601 = vunpack.c.h.b16 %v128
  %v602 = vunpack.c.l.b16 %v129
  %v603 = vunpack.c.h.b16 %v129
  %v604 = vunpack.c.l.b16 %v130
  %v605 = vunpack.c.h.b16 %v130
  %v606 = vunpack.c.l.b16 %v131
  %v607 = vunpack.c.h.b16 %v131
  %v608 = vunpack.c.l.b16 %v132
  %v609 = vunpack.c.h.b16 %v132
  %v610 = vunpack.c.l.b16 %v133
  %v611 = vunpack.c.h.b16 %v133
  %v612 = vunpack.c.l.b16 %v134
  %v613 = vunpack.c.h.b16 %v134
  %v614 = vunpack.c.l.b16 %v135
  %v615 = vunpack.c.h.b16 %v135
  %v616 = vunpack.c.l.b16 %v136
  %v617 = vunpack.c.h.b16 %v136
  %v618 = vunpack.c.l.b16 %v137
  %v619 = vunpack.c.h.b16 %v137
  %v620 = vunpack.c.l.b16 %v138
  %v621 = vunpack.c.h.b16 %v138
  %v622 = vunpack.c.l.b16 %v139
  %v623 = vunpack.c.h.b16 %v139
  %v624 = vunpack.c.l.b16 %v140
  %v625 = vunpack.c.h.b16 %v140
  %v626 = vunpack.c.l.b16 %v141
  %v627 = vunpack.c.h.b16 %v141
  %v628 = vunpack.c.l.b16 %v142
  %v629 = vunpack.c.h.b16 %v142
  %v630 = vunpack.c.l.b16 %v143
  %v631 = vunpack.c.h.b16 %v143
  %v632 = vunpack.c.l.b16 %v144
  %v633 = vunpack.c.h.b16 %v144
  %v634 = vunpack.c.l.b16 %v145
  %v635 = vunpack.c.h.b16 %v145
  %v636 = vunpack.c.l.b16 %v146
  %v637 = vunpack.c.h.b16 %v146
  %v638 = vunpack.c.l.b16 %v147
  %v639 = vunpack.c.h.b16 %v147
  %v640 = vunpack.c.l.b16 %v148
  %v641 = vunpack.c.h.b16 %v148
  %v642 = vunpack.c.l.b16 %v149
  %v643 = vunpack.c.h.b16 %v149
  %v644 = vunpack.c.l.b16 %v150
  %v645 = vunpack.c.h.b16 %v150
  %v646 = vunpack.c.l.b16 %v151
  %v647 = vunpack.c.h.b16 %v151
  %v648 = vunpack.c.l.b16 %v152
  %v649 = vunpack.c.h.b16 %v152
  %v650 = vunpack.c.l.b16 %v153
  %v651 = vunpack.c.h.b16 %v153
  %v652 = vunpack.c.l.b16 %v154
  %v653 = vunpack.c.h.b16 %v154
  %v654 = vunpack.c.l.b16 %v155
  %v655 = vunpack.c.h.b16 %v155
  %v656 = vunpack.c.l.b16 %v156
  %v657 = vunpack.c.h.b16 %v156
  %v658 = vunpack.c.l.b16 %v157
  %v659 = vunpack.c.h.b16 %v157
  %v660 = vunpack.c.l.b16 %v158
  %v661 = vunpack.c.h.b16 %v158
  %v662 = vunpack.c.l.b16 %v159
  %v663 = vunpack.c.h.b16 %v159
  %v664 = vunpack.c.l.b16 %v160
  %v665 = vunpack.c.h.b16 %v160
  %v666 = vunpack.c.l.b16 %v161
  %v667 = vunpack.c.h.b16 %v161
  %v668 = vunpack.c.l.b16 %v162
  %v669 = vunpack.c.h.b16 %v162
  %v670 = vunpack.c.l.b16 %v163
  %v671 = vunpack.c.h.b16 %v163
  %v672 = vunpack.c.l.b16 %v164
  %v673 = vunpack.c.h.b16 %v164
  %v674 = vunpack.c.l.b16 %v165
  %v675 = vunpack.c.h.b16 %v165
  %v676 = vunpack.c.l.b16 %v166
  %v677 = vunpack.c.h.b16 %v166
  %v678 = vunpack.c.l.b16 %v167
  %v679 = vunpack.c.h.b16 %v167
  %v680 = vunpack.c.l.b16 %v168
  %v681 = vunpack.c.h.b16 %v168
  %v682 = vunpack.c.l.b16 %v169
  %v683 = vunpack.c.h.b16 %v169
  %v684 = vunpack.c.l.b16 %v170
  %v685 = vunpack.c.h.b16 %v170
  %v686 = vunpack.c.l.b16 %v171
  %v687 = vunpack.c.h.b16 %v171
  %v688 = vpack.c.b16 %v434, %v432
  %v689 = vpack.c.b16 %v435, %v433
  %v690 = vpack.c.b16 %v438, %v436
  %v691 = vpack.c.b16 %v439, %v437
  %v692 = vpack.c.b16 %v442, %v440
  %v693 = vpack.c.b16 %v443, %v441
  %v694 = vpack.c.b16 %v446, %v444
  %v695 = vpack.c.b16 %v447, %v445
  %v696 = vpack.c.b16 %v450, %v448
  %v697 = vpack.c.b16 %v451, %v449
  %v698 = vpack.c.b16 %v454, %v452
  %v699 = vpack.c.b16 %v455, %v453
  %v700 = vpack.c.b16 %v458, %v456
  %v701 = vpack.c.b16 %v459, %v457
  %v702 = vpack.c.b16 %v462, %v460
  %v703 = vpack.c.b16 %v463, %v461
  %v704 = vpack.c.b16 %v466, %v464
  %v705 = vpack.c.b16 %v467, %v465
  %v706 = vpack.c.b16 %v470, %v468
  %v707 = vpack.c.b16 %v471, %v469
  %v708 = vpack.c.b16 %v474, %v472
  %v709 = vpack.c.b16 %v475, %v473
  %v710 = vpack.c.b16 %v478, %v476
  %v711 = vpack.c.b16 %v479, %v477
  %v712 = vpack.c.b16 %v482, %v480
  %v713 = vpack.c.b16 %v483, %v481
  %v714 = vpack.c.b16 %v486, %v484
  %v715 = vpack.c.b16 %v487, %v485
  %v716 = vpack.c.b16 %v490, %v488
  %v717 = vpack.c.b16 %v491, %v489
  %v718 = vpack.c.b16 %v494, %v492
  %v719 = vpack.c.b16 %v495, %v493
  %v720 = vpack.c.b16 %v498, %v496
  %v721 = vpack.c.b16 %v499, %v497
  %v722 = vpack.c.b16 %v502, %v500
  %v723 = vpack.c.b16 %v503, %v501
  %v724 = vpack.c.b16 %v506, %v504
  %v725 = vpack.c.b16 %v507, %v505
  %v726 = vpack.c.b16 %v510, %v508
  %v727 = vpack.c.b16 %v511, %v509
  %v728 = vpack.c.b16 %v514, %v512
  %v729 = vpack.c.b16 %v515, %v513
  %v730 = vpack.c.b16 %v518, %v516
  %v731 = vpack.c.b16 %v519, %v517
  %v732 = vpack.c.b16 %v522, %v520
  %v733 = vpack.c.b16 %v523, %v521
  %v734 = vpack.c.b16 %v526, %v524
  %v735 = vpack.c.b16 %v527, %v525
  %v736 = vpack.c.b16 %v530, %v528
  %v737 = vpack.c.b16 %v531, %v529
  %v738 = vpack.c.b16 %v534, %v532
  %v739 = vpack.c.b16 %v535, %v533
  %v740 = vpack.c.b16 %v538, %v536
  %v741 = vpack.c.b16 %v539, %v537
  %v742 = vpack.c.b16 %v542, %v540
  %v743 = vpack.c.b16 %v543, %v541
  %v744 = vpack.c.b16 %v546, %v544
  %v745 = vpack.c.b16 %v547, %v545
  %v746 = vpack.c.b16 %v550, %v548
  %v747 = vpack.c.b16 %v551, %v549
  %v748 = vpack.c.b16 %v554, %v552
  %v749 = vpack.c.b16 %v555, %v553
  %v750 = vpack.c.b16 %v558, %v556
  %v751 = vpack.c.b16 %v559, %v557
  %v752 = vpack.c.b16 %v562, %v560
  %v753 = vpack.c.b16 %v563, %v561
  %v754 = vpack.c.b16 %v566, %v564
  %v755 = vpack.c.b16 %v567, %v565
  %v756 = vpack.c.b16 %v570, %v568
  %v757 = vpack.c.b16 %v571, %v569
  %v758 = vpack.c.b16 %v574, %v572
  %v759 = vpack.c.b16 %v575, %v573
  %v760 = vpack.c.b16 %v578, %v576
  %v761 = vpack.c.b16 %v579, %v577
  %v762 = vpack.c.b16 %v582, %v580
  %v763 = vpack.c.b16 %v583, %v581
  %v764 = vpack.c.b16 %v586, %v584
  %v765 = vpack.c.b16 %v587, %v585
  %v766 = vpack.c.b16 %v590, %v588
  %v767 = vpack.c.b16 %v591, %v589
  %v768 = vpack.c.b16 %v594, %v592
  %v769 = vpack.c.b16 %v595, %v593
  %v770 = vpack.c.b16 %v598, %v596
  %v771 = vpack.c.b16 %v599, %v597
  %v772 = vpack.c.b16 %v602, %v600
  %v773 = vpack.c.b16 %v603, %v601
  %v774 = vpack.c.b16 %v606, %v604
  %v775 = vpack.c.b16 %v607, %v605
  %v776 = vpack.c.b16 %v610, %v608
  %v777 = vpack.c.b16 %v611, %v609
  %v778 = vpack.c.b16 %v614, %v612
  %v779 = vpack.c.b16 %v615, %v613
  %v780 = vpack.c.b16 %v618, %v616
  %v781 = vpack.c.b16 %v619, %v617
  %v782 = vpack.c.b16 %v622, %v620
  %v783 = vpack.c.b16 %v623, %v621
  %v784 = vpack.c.b16 %v626, %v624
  %v785 = vpack.c.b16 %v627, %v625
  %v786 = vpack.c.b16 %v630, %v628
  %v787 = vpack.c.b16 %v631, %v629
  %v788 = vpack.c.b16 %v634, %v632
  %v789 = vpack.c.b16 %v635, %v633
  %v790 = vpack.c.b16 %v638, %v636
  %v791 = vpack.c.b16 %v639, %v637
  %v792 = vpack.c.b16 %v642, %v640
  %v793 = vpack.c.b16 %v643, %v641
  %v794 = vpack.c.b16 %v646, %v644
  %v795 = vpack.c.b16 %v647, %v645
  %v796 = vpack.c.b16 %v650, %v648
  %v797 = vpack.c.b16 %v651, %v649
  %v798 = vpack.c.b16 %v654, %v652
  %v799 = vpack.c.b16 %v655, %v653
  %v800 = vpack.c.b16 %v658, %v656
  %v801 = vpack.c.b16 %v659, %v657
  %v802 = vpack.c.b16 %v662, %v660
  %v803 = vpack.c.b16 %v663, %v661
  %v804 = vpack.c.b16 %v666, %v664
  %v805 = vpack.c.b16 %v667, %v665
  %v806 = vpack.c.b16 %v670, %v668
  %v807 = vpack.c.b16 %v671, %v669
  %v808 = vpack.c.b16 %v674, %v672
  %v809 = vpack.c.b16 %v675, %v673
  %v810 = vpack.c.b16 %v678, %v676
  %v811 = vpack.c.b16 %v679, %v677
  %v812 = vpack.c.b16 %v682, %v680
  %v813 = vpack.c.b16 %v683, %v681
  %v814 = vpack.c.b16 %v686, %v684
  %v815 = vpack.c.b16 %v687, %v685
  %944 = vmatprep.subr.bf16.mxu0 %v689
  %945 = vmatpush1.bf16.msra.mxu0 %v688
  %946 = vmatprep.subr.bf16.mxu0 %v691
  %947 = vmatpush1.bf16.msra.mxu0 %v690
  %948 = vmatprep.subr.bf16.mxu0 %v693
  %949 = vmatpush1.bf16.msra.mxu0 %v692
  %950 = vmatprep.subr.bf16.mxu0 %v695
  %951 = vmatpush1.bf16.msra.mxu0 %v694
  %952 = vmatprep.subr.bf16.mxu0 %v697
  %953 = vmatpush1.bf16.msra.mxu0 %v696
  %954 = vmatprep.subr.bf16.mxu0 %v699
  %955 = vmatpush1.bf16.msra.mxu0 %v698
  %956 = vmatprep.subr.bf16.mxu0 %v701
  %957 = vmatpush1.bf16.msra.mxu0 %v700
  %958 = vmatprep.subr.bf16.mxu0 %v703
  %959 = vmatpush1.bf16.msra.mxu0 %v702
  %960 = vmatprep.subr.bf16.mxu0 %v705
  %961 = vmatpush1.bf16.msra.mxu0 %v704
  %962 = vmatprep.subr.bf16.mxu0 %v707
  %963 = vmatpush1.bf16.msra.mxu0 %v706
  %964 = vmatprep.subr.bf16.mxu0 %v709
  %965 = vmatpush1.bf16.msra.mxu0 %v708
  %966 = vmatprep.subr.bf16.mxu0 %v711
  %967 = vmatpush1.bf16.msra.mxu0 %v710
  %968 = vmatprep.subr.bf16.mxu0 %v713
  %969 = vmatpush1.bf16.msra.mxu0 %v712
  %970 = vmatprep.subr.bf16.mxu0 %v715
  %971 = vmatpush1.bf16.msra.mxu0 %v714
  %972 = vmatprep.subr.bf16.mxu0 %v717
  %973 = vmatpush1.bf16.msra.mxu0 %v716
  %974 = vmatprep.subr.bf16.mxu0 %v719
  %975 = vmatpush1.bf16.msra.mxu0 %v718
  %976 = vmatprep.mubr.bf16.mxu0 %v257
  %977 = vmatmul.mubr.bf16.gmra.mrb[0].mxu0 %v256
  %v978 = vpop.f32.mrb[0].mxu0
  %v979 = vadd.f32 %v177, %v978
  %v980 = vpop.f32.mrb[0].mxu0
  %v981 = vadd.f32 %v181, %v980
  %v982 = vpop.f32.mrb[0].mxu0
  %v983 = vadd.f32 %v177, %v982
  %v984 = vpop.f32.mrb[0].mxu0
  %v985 = vadd.f32 %v181, %v984
  %986 = vmatprep.mubr.bf16.mxu0 %v265
  %987 = vmatmul.mubr.bf16.gmra.mrb[0].mxu0 %v264
  %v988 = vpop.f32.mrb[0].mxu0
  %v989 = vadd.f32 %v177, %v988
  %v990 = vpop.f32.mrb[0].mxu0
  %v991 = vadd.f32 %v181, %v990
  %v992 = vpop.f32.mrb[0].mxu0
  %v993 = vadd.f32 %v177, %v992
  %v994 = vpop.f32.mrb[0].mxu0
  %v995 = vadd.f32 %v181, %v994
  %996 = vmatprep.mubr.bf16.mxu0 %v273
  %997 = vmatmul.mubr.bf16.gmra.mrb[0].mxu0 %v272
  %v998 = vpop.f32.mrb[0].mxu0
  %v999 = vadd.f32 %v177, %v998
  %v1000 = vpop.f32.mrb[0].mxu0
  %v1001 = vadd.f32 %v181, %v1000
  %v1002 = vpop.f32.mrb[0].mxu0
  %v1003 = vadd.f32 %v177, %v1002
  %v1004 = vpop.f32.mrb[0].mxu0
  %v1005 = vadd.f32 %v181, %v1004
  %1006 = vdwg.mxu0
  %1007 = vmatprep.subr.bf16.mxu0 %v721
  %1008 = vmatpush1.bf16.msra.mxu0 %v720
  %1009 = vmatprep.subr.bf16.mxu0 %v723
  %1010 = vmatpush1.bf16.msra.mxu0 %v722
  %1011 = vmatprep.subr.bf16.mxu0 %v725
  %1012 = vmatpush1.bf16.msra.mxu0 %v724
  %1013 = vmatprep.subr.bf16.mxu0 %v727
  %1014 = vmatpush1.bf16.msra.mxu0 %v726
  %1015 = vmatprep.subr.bf16.mxu0 %v729
  %1016 = vmatpush1.bf16.msra.mxu0 %v728
  %1017 = vmatprep.subr.bf16.mxu0 %v731
  %1018 = vmatpush1.bf16.msra.mxu0 %v730
  %1019 = vmatprep.subr.bf16.mxu0 %v733
  %1020 = vmatpush1.bf16.msra.mxu0 %v732
  %1021 = vmatprep.subr.bf16.mxu0 %v735
  %1022 = vmatpush1.bf16.msra.mxu0 %v734
  %1023 = vmatprep.subr.bf16.mxu0 %v737
  %1024 = vmatpush1.bf16.msra.mxu0 %v736
  %1025 = vmatprep.subr.bf16.mxu0 %v739
  %1026 = vmatpush1.bf16.msra.mxu0 %v738
  %1027 = vmatprep.subr.bf16.mxu0 %v741
  %1028 = vmatpush1.bf16.msra.mxu0 %v740
  %1029 = vmatprep.subr.bf16.mxu0 %v743
  %1030 = vmatpush1.bf16.msra.mxu0 %v742
  %1031 = vmatprep.subr.bf16.mxu0 %v745
  %1032 = vmatpush1.bf16.msra.mxu0 %v744
  %1033 = vmatprep.subr.bf16.mxu0 %v747
  %1034 = vmatpush1.bf16.msra.mxu0 %v746
  %1035 = vmatprep.subr.bf16.mxu0 %v749
  %1036 = vmatpush1.bf16.msra.mxu0 %v748
  %1037 = vmatprep.subr.bf16.mxu0 %v751
  %1038 = vmatpush1.bf16.msra.mxu0 %v750
  %1039 = vmatprep.mubr.bf16.mxu0 %v259
  %1040 = vmatmul.mubr.bf16.gmra.mrb[0].mxu0 %v258
  %v1041 = vpop.f32.mrb[0].mxu0
  %v1042 = vadd.f32 %v979, %v1041
  %v1043 = vpop.f32.mrb[0].mxu0
  %v1044 = vadd.f32 %v981, %v1043
  %v1045 = vpop.f32.mrb[0].mxu0
  %v1046 = vadd.f32 %v983, %v1045
  %v1047 = vpop.f32.mrb[0].mxu0
  %v1048 = vadd.f32 %v985, %v1047
  %1049 = vmatprep.mubr.bf16.mxu0 %v267
  %1050 = vmatmul.mubr.bf16.gmra.mrb[0].mxu0 %v266
  %v1051 = vpop.f32.mrb[0].mxu0
  %v1052 = vadd.f32 %v989, %v1051
  %v1053 = vpop.f32.mrb[0].mxu0
  %v1054 = vadd.f32 %v991, %v1053
  %v1055 = vpop.f32.mrb[0].mxu0
  %v1056 = vadd.f32 %v993, %v1055
  %v1057 = vpop.f32.mrb[0].mxu0
  %v1058 = vadd.f32 %v995, %v1057
  %1059 = vmatprep.mubr.bf16.mxu0 %v275
  %1060 = vmatmul.mubr.bf16.gmra.mrb[0].mxu0 %v274
  %v1061 = vpop.f32.mrb[0].mxu0
  %v1062 = vadd.f32 %v999, %v1061
  %v1063 = vpop.f32.mrb[0].mxu0
  %v1064 = vadd.f32 %v1001, %v1063
  %v1065 = vpop.f32.mrb[0].mxu0
  %v1066 = vadd.f32 %v1003, %v1065
  %v1067 = vpop.f32.mrb[0].mxu0
  %v1068 = vadd.f32 %v1005, %v1067
  %1069 = vdwg.mxu0
  %1070 = vmatprep.subr.bf16.mxu0 %v753
  %1071 = vmatpush1.bf16.msra.mxu0 %v752
  %1072 = vmatprep.subr.bf16.mxu0 %v755
  %1073 = vmatpush1.bf16.msra.mxu0 %v754
  %1074 = vmatprep.subr.bf16.mxu0 %v757
  %1075 = vmatpush1.bf16.msra.mxu0 %v756
  %1076 = vmatprep.subr.bf16.mxu0 %v759
  %1077 = vmatpush1.bf16.msra.mxu0 %v758
  %1078 = vmatprep.subr.bf16.mxu0 %v761
  %1079 = vmatpush1.bf16.msra.mxu0 %v760
  %1080 = vmatprep.subr.bf16.mxu0 %v763
  %1081 = vmatpush1.bf16.msra.mxu0 %v762
  %1082 = vmatprep.subr.bf16.mxu0 %v765
  %1083 = vmatpush1.bf16.msra.mxu0 %v764
  %1084 = vmatprep.subr.bf16.mxu0 %v767
  %1085 = vmatpush1.bf16.msra.mxu0 %v766
  %1086 = vmatprep.subr.bf16.mxu0 %v769
  %1087 = vmatpush1.bf16.msra.mxu0 %v768
  %1088 = vmatprep.subr.bf16.mxu0 %v771
  %1089 = vmatpush1.bf16.msra.mxu0 %v770
  %1090 = vmatprep.subr.bf16.mxu0 %v773
  %1091 = vmatpush1.bf16.msra.mxu0 %v772
  %1092 = vmatprep.subr.bf16.mxu0 %v775
  %1093 = vmatpush1.bf16.msra.mxu0 %v774
  %1094 = vmatprep.subr.bf16.mxu0 %v777
  %1095 = vmatpush1.bf16.msra.mxu0 %v776
  %1096 = vmatprep.subr.bf16.mxu0 %v779
  %1097 = vmatpush1.bf16.msra.mxu0 %v778
  %1098 = vmatprep.subr.bf16.mxu0 %v781
  %1099 = vmatpush1.bf16.msra.mxu0 %v780
  %1100 = vmatprep.subr.bf16.mxu0 %v783
  %1101 = vmatpush1.bf16.msra.mxu0 %v782
  %1102 = vmatprep.mubr.bf16.mxu0 %v261
  %1103 = vmatmul.mubr.bf16.gmra.mrb[0].mxu0 %v260
  %v1104 = vpop.f32.mrb[0].mxu0
  %v1105 = vadd.f32 %v1042, %v1104
  %v1106 = vpop.f32.mrb[0].mxu0
  %v1107 = vadd.f32 %v1044, %v1106
  %v1108 = vpop.f32.mrb[0].mxu0
  %v1109 = vadd.f32 %v1046, %v1108
  %v1110 = vpop.f32.mrb[0].mxu0
  %v1111 = vadd.f32 %v1048, %v1110
  %1112 = vmatprep.mubr.bf16.mxu0 %v269
  %1113 = vmatmul.mubr.bf16.gmra.mrb[0].mxu0 %v268
  %v1114 = vpop.f32.mrb[0].mxu0
  %v1115 = vadd.f32 %v1052, %v1114
  %v1116 = vpop.f32.mrb[0].mxu0
  %v1117 = vadd.f32 %v1054, %v1116
  %v1118 = vpop.f32.mrb[0].mxu0
  %v1119 = vadd.f32 %v1056, %v1118
  %v1120 = vpop.f32.mrb[0].mxu0
  %v1121 = vadd.f32 %v1058, %v1120
  %1122 = vmatprep.mubr.bf16.mxu0 %v277
  %1123 = vmatmul.mubr.bf16.gmra.mrb[0].mxu0 %v276
  %v1124 = vpop.f32.mrb[0].mxu0
  %v1125 = vadd.f32 %v1062, %v1124
  %v1126 = vpop.f32.mrb[0].mxu0
  %v1127 = vadd.f32 %v1064, %v1126
  %v1128 = vpop.f32.mrb[0].mxu0
  %v1129 = vadd.f32 %v1066, %v1128
  %v1130 = vpop.f32.mrb[0].mxu0
  %v1131 = vadd.f32 %v1068, %v1130
  %1132 = vdwg.mxu0
  %1133 = vmatprep.subr.bf16.mxu0 %v785
  %1134 = vmatpush1.bf16.msra.mxu0 %v784
  %1135 = vmatprep.subr.bf16.mxu0 %v787
  %1136 = vmatpush1.bf16.msra.mxu0 %v786
  %1137 = vmatprep.subr.bf16.mxu0 %v789
  %1138 = vmatpush1.bf16.msra.mxu0 %v788
  %1139 = vmatprep.subr.bf16.mxu0 %v791
  %1140 = vmatpush1.bf16.msra.mxu0 %v790
  %1141 = vmatprep.subr.bf16.mxu0 %v793
  %1142 = vmatpush1.bf16.msra.mxu0 %v792
  %1143 = vmatprep.subr.bf16.mxu0 %v795
  %1144 = vmatpush1.bf16.msra.mxu0 %v794
  %1145 = vmatprep.subr.bf16.mxu0 %v797
  %1146 = vmatpush1.bf16.msra.mxu0 %v796
  %1147 = vmatprep.subr.bf16.mxu0 %v799
  %1148 = vmatpush1.bf16.msra.mxu0 %v798
  %1149 = vmatprep.subr.bf16.mxu0 %v801
  %1150 = vmatpush1.bf16.msra.mxu0 %v800
  %1151 = vmatprep.subr.bf16.mxu0 %v803
  %1152 = vmatpush1.bf16.msra.mxu0 %v802
  %1153 = vmatprep.subr.bf16.mxu0 %v805
  %1154 = vmatpush1.bf16.msra.mxu0 %v804
  %1155 = vmatprep.subr.bf16.mxu0 %v807
  %1156 = vmatpush1.bf16.msra.mxu0 %v806
  %1157 = vmatprep.subr.bf16.mxu0 %v809
  %1158 = vmatpush1.bf16.msra.mxu0 %v808
  %1159 = vmatprep.subr.bf16.mxu0 %v811
  %1160 = vmatpush1.bf16.msra.mxu0 %v810
  %1161 = vmatprep.subr.bf16.mxu0 %v813
  %1162 = vmatpush1.bf16.msra.mxu0 %v812
  %1163 = vmatprep.subr.bf16.mxu0 %v815
  %1164 = vmatpush1.bf16.msra.mxu0 %v814
  %1165 = vmatprep.mubr.bf16.mxu0 %v263
  %1166 = vmatmul.mubr.bf16.gmra.mrb[0].mxu0 %v262
  %v1167 = vpop.f32.mrb[0].mxu0
  %v1168 = vadd.f32 %v1105, %v1167
  %v1169 = vpop.f32.mrb[0].mxu0
  %v1170 = vadd.f32 %v1107, %v1169
  %v1171 = vpop.f32.mrb[0].mxu0
  %v1172 = vadd.f32 %v1109, %v1171
  %v1173 = vpop.f32.mrb[0].mxu0
  %v1174 = vadd.f32 %v1111, %v1173
  %1175 = vmatprep.mubr.bf16.mxu0 %v271
  %1176 = vmatmul.mubr.bf16.gmra.mrb[0].mxu0 %v270
  %v1177 = vpop.f32.mrb[0].mxu0
  %v1178 = vadd.f32 %v1115, %v1177
  %v1179 = vpop.f32.mrb[0].mxu0
  %v1180 = vadd.f32 %v1117, %v1179
  %v1181 = vpop.f32.mrb[0].mxu0
  %v1182 = vadd.f32 %v1119, %v1181
  %v1183 = vpop.f32.mrb[0].mxu0
  %v1184 = vadd.f32 %v1121, %v1183
  %1185 = vmatprep.mubr.bf16.mxu0 %v279
  %1186 = vmatmul.mubr.bf16.gmra.mrb[0].mxu0 %v278
  %v1187 = vpop.f32.mrb[0].mxu0
  %v1188 = vadd.f32 %v1125, %v1187
  %v1189 = vpop.f32.mrb[0].mxu0
  %v1190 = vadd.f32 %v1127, %v1189
  %v1191 = vpop.f32.mrb[0].mxu0
  %v1192 = vadd.f32 %v1129, %v1191
  %v1193 = vpop.f32.mrb[0].mxu0
  %v1194 = vadd.f32 %v1131, %v1193
  %1195 = vdwg.mxu0
  %v1196 = vld [vmem:[%s3] sm:$0x3]
  %v1198 = vlaneseq
  %v1199 = vshrl.u32 %v1198, 7
  %v1200 = vsub.s32 0, %v1199
  %v1201 = vrot.slane %v1196, %v1200
  %v1202 = vlaneseq
  %v1203 = vshrl.u32 %v1202, 7
  %v1204 = vsub.s32 1, %v1203
  %v1205 = vrot.slane %v1196, %v1204
  %v1208 = vmul.f32 %v1168, %v1201
  %v1209 = vmul.f32 %v1170, %v1205
  %v1210 = vmul.f32 %v1172, %v1201
  %v1211 = vmul.f32 %v1174, %v1205
  %v1212 = vmul.f32 %v1178, %v1201
  %v1213 = vmul.f32 %v1180, %v1205
  %v1214 = vmul.f32 %v1182, %v1201
  %v1215 = vmul.f32 %v1184, %v1205
  %v1216 = vmul.f32 %v1188, %v1201
  %v1217 = vmul.f32 %v1190, %v1205
  %v1218 = vmul.f32 %v1192, %v1201
  %v1219 = vmul.f32 %v1194, %v1205
  %v1220 = vld [vmem:[%s4] sm:$0xff]
  %v1221 = vld [vmem:[%s4 + $0x8] sm:$0xff]
  %v1222 = vld [vmem:[%s4 + $0x10] sm:$0xff]
  %v1223 = vld [vmem:[%s4 + $0x18] sm:$0xff]
  %v1224 = vld [vmem:[%s4 + $0x20] sm:$0xff]
  %v1225 = vld [vmem:[%s4 + $0x28] sm:$0x11]
  %v1226 = vunpack.c.l.bf16 %v1220
  %v1227 = vunpack.c.h.bf16 %v1220
  %v1228 = vunpack.c.l.bf16 %v1221
  %v1229 = vunpack.c.h.bf16 %v1221
  %v1230 = vunpack.c.l.bf16 %v1222
  %v1231 = vunpack.c.h.bf16 %v1222
  %v1232 = vunpack.c.l.bf16 %v1223
  %v1233 = vunpack.c.h.bf16 %v1223
  %v1234 = vunpack.c.l.bf16 %v1224
  %v1235 = vunpack.c.h.bf16 %v1224
  %v1236 = vunpack.c.l.bf16 %v1225
  %v1237 = vunpack.c.h.bf16 %v1225
  %v1238 = vadd.f32 %v1208, %v1226
  %v1239 = vadd.f32 %v1209, %v1227
  %v1240 = vadd.f32 %v1210, %v1228
  %v1241 = vadd.f32 %v1211, %v1229
  %v1242 = vadd.f32 %v1212, %v1230
  %v1243 = vadd.f32 %v1213, %v1231
  %v1244 = vadd.f32 %v1214, %v1232
  %v1245 = vadd.f32 %v1215, %v1233
  %v1246 = vadd.f32 %v1216, %v1234
  %v1247 = vadd.f32 %v1217, %v1235
  %v1248 = vadd.f32 %v1218, %v1236
  %v1249 = vadd.f32 %v1219, %v1237
  %v1250 = vpack.c.bf16 %v1240, %v1238
  %v1251 = vpack.c.bf16 %v1241, %v1239
  %v1252 = vpack.c.bf16 %v1244, %v1242
  %v1253 = vpack.c.bf16 %v1245, %v1243
  %v1254 = vpack.c.bf16 %v1248, %v1246
  %v1255 = vpack.c.bf16 %v1249, %v1247
  %v1262 = vunpack.c.l.b16 %v1250
  %v1263 = vunpack.c.l.b16 %v1251
  %v1264 = vunpack.c.h.b16 %v1250
  %v1265 = vunpack.c.h.b16 %v1251
  %v1266 = vunpack.c.l.b16 %v1252
  %v1267 = vunpack.c.l.b16 %v1253
  %v1268 = vunpack.c.h.b16 %v1252
  %v1269 = vunpack.c.h.b16 %v1253
  %v1270 = vunpack.c.l.b16 %v1254
  %v1271 = vunpack.c.l.b16 %v1255
  %v1272 = vunpack.c.h.b16 %v1254
  %v1273 = vunpack.c.h.b16 %v1255
  %v1274 = vpack.c.b16 %v1263, %v1262
  %v1275 = vpack.c.b16 %v1265, %v1264
  %v1276 = vpack.c.b16 %v1267, %v1266
  %v1277 = vpack.c.b16 %v1269, %v1268
  %v1278 = vpack.c.b16 %v1271, %v1270
  %v1279 = vpack.c.b16 %v1273, %v1272
  %1286 = vst [vmem:[%s5] sm:$0xff] %v1274
  %1287 = vst [vmem:[%s5 + $0x8] sm:$0xff] %v1275
  %1288 = vst [vmem:[%s5 + $0x10] sm:$0xff] %v1276
  %1289 = vst [vmem:[%s5 + $0x18] sm:$0xff] %v1277
  %1290 = vst [vmem:[%s5 + $0x20] sm:$0xff] %v1278
  %1291 = vst [vmem:[%s5 + $0x28] sm:$0x11] %v1279
  // Predicated region
  $region22: #{dino_extractor_forward.66} parent=0 // pred_check
    _
  $region23: #{dino_extractor_forward.66} parent=0 // pred_check_branch
    %1293 = sbr.rel (0) target = $region25
  $region24: #{dino_extractor_forward.66} parent=0 // pred_region
    _
  $region25: #{dino_extractor_forward.66} parent=0 // pred_fallthru
    _
  // Predicated region
  $region26: #{dino_extractor_forward.66} parent=0 // pred_check
    _
  $region27: #{dino_extractor_forward.66} parent=0 // pred_check_branch
    %1295 = sbr.rel (0) target = $region29
  $region28: #{dino_extractor_forward.66} parent=0 // pred_region
    _
  $region29: #{dino_extractor_forward.66} parent=0 // pred_fallthru
    _

// kernel: dino_extractor_forward.65
$region0: #{dino_extractor_forward.65}
  #allocation0 [shape = 'u32[]', space=smem, size = 0x4, offset = 0x4, fixed_abs, tag = 'smem constant byte address 0x4 - core index']
  #allocation1 [shape = 'u32[144,128]{1,0:T(1,128)}', space=vmem, size = 0x12000, scoped, tag = 'internal scratch']
  %s0 = inlined_call_operand.vmem [shape: bf16[42,256], index: 0, kind: input, shape index: {}]
  %s1 = inlined_call_operand.vmem [shape: f32[1,256], index: 1, kind: input, shape index: {}]
  %s2 = inlined_call_operand.vmem [shape: f32[1,256], index: 2, kind: input, shape index: {}]
  %s3 = inlined_call_operand.vmem [shape: bf16[256,1024], index: 3, kind: input, shape index: {}]
  %s4 = inlined_call_operand.vmem [shape: f32[1,1024], index: 4, kind: input, shape index: {}]
  %s5 = inlined_call_operand.vmem [shape: bf16[42,1024], index: 5, kind: output, shape index: {}]
  %s6 = sld [smem:[#allocation0]]
  $region30: #{dino_extractor_forward.65} parent=0
    _
  %s8 = ssub.s32 1, %s6
  %s9 = scalar_select 0, %s8, %s6
  // Predicated region
  $region2: #{dino_extractor_forward.65} parent=0 // pred_check
    _
  $region3: #{dino_extractor_forward.65} parent=0 // pred_check_branch
    %11 = sbr.rel (0) target = $region5
  $region4: #{dino_extractor_forward.65} parent=0 // pred_region
    _
  $region5: #{dino_extractor_forward.65} parent=0 // pred_fallthru
    _
  // Predicated region
  $region6: #{dino_extractor_forward.65} parent=0 // pred_check
    _
  $region7: #{dino_extractor_forward.65} parent=0 // pred_check_branch
    %13 = sbr.rel (0) target = $region9
  $region8: #{dino_extractor_forward.65} parent=0 // pred_region
    _
  $region9: #{dino_extractor_forward.65} parent=0 // pred_fallthru
    _
  // Predicated region
  $region10: #{dino_extractor_forward.65} parent=0 // pred_check
    _
  $region11: #{dino_extractor_forward.65} parent=0 // pred_check_branch
    %15 = sbr.rel (0) target = $region13
  $region12: #{dino_extractor_forward.65} parent=0 // pred_region
    _
  $region13: #{dino_extractor_forward.65} parent=0 // pred_fallthru
    _
  // Predicated region
  $region14: #{dino_extractor_forward.65} parent=0 // pred_check
    _
  $region15: #{dino_extractor_forward.65} parent=0 // pred_check_branch
    %17 = sbr.rel (0) target = $region17
  $region16: #{dino_extractor_forward.65} parent=0 // pred_region
    _
  $region17: #{dino_extractor_forward.65} parent=0 // pred_fallthru
    _
  // Predicated region
  $region18: #{dino_extractor_forward.65} parent=0 // pred_check
    _
  $region19: #{dino_extractor_forward.65} parent=0 // pred_check_branch
    %19 = sbr.rel (0) target = $region21
  $region20: #{dino_extractor_forward.65} parent=0 // pred_region
    _
  $region21: #{dino_extractor_forward.65} parent=0 // pred_fallthru
    _
  %v20 = vld [vmem:[%s0] sm:$0xff]
  %v21 = vld [vmem:[%s0 + $0x8] sm:$0xff]
  %v22 = vld [vmem:[%s0 + $0x10] sm:$0xff]
  %v23 = vld [vmem:[%s0 + $0x18] sm:$0xff]
  %v24 = vld [vmem:[%s0 + $0x20] sm:$0xff]
  %v25 = vld [vmem:[%s0 + $0x28] sm:$0x11]
  %v26 = vunpack.c.l.bf16 %v20
  %v27 = vunpack.c.h.bf16 %v20
  %v28 = vunpack.c.l.bf16 %v21
  %v29 = vunpack.c.h.bf16 %v21
  %v30 = vunpack.c.l.bf16 %v22
  %v31 = vunpack.c.h.bf16 %v22
  %v32 = vunpack.c.l.bf16 %v23
  %v33 = vunpack.c.h.bf16 %v23
  %v34 = vunpack.c.l.bf16 %v24
  %v35 = vunpack.c.h.bf16 %v24
  %v36 = vunpack.c.l.bf16 %v25
  %v37 = vunpack.c.h.bf16 %v25
  %v38 = vadd.f32 %v26, %v27
  %39 = vadd.xlane.f32.xlu0 %v38
  %v40 = vpop.xlane.xlu0 %39
  %v41 = vadd.f32 %v28, %v29
  %42 = vadd.xlane.f32.xlu0 %v41
  %v43 = vpop.xlane.xlu0 %42
  %v44 = vadd.f32 %v30, %v31
  %45 = vadd.xlane.f32.xlu0 %v44
  %v46 = vpop.xlane.xlu0 %45
  %v47 = vadd.f32 %v32, %v33
  %48 = vadd.xlane.f32.xlu0 %v47
  %v49 = vpop.xlane.xlu0 %48
  %v50 = vadd.f32 %v34, %v35
  %51 = vadd.xlane.f32.xlu0 %v50
  %v52 = vpop.xlane.xlu0 %51
  %vm53 = vcmask 1041408
  %v54 = vsel %vm53, %v36, 0.0
  %v55 = vsel %vm53, %v37, 0.0
  %v56 = vadd.f32 %v54, %v55
  %57 = vadd.xlane.f32.xlu0 %v56
  %v58 = vpop.xlane.xlu0 %57
  %v59 = vrcp.pop 256.0
  %v60 = vmul.f32 %v40, %v59
  %v61 = vmul.f32 %v43, %v59
  %v62 = vmul.f32 %v46, %v59
  %v63 = vmul.f32 %v49, %v59
  %v64 = vmul.f32 %v52, %v59
  %v65 = vmul.f32 %v58, %v59
  %v66 = vsub.f32 %v26, %v60
  %v67 = vsub.f32 %v27, %v60
  %v68 = vsub.f32 %v28, %v61
  %v69 = vsub.f32 %v29, %v61
  %v70 = vsub.f32 %v30, %v62
  %v71 = vsub.f32 %v31, %v62
  %v72 = vsub.f32 %v32, %v63
  %v73 = vsub.f32 %v33, %v63
  %v74 = vsub.f32 %v34, %v64
  %v75 = vsub.f32 %v35, %v64
  %v76 = vsub.f32 %v36, %v65
  %v77 = vsub.f32 %v37, %v65
  %v78 = vmul.f32 %v66, %v66
  %v79 = vmul.f32 %v67, %v67
  %v80 = vmul.f32 %v68, %v68
  %v81 = vmul.f32 %v69, %v69
  %v82 = vmul.f32 %v70, %v70
  %v83 = vmul.f32 %v71, %v71
  %v84 = vmul.f32 %v72, %v72
  %v85 = vmul.f32 %v73, %v73
  %v86 = vmul.f32 %v74, %v74
  %v87 = vmul.f32 %v75, %v75
  %v88 = vmul.f32 %v76, %v76
  %v89 = vmul.f32 %v77, %v77
  %v90 = vadd.f32 %v78, %v79
  %91 = vadd.xlane.f32.xlu0 %v90
  %v92 = vpop.xlane.xlu0 %91
  %v93 = vadd.f32 %v80, %v81
  %94 = vadd.xlane.f32.xlu0 %v93
  %v95 = vpop.xlane.xlu0 %94
  %v96 = vadd.f32 %v82, %v83
  %97 = vadd.xlane.f32.xlu0 %v96
  %v98 = vpop.xlane.xlu0 %97
  %v99 = vadd.f32 %v84, %v85
  %100 = vadd.xlane.f32.xlu0 %v99
  %v101 = vpop.xlane.xlu0 %100
  %v102 = vadd.f32 %v86, %v87
  %103 = vadd.xlane.f32.xlu0 %v102
  %v104 = vpop.xlane.xlu0 %103
  %v105 = vsel %vm53, %v88, 0.0
  %v106 = vsel %vm53, %v89, 0.0
  %v107 = vadd.f32 %v105, %v106
  %108 = vadd.xlane.f32.xlu0 %v107
  %v109 = vpop.xlane.xlu0 %108
  %v110 = vmul.f32 %v92, %v59
  %v111 = vmul.f32 %v95, %v59
  %v112 = vmul.f32 %v98, %v59
  %v113 = vmul.f32 %v101, %v59
  %v114 = vmul.f32 %v104, %v59
  %v115 = vmul.f32 %v109, %v59
  %v116 = vadd.f32 %v110, 1e-06
  %v117 = vadd.f32 %v111, 1e-06
  %v118 = vadd.f32 %v112, 1e-06
  %v119 = vadd.f32 %v113, 1e-06
  %v120 = vadd.f32 %v114, 1e-06
  %v121 = vadd.f32 %v115, 1e-06
  %v122 = vrsqrt.pop %v116
  %v123 = vrsqrt.pop %v117
  %v124 = vrsqrt.pop %v118
  %v125 = vrsqrt.pop %v119
  %v126 = vrsqrt.pop %v120
  %v127 = vrsqrt.pop %v121
  %v128 = vmul.f32 %v66, %v122
  %v129 = vmul.f32 %v67, %v122
  %v130 = vmul.f32 %v68, %v123
  %v131 = vmul.f32 %v69, %v123
  %v132 = vmul.f32 %v70, %v124
  %v133 = vmul.f32 %v71, %v124
  %v134 = vmul.f32 %v72, %v125
  %v135 = vmul.f32 %v73, %v125
  %v136 = vmul.f32 %v74, %v126
  %v137 = vmul.f32 %v75, %v126
  %v138 = vmul.f32 %v76, %v127
  %v139 = vmul.f32 %v77, %v127
  %v140 = vld [vmem:[%s1] sm:$0x3]
  %v142 = vlaneseq
  %v143 = vshrl.u32 %v142, 7
  %v144 = vsub.s32 0, %v143
  %v145 = vrot.slane %v140, %v144
  %v146 = vlaneseq
  %v147 = vshrl.u32 %v146, 7
  %v148 = vsub.s32 1, %v147
  %v149 = vrot.slane %v140, %v148
  %v152 = vmul.f32 %v128, %v145
  %v153 = vmul.f32 %v129, %v149
  %v154 = vmul.f32 %v130, %v145
  %v155 = vmul.f32 %v131, %v149
  %v156 = vmul.f32 %v132, %v145
  %v157 = vmul.f32 %v133, %v149
  %v158 = vmul.f32 %v134, %v145
  %v159 = vmul.f32 %v135, %v149
  %v160 = vmul.f32 %v136, %v145
  %v161 = vmul.f32 %v137, %v149
  %v162 = vmul.f32 %v138, %v145
  %v163 = vmul.f32 %v139, %v149
  %v164 = vld [vmem:[%s2] sm:$0x3]
  %v166 = vlaneseq
  %v167 = vshrl.u32 %v166, 7
  %v168 = vsub.s32 0, %v167
  %v169 = vrot.slane %v164, %v168
  %v170 = vlaneseq
  %v171 = vshrl.u32 %v170, 7
  %v172 = vsub.s32 1, %v171
  %v173 = vrot.slane %v164, %v172
  %v176 = vadd.f32 %v152, %v169
  %v177 = vadd.f32 %v153, %v173
  %v178 = vadd.f32 %v154, %v169
  %v179 = vadd.f32 %v155, %v173
  %v180 = vadd.f32 %v156, %v169
  %v181 = vadd.f32 %v157, %v173
  %v182 = vadd.f32 %v158, %v169
  %v183 = vadd.f32 %v159, %v173
  %v184 = vadd.f32 %v160, %v169
  %v185 = vadd.f32 %v161, %v173
  %v186 = vadd.f32 %v162, %v169
  %v187 = vadd.f32 %v163, %v173
  %v188 = vpack.c.bf16 %v178, %v176
  %v189 = vpack.c.bf16 %v179, %v177
  %v190 = vpack.c.bf16 %v182, %v180
  %v191 = vpack.c.bf16 %v183, %v181
  %v192 = vpack.c.bf16 %v186, %v184
  %v193 = vpack.c.bf16 %v187, %v185
  %v194 = vld [vmem:[%s3] sm:$0xff]
  %v195 = vld [vmem:[%s3 + $0x8] sm:$0xff]
  %v196 = vld [vmem:[%s3 + $0x10] sm:$0xff]
  %v197 = vld [vmem:[%s3 + $0x18] sm:$0xff]
  %v198 = vld [vmem:[%s3 + $0x20] sm:$0xff]
  %v199 = vld [vmem:[%s3 + $0x28] sm:$0xff]
  %v200 = vld [vmem:[%s3 + $0x30] sm:$0xff]
  %v201 = vld [vmem:[%s3 + $0x38] sm:$0xff]
  %v202 = vld [vmem:[%s3 + $0x40] sm:$0xff]
  %v203 = vld [vmem:[%s3 + $0x48] sm:$0xff]
  %v204 = vld [vmem:[%s3 + $0x50] sm:$0xff]
  %v205 = vld [vmem:[%s3 + $0x58] sm:$0xff]
  %v206 = vld [vmem:[%s3 + $0x60] sm:$0xff]
  %v207 = vld [vmem:[%s3 + $0x68] sm:$0xff]
  %v208 = vld [vmem:[%s3 + $0x70] sm:$0xff]
  %v209 = vld [vmem:[%s3 + $0x78] sm:$0xff]
  %v210 = vld [vmem:[%s3 + $0x80] sm:$0xff]
  %v211 = vld [vmem:[%s3 + $0x88] sm:$0xff]
  %v212 = vld [vmem:[%s3 + $0x90] sm:$0xff]
  %v213 = vld [vmem:[%s3 + $0x98] sm:$0xff]
  %v214 = vld [vmem:[%s3 + $0xa0] sm:$0xff]
  %v215 = vld [vmem:[%s3 + $0xa8] sm:$0xff]
  %v216 = vld [vmem:[%s3 + $0xb0] sm:$0xff]
  %v217 = vld [vmem:[%s3 + $0xb8] sm:$0xff]
  %v218 = vld [vmem:[%s3 + $0xc0] sm:$0xff]
  %v219 = vld [vmem:[%s3 + $0xc8] sm:$0xff]
  %v220 = vld [vmem:[%s3 + $0xd0] sm:$0xff]
  %v221 = vld [vmem:[%s3 + $0xd8] sm:$0xff]
  %v222 = vld [vmem:[%s3 + $0xe0] sm:$0xff]
  %v223 = vld [vmem:[%s3 + $0xe8] sm:$0xff]
  %v224 = vld [vmem:[%s3 + $0xf0] sm:$0xff]
  %v225 = vld [vmem:[%s3 + $0xf8] sm:$0xff]
  %v226 = vld [vmem:[%s3 + $0x100] sm:$0xff]
  %v227 = vld [vmem:[%s3 + $0x108] sm:$0xff]
  %v228 = vld [vmem:[%s3 + $0x110] sm:$0xff]
  %v229 = vld [vmem:[%s3 + $0x118] sm:$0xff]
  %v230 = vld [vmem:[%s3 + $0x120] sm:$0xff]
  %v231 = vld [vmem:[%s3 + $0x128] sm:$0xff]
  %v232 = vld [vmem:[%s3 + $0x130] sm:$0xff]
  %v233 = vld [vmem:[%s3 + $0x138] sm:$0xff]
  %v234 = vld [vmem:[%s3 + $0x140] sm:$0xff]
  %v235 = vld [vmem:[%s3 + $0x148] sm:$0xff]
  %v236 = vld [vmem:[%s3 + $0x150] sm:$0xff]
  %v237 = vld [vmem:[%s3 + $0x158] sm:$0xff]
  %v238 = vld [vmem:[%s3 + $0x160] sm:$0xff]
  %v239 = vld [vmem:[%s3 + $0x168] sm:$0xff]
  %v240 = vld [vmem:[%s3 + $0x170] sm:$0xff]
  %v241 = vld [vmem:[%s3 + $0x178] sm:$0xff]
  %v242 = vld [vmem:[%s3 + $0x180] sm:$0xff]
  %v243 = vld [vmem:[%s3 + $0x188] sm:$0xff]
  %v244 = vld [vmem:[%s3 + $0x190] sm:$0xff]
  %v245 = vld [vmem:[%s3 + $0x198] sm:$0xff]
  %v246 = vld [vmem:[%s3 + $0x1a0] sm:$0xff]
  %v247 = vld [vmem:[%s3 + $0x1a8] sm:$0xff]
  %v248 = vld [vmem:[%s3 + $0x1b0] sm:$0xff]
  %v249 = vld [vmem:[%s3 + $0x1b8] sm:$0xff]
  %v250 = vld [vmem:[%s3 + $0x1c0] sm:$0xff]
  %v251 = vld [vmem:[%s3 + $0x1c8] sm:$0xff]
  %v252 = vld [vmem:[%s3 + $0x1d0] sm:$0xff]
  %v253 = vld [vmem:[%s3 + $0x1d8] sm:$0xff]
  %v254 = vld [vmem:[%s3 + $0x1e0] sm:$0xff]
  %v255 = vld [vmem:[%s3 + $0x1e8] sm:$0xff]
  %v256 = vld [vmem:[%s3 + $0x1f0] sm:$0xff]
  %v257 = vld [vmem:[%s3 + $0x1f8] sm:$0xff]
  %v258 = vld [vmem:[%s3 + $0x200] sm:$0xff]
  %v259 = vld [vmem:[%s3 + $0x208] sm:$0xff]
  %v260 = vld [vmem:[%s3 + $0x210] sm:$0xff]
  %v261 = vld [vmem:[%s3 + $0x218] sm:$0xff]
  %v262 = vld [vmem:[%s3 + $0x220] sm:$0xff]
  %v263 = vld [vmem:[%s3 + $0x228] sm:$0xff]
  %v264 = vld [vmem:[%s3 + $0x230] sm:$0xff]
  %v265 = vld [vmem:[%s3 + $0x238] sm:$0xff]
  %v266 = vld [vmem:[%s3 + $0x240] sm:$0xff]
  %v267 = vld [vmem:[%s3 + $0x248] sm:$0xff]
  %v268 = vld [vmem:[%s3 + $0x250] sm:$0xff]
  %v269 = vld [vmem:[%s3 + $0x258] sm:$0xff]
  %v270 = vld [vmem:[%s3 + $0x260] sm:$0xff]
  %v271 = vld [vmem:[%s3 + $0x268] sm:$0xff]
  %v272 = vld [vmem:[%s3 + $0x270] sm:$0xff]
  %v273 = vld [vmem:[%s3 + $0x278] sm:$0xff]
  %v274 = vld [vmem:[%s3 + $0x280] sm:$0xff]
  %v275 = vld [vmem:[%s3 + $0x288] sm:$0xff]
  %v276 = vld [vmem:[%s3 + $0x290] sm:$0xff]
  %v277 = vld [vmem:[%s3 + $0x298] sm:$0xff]
  %v278 = vld [vmem:[%s3 + $0x2a0] sm:$0xff]
  %v279 = vld [vmem:[%s3 + $0x2a8] sm:$0xff]
  %v280 = vld [vmem:[%s3 + $0x2b0] sm:$0xff]
  %v281 = vld [vmem:[%s3 + $0x2b8] sm:$0xff]
  %v282 = vld [vmem:[%s3 + $0x2c0] sm:$0xff]
  %v283 = vld [vmem:[%s3 + $0x2c8] sm:$0xff]
  %v284 = vld [vmem:[%s3 + $0x2d0] sm:$0xff]
  %v285 = vld [vmem:[%s3 + $0x2d8] sm:$0xff]
  %v286 = vld [vmem:[%s3 + $0x2e0] sm:$0xff]
  %v287 = vld [vmem:[%s3 + $0x2e8] sm:$0xff]
  %v288 = vld [vmem:[%s3 + $0x2f0] sm:$0xff]
  %v289 = vld [vmem:[%s3 + $0x2f8] sm:$0xff]
  %v290 = vld [vmem:[%s3 + $0x300] sm:$0xff]
  %v291 = vld [vmem:[%s3 + $0x308] sm:$0xff]
  %v292 = vld [vmem:[%s3 + $0x310] sm:$0xff]
  %v293 = vld [vmem:[%s3 + $0x318] sm:$0xff]
  %v294 = vld [vmem:[%s3 + $0x320] sm:$0xff]
  %v295 = vld [vmem:[%s3 + $0x328] sm:$0xff]
  %v296 = vld [vmem:[%s3 + $0x330] sm:$0xff]
  %v297 = vld [vmem:[%s3 + $0x338] sm:$0xff]
  %v298 = vld [vmem:[%s3 + $0x340] sm:$0xff]
  %v299 = vld [vmem:[%s3 + $0x348] sm:$0xff]
  %v300 = vld [vmem:[%s3 + $0x350] sm:$0xff]
  %v301 = vld [vmem:[%s3 + $0x358] sm:$0xff]
  %v302 = vld [vmem:[%s3 + $0x360] sm:$0xff]
  %v303 = vld [vmem:[%s3 + $0x368] sm:$0xff]
  %v304 = vld [vmem:[%s3 + $0x370] sm:$0xff]
  %v305 = vld [vmem:[%s3 + $0x378] sm:$0xff]
  %v306 = vld [vmem:[%s3 + $0x380] sm:$0xff]
  %v307 = vld [vmem:[%s3 + $0x388] sm:$0xff]
  %v308 = vld [vmem:[%s3 + $0x390] sm:$0xff]
  %v309 = vld [vmem:[%s3 + $0x398] sm:$0xff]
  %v310 = vld [vmem:[%s3 + $0x3a0] sm:$0xff]
  %v311 = vld [vmem:[%s3 + $0x3a8] sm:$0xff]
  %v312 = vld [vmem:[%s3 + $0x3b0] sm:$0xff]
  %v313 = vld [vmem:[%s3 + $0x3b8] sm:$0xff]
  %v314 = vld [vmem:[%s3 + $0x3c0] sm:$0xff]
  %v315 = vld [vmem:[%s3 + $0x3c8] sm:$0xff]
  %v316 = vld [vmem:[%s3 + $0x3d0] sm:$0xff]
  %v317 = vld [vmem:[%s3 + $0x3d8] sm:$0xff]
  %v318 = vld [vmem:[%s3 + $0x3e0] sm:$0xff]
  %v319 = vld [vmem:[%s3 + $0x3e8] sm:$0xff]
  %v320 = vld [vmem:[%s3 + $0x3f0] sm:$0xff]
  %v321 = vld [vmem:[%s3 + $0x3f8] sm:$0xff]
  %v322 = vld [vmem:[%s4] sm:$0xff]
  %v324 = vlaneseq
  %v325 = vshrl.u32 %v324, 7
  %v326 = vsub.s32 0, %v325
  %v327 = vrot.slane %v322, %v326
  %v328 = vlaneseq
  %v329 = vshrl.u32 %v328, 7
  %v330 = vsub.s32 1, %v329
  %v331 = vrot.slane %v322, %v330
  %v332 = vlaneseq
  %v333 = vshrl.u32 %v332, 7
  %v334 = vsub.s32 2, %v333
  %v335 = vrot.slane %v322, %v334
  %v336 = vlaneseq
  %v337 = vshrl.u32 %v336, 7
  %v338 = vsub.s32 3, %v337
  %v339 = vrot.slane %v322, %v338
  %v340 = vlaneseq
  %v341 = vshrl.u32 %v340, 7
  %v342 = vsub.s32 4, %v341
  %v343 = vrot.slane %v322, %v342
  %v344 = vlaneseq
  %v345 = vshrl.u32 %v344, 7
  %v346 = vsub.s32 5, %v345
  %v347 = vrot.slane %v322, %v346
  %v348 = vlaneseq
  %v349 = vshrl.u32 %v348, 7
  %v350 = vsub.s32 6, %v349
  %v351 = vrot.slane %v322, %v350
  %v352 = vlaneseq
  %v353 = vshrl.u32 %v352, 7
  %v354 = vsub.s32 7, %v353
  %v355 = vrot.slane %v322, %v354
  %v492 = vunpack.c.l.b16 %v194
  %v493 = vunpack.c.h.b16 %v194
  %v494 = vunpack.c.l.b16 %v195
  %v495 = vunpack.c.h.b16 %v195
  %v496 = vunpack.c.l.b16 %v196
  %v497 = vunpack.c.h.b16 %v196
  %v498 = vunpack.c.l.b16 %v197
  %v499 = vunpack.c.h.b16 %v197
  %v500 = vunpack.c.l.b16 %v198
  %v501 = vunpack.c.h.b16 %v198
  %v502 = vunpack.c.l.b16 %v199
  %v503 = vunpack.c.h.b16 %v199
  %v504 = vunpack.c.l.b16 %v200
  %v505 = vunpack.c.h.b16 %v200
  %v506 = vunpack.c.l.b16 %v201
  %v507 = vunpack.c.h.b16 %v201
  %v508 = vunpack.c.l.b16 %v202
  %v509 = vunpack.c.h.b16 %v202
  %v510 = vunpack.c.l.b16 %v203
  %v511 = vunpack.c.h.b16 %v203
  %v512 = vunpack.c.l.b16 %v204
  %v513 = vunpack.c.h.b16 %v204
  %v514 = vunpack.c.l.b16 %v205
  %v515 = vunpack.c.h.b16 %v205
  %v516 = vunpack.c.l.b16 %v206
  %v517 = vunpack.c.h.b16 %v206
  %v518 = vunpack.c.l.b16 %v207
  %v519 = vunpack.c.h.b16 %v207
  %v520 = vunpack.c.l.b16 %v208
  %v521 = vunpack.c.h.b16 %v208
  %v522 = vunpack.c.l.b16 %v209
  %v523 = vunpack.c.h.b16 %v209
  %v524 = vunpack.c.l.b16 %v210
  %v525 = vunpack.c.h.b16 %v210
  %v526 = vunpack.c.l.b16 %v211
  %v527 = vunpack.c.h.b16 %v211
  %v528 = vunpack.c.l.b16 %v212
  %v529 = vunpack.c.h.b16 %v212
  %v530 = vunpack.c.l.b16 %v213
  %v531 = vunpack.c.h.b16 %v213
  %v532 = vunpack.c.l.b16 %v214
  %v533 = vunpack.c.h.b16 %v214
  %v534 = vunpack.c.l.b16 %v215
  %v535 = vunpack.c.h.b16 %v215
  %v536 = vunpack.c.l.b16 %v216
  %v537 = vunpack.c.h.b16 %v216
  %v538 = vunpack.c.l.b16 %v217
  %v539 = vunpack.c.h.b16 %v217
  %v540 = vunpack.c.l.b16 %v218
  %v541 = vunpack.c.h.b16 %v218
  %v542 = vunpack.c.l.b16 %v219
  %v543 = vunpack.c.h.b16 %v219
  %v544 = vunpack.c.l.b16 %v220
  %v545 = vunpack.c.h.b16 %v220
  %v546 = vunpack.c.l.b16 %v221
  %v547 = vunpack.c.h.b16 %v221
  %v548 = vunpack.c.l.b16 %v222
  %v549 = vunpack.c.h.b16 %v222
  %v550 = vunpack.c.l.b16 %v223
  %v551 = vunpack.c.h.b16 %v223
  %v552 = vunpack.c.l.b16 %v224
  %v553 = vunpack.c.h.b16 %v224
  %v554 = vunpack.c.l.b16 %v225
  %v555 = vunpack.c.h.b16 %v225
  %v556 = vunpack.c.l.b16 %v226
  %v557 = vunpack.c.h.b16 %v226
  %v558 = vunpack.c.l.b16 %v227
  %v559 = vunpack.c.h.b16 %v227
  %v560 = vunpack.c.l.b16 %v228
  %v561 = vunpack.c.h.b16 %v228
  %v562 = vunpack.c.l.b16 %v229
  %v563 = vunpack.c.h.b16 %v229
  %v564 = vunpack.c.l.b16 %v230
  %v565 = vunpack.c.h.b16 %v230
  %v566 = vunpack.c.l.b16 %v231
  %v567 = vunpack.c.h.b16 %v231
  %v568 = vunpack.c.l.b16 %v232
  %v569 = vunpack.c.h.b16 %v232
  %v570 = vunpack.c.l.b16 %v233
  %v571 = vunpack.c.h.b16 %v233
  %v572 = vunpack.c.l.b16 %v234
  %v573 = vunpack.c.h.b16 %v234
  %v574 = vunpack.c.l.b16 %v235
  %v575 = vunpack.c.h.b16 %v235
  %v576 = vunpack.c.l.b16 %v236
  %v577 = vunpack.c.h.b16 %v236
  %v578 = vunpack.c.l.b16 %v237
  %v579 = vunpack.c.h.b16 %v237
  %v580 = vunpack.c.l.b16 %v238
  %v581 = vunpack.c.h.b16 %v238
  %v582 = vunpack.c.l.b16 %v239
  %v583 = vunpack.c.h.b16 %v239
  %v584 = vunpack.c.l.b16 %v240
  %v585 = vunpack.c.h.b16 %v240
  %v586 = vunpack.c.l.b16 %v241
  %v587 = vunpack.c.h.b16 %v241
  %v588 = vunpack.c.l.b16 %v242
  %v589 = vunpack.c.h.b16 %v242
  %v590 = vunpack.c.l.b16 %v243
  %v591 = vunpack.c.h.b16 %v243
  %v592 = vunpack.c.l.b16 %v244
  %v593 = vunpack.c.h.b16 %v244
  %v594 = vunpack.c.l.b16 %v245
  %v595 = vunpack.c.h.b16 %v245
  %v596 = vunpack.c.l.b16 %v246
  %v597 = vunpack.c.h.b16 %v246
  %v598 = vunpack.c.l.b16 %v247
  %v599 = vunpack.c.h.b16 %v247
  %v600 = vunpack.c.l.b16 %v248
  %v601 = vunpack.c.h.b16 %v248
  %v602 = vunpack.c.l.b16 %v249
  %v603 = vunpack.c.h.b16 %v249
  %v604 = vunpack.c.l.b16 %v250
  %v605 = vunpack.c.h.b16 %v250
  %v606 = vunpack.c.l.b16 %v251
  %v607 = vunpack.c.h.b16 %v251
  %v608 = vunpack.c.l.b16 %v252
  %v609 = vunpack.c.h.b16 %v252
  %v610 = vunpack.c.l.b16 %v253
  %v611 = vunpack.c.h.b16 %v253
  %v612 = vunpack.c.l.b16 %v254
  %v613 = vunpack.c.h.b16 %v254
  %v614 = vunpack.c.l.b16 %v255
  %v615 = vunpack.c.h.b16 %v255
  %v616 = vunpack.c.l.b16 %v256
  %v617 = vunpack.c.h.b16 %v256
  %v618 = vunpack.c.l.b16 %v257
  %v619 = vunpack.c.h.b16 %v257
  %v620 = vunpack.c.l.b16 %v258
  %v621 = vunpack.c.h.b16 %v258
  %v622 = vunpack.c.l.b16 %v259
  %v623 = vunpack.c.h.b16 %v259
  %v624 = vunpack.c.l.b16 %v260
  %v625 = vunpack.c.h.b16 %v260
  %v626 = vunpack.c.l.b16 %v261
  %v627 = vunpack.c.h.b16 %v261
  %v628 = vunpack.c.l.b16 %v262
  %v629 = vunpack.c.h.b16 %v262
  %v630 = vunpack.c.l.b16 %v263
  %v631 = vunpack.c.h.b16 %v263
  %v632 = vunpack.c.l.b16 %v264
  %v633 = vunpack.c.h.b16 %v264
  %v634 = vunpack.c.l.b16 %v265
  %v635 = vunpack.c.h.b16 %v265
  %v636 = vunpack.c.l.b16 %v266
  %v637 = vunpack.c.h.b16 %v266
  %v638 = vunpack.c.l.b16 %v267
  %v639 = vunpack.c.h.b16 %v267
  %v640 = vunpack.c.l.b16 %v268
  %v641 = vunpack.c.h.b16 %v268
  %v642 = vunpack.c.l.b16 %v269
  %v643 = vunpack.c.h.b16 %v269
  %v644 = vunpack.c.l.b16 %v270
  %v645 = vunpack.c.h.b16 %v270
  %v646 = vunpack.c.l.b16 %v271
  %v647 = vunpack.c.h.b16 %v271
  %v648 = vunpack.c.l.b16 %v272
  %v649 = vunpack.c.h.b16 %v272
  %v650 = vunpack.c.l.b16 %v273
  %v651 = vunpack.c.h.b16 %v273
  %v652 = vunpack.c.l.b16 %v274
  %v653 = vunpack.c.h.b16 %v274
  %v654 = vunpack.c.l.b16 %v275
  %v655 = vunpack.c.h.b16 %v275
  %v656 = vunpack.c.l.b16 %v276
  %v657 = vunpack.c.h.b16 %v276
  %v658 = vunpack.c.l.b16 %v277
  %v659 = vunpack.c.h.b16 %v277
  %v660 = vunpack.c.l.b16 %v278
  %v661 = vunpack.c.h.b16 %v278
  %v662 = vunpack.c.l.b16 %v279
  %v663 = vunpack.c.h.b16 %v279
  %v664 = vunpack.c.l.b16 %v280
  %v665 = vunpack.c.h.b16 %v280
  %v666 = vunpack.c.l.b16 %v281
  %v667 = vunpack.c.h.b16 %v281
  %v668 = vunpack.c.l.b16 %v282
  %v669 = vunpack.c.h.b16 %v282
  %v670 = vunpack.c.l.b16 %v283
  %v671 = vunpack.c.h.b16 %v283
  %v672 = vunpack.c.l.b16 %v284
  %v673 = vunpack.c.h.b16 %v284
  %v674 = vunpack.c.l.b16 %v285
  %v675 = vunpack.c.h.b16 %v285
  %v676 = vunpack.c.l.b16 %v286
  %v677 = vunpack.c.h.b16 %v286
  %v678 = vunpack.c.l.b16 %v287
  %v679 = vunpack.c.h.b16 %v287
  %v680 = vunpack.c.l.b16 %v288
  %v681 = vunpack.c.h.b16 %v288
  %v682 = vunpack.c.l.b16 %v289
  %v683 = vunpack.c.h.b16 %v289
  %v684 = vunpack.c.l.b16 %v290
  %v685 = vunpack.c.h.b16 %v290
  %v686 = vunpack.c.l.b16 %v291
  %v687 = vunpack.c.h.b16 %v291
  %v688 = vunpack.c.l.b16 %v292
  %v689 = vunpack.c.h.b16 %v292
  %v690 = vunpack.c.l.b16 %v293
  %v691 = vunpack.c.h.b16 %v293
  %v692 = vunpack.c.l.b16 %v294
  %v693 = vunpack.c.h.b16 %v294
  %v694 = vunpack.c.l.b16 %v295
  %v695 = vunpack.c.h.b16 %v295
  %v696 = vunpack.c.l.b16 %v296
  %v697 = vunpack.c.h.b16 %v296
  %v698 = vunpack.c.l.b16 %v297
  %v699 = vunpack.c.h.b16 %v297
  %v700 = vunpack.c.l.b16 %v298
  %v701 = vunpack.c.h.b16 %v298
  %v702 = vunpack.c.l.b16 %v299
  %v703 = vunpack.c.h.b16 %v299
  %v704 = vunpack.c.l.b16 %v300
  %v705 = vunpack.c.h.b16 %v300
  %v706 = vunpack.c.l.b16 %v301
  %v707 = vunpack.c.h.b16 %v301
  %v708 = vunpack.c.l.b16 %v302
  %v709 = vunpack.c.h.b16 %v302
  %v710 = vunpack.c.l.b16 %v303
  %v711 = vunpack.c.h.b16 %v303
  %v712 = vunpack.c.l.b16 %v304
  %v713 = vunpack.c.h.b16 %v304
  %v714 = vunpack.c.l.b16 %v305
  %v715 = vunpack.c.h.b16 %v305
  %v716 = vunpack.c.l.b16 %v306
  %v717 = vunpack.c.h.b16 %v306
  %v718 = vunpack.c.l.b16 %v307
  %v719 = vunpack.c.h.b16 %v307
  %v720 = vunpack.c.l.b16 %v308
  %v721 = vunpack.c.h.b16 %v308
  %v722 = vunpack.c.l.b16 %v309
  %v723 = vunpack.c.h.b16 %v309
  %v724 = vunpack.c.l.b16 %v310
  %v725 = vunpack.c.h.b16 %v310
  %v726 = vunpack.c.l.b16 %v311
  %v727 = vunpack.c.h.b16 %v311
  %v728 = vunpack.c.l.b16 %v312
  %v729 = vunpack.c.h.b16 %v312
  %v730 = vunpack.c.l.b16 %v313
  %v731 = vunpack.c.h.b16 %v313
  %v732 = vunpack.c.l.b16 %v314
  %v733 = vunpack.c.h.b16 %v314
  %v734 = vunpack.c.l.b16 %v315
  %v735 = vunpack.c.h.b16 %v315
  %v736 = vunpack.c.l.b16 %v316
  %v737 = vunpack.c.h.b16 %v316
  %v738 = vunpack.c.l.b16 %v317
  %v739 = vunpack.c.h.b16 %v317
  %v740 = vunpack.c.l.b16 %v318
  %v741 = vunpack.c.h.b16 %v318
  %v742 = vunpack.c.l.b16 %v319
  %v743 = vunpack.c.h.b16 %v319
  %v744 = vunpack.c.l.b16 %v320
  %v745 = vunpack.c.h.b16 %v320
  %v746 = vunpack.c.l.b16 %v321
  %v747 = vunpack.c.h.b16 %v321
  %v748 = vpack.c.b16 %v500, %v492
  %v749 = vpack.c.b16 %v501, %v493
  %v750 = vpack.c.b16 %v502, %v494
  %v751 = vpack.c.b16 %v503, %v495
  %v752 = vpack.c.b16 %v504, %v496
  %v753 = vpack.c.b16 %v505, %v497
  %v754 = vpack.c.b16 %v506, %v498
  %v755 = vpack.c.b16 %v507, %v499
  %v756 = vpack.c.b16 %v516, %v508
  %v757 = vpack.c.b16 %v517, %v509
  %v758 = vpack.c.b16 %v518, %v510
  %v759 = vpack.c.b16 %v519, %v511
  %v760 = vpack.c.b16 %v520, %v512
  %v761 = vpack.c.b16 %v521, %v513
  %v762 = vpack.c.b16 %v522, %v514
  %v763 = vpack.c.b16 %v523, %v515
  %v764 = vpack.c.b16 %v532, %v524
  %v765 = vpack.c.b16 %v533, %v525
  %v766 = vpack.c.b16 %v534, %v526
  %v767 = vpack.c.b16 %v535, %v527
  %v768 = vpack.c.b16 %v536, %v528
  %v769 = vpack.c.b16 %v537, %v529
  %v770 = vpack.c.b16 %v538, %v530
  %v771 = vpack.c.b16 %v539, %v531
  %v772 = vpack.c.b16 %v548, %v540
  %v773 = vpack.c.b16 %v549, %v541
  %v774 = vpack.c.b16 %v550, %v542
  %v775 = vpack.c.b16 %v551, %v543
  %v776 = vpack.c.b16 %v552, %v544
  %v777 = vpack.c.b16 %v553, %v545
  %v778 = vpack.c.b16 %v554, %v546
  %v779 = vpack.c.b16 %v555, %v547
  %v780 = vpack.c.b16 %v564, %v556
  %v781 = vpack.c.b16 %v565, %v557
  %v782 = vpack.c.b16 %v566, %v558
  %v783 = vpack.c.b16 %v567, %v559
  %v784 = vpack.c.b16 %v568, %v560
  %v785 = vpack.c.b16 %v569, %v561
  %v786 = vpack.c.b16 %v570, %v562
  %v787 = vpack.c.b16 %v571, %v563
  %v788 = vpack.c.b16 %v580, %v572
  %v789 = vpack.c.b16 %v581, %v573
  %v790 = vpack.c.b16 %v582, %v574
  %v791 = vpack.c.b16 %v583, %v575
  %v792 = vpack.c.b16 %v584, %v576
  %v793 = vpack.c.b16 %v585, %v577
  %v794 = vpack.c.b16 %v586, %v578
  %v795 = vpack.c.b16 %v587, %v579
  %v796 = vpack.c.b16 %v596, %v588
  %v797 = vpack.c.b16 %v597, %v589
  %v798 = vpack.c.b16 %v598, %v590
  %v799 = vpack.c.b16 %v599, %v591
  %v800 = vpack.c.b16 %v600, %v592
  %v801 = vpack.c.b16 %v601, %v593
  %v802 = vpack.c.b16 %v602, %v594
  %v803 = vpack.c.b16 %v603, %v595
  %v804 = vpack.c.b16 %v612, %v604
  %v805 = vpack.c.b16 %v613, %v605
  %v806 = vpack.c.b16 %v614, %v606
  %v807 = vpack.c.b16 %v615, %v607
  %v808 = vpack.c.b16 %v616, %v608
  %v809 = vpack.c.b16 %v617, %v609
  %v810 = vpack.c.b16 %v618, %v610
  %v811 = vpack.c.b16 %v619, %v611
  %v812 = vpack.c.b16 %v628, %v620
  %v813 = vpack.c.b16 %v629, %v621
  %v814 = vpack.c.b16 %v630, %v622
  %v815 = vpack.c.b16 %v631, %v623
  %v816 = vpack.c.b16 %v632, %v624
  %v817 = vpack.c.b16 %v633, %v625
  %v818 = vpack.c.b16 %v634, %v626
  %v819 = vpack.c.b16 %v635, %v627
  %v820 = vpack.c.b16 %v644, %v636
  %v821 = vpack.c.b16 %v645, %v637
  %v822 = vpack.c.b16 %v646, %v638
  %v823 = vpack.c.b16 %v647, %v639
  %v824 = vpack.c.b16 %v648, %v640
  %v825 = vpack.c.b16 %v649, %v641
  %v826 = vpack.c.b16 %v650, %v642
  %v827 = vpack.c.b16 %v651, %v643
  %v828 = vpack.c.b16 %v660, %v652
  %v829 = vpack.c.b16 %v661, %v653
  %v830 = vpack.c.b16 %v662, %v654
  %v831 = vpack.c.b16 %v663, %v655
  %v832 = vpack.c.b16 %v664, %v656
  %v833 = vpack.c.b16 %v665, %v657
  %v834 = vpack.c.b16 %v666, %v658
  %v835 = vpack.c.b16 %v667, %v659
  %v836 = vpack.c.b16 %v676, %v668
  %v837 = vpack.c.b16 %v677, %v669
  %v838 = vpack.c.b16 %v678, %v670
  %v839 = vpack.c.b16 %v679, %v671
  %v840 = vpack.c.b16 %v680, %v672
  %v841 = vpack.c.b16 %v681, %v673
  %v842 = vpack.c.b16 %v682, %v674
  %v843 = vpack.c.b16 %v683, %v675
  %v844 = vpack.c.b16 %v692, %v684
  %v845 = vpack.c.b16 %v693, %v685
  %v846 = vpack.c.b16 %v694, %v686
  %v847 = vpack.c.b16 %v695, %v687
  %v848 = vpack.c.b16 %v696, %v688
  %v849 = vpack.c.b16 %v697, %v689
  %v850 = vpack.c.b16 %v698, %v690
  %v851 = vpack.c.b16 %v699, %v691
  %v852 = vpack.c.b16 %v708, %v700
  %v853 = vpack.c.b16 %v709, %v701
  %v854 = vpack.c.b16 %v710, %v702
  %v855 = vpack.c.b16 %v711, %v703
  %v856 = vpack.c.b16 %v712, %v704
  %v857 = vpack.c.b16 %v713, %v705
  %v858 = vpack.c.b16 %v714, %v706
  %v859 = vpack.c.b16 %v715, %v707
  %v860 = vpack.c.b16 %v724, %v716
  %v861 = vpack.c.b16 %v725, %v717
  %v862 = vpack.c.b16 %v726, %v718
  %v863 = vpack.c.b16 %v727, %v719
  %v864 = vpack.c.b16 %v728, %v720
  %v865 = vpack.c.b16 %v729, %v721
  %v866 = vpack.c.b16 %v730, %v722
  %v867 = vpack.c.b16 %v731, %v723
  %v868 = vpack.c.b16 %v740, %v732
  %v869 = vpack.c.b16 %v741, %v733
  %v870 = vpack.c.b16 %v742, %v734
  %v871 = vpack.c.b16 %v743, %v735
  %v872 = vpack.c.b16 %v744, %v736
  %v873 = vpack.c.b16 %v745, %v737
  %v874 = vpack.c.b16 %v746, %v738
  %v875 = vpack.c.b16 %v747, %v739
  %1004 = vmatprep.subr.bf16.mxu0 %v749
  %1005 = vmatpush1.bf16.msra.mxu0 %v748
  %1006 = vmatprep.subr.bf16.mxu0 %v757
  %1007 = vmatpush1.bf16.msra.mxu0 %v756
  %1008 = vmatprep.subr.bf16.mxu0 %v765
  %1009 = vmatpush1.bf16.msra.mxu0 %v764
  %1010 = vmatprep.subr.bf16.mxu0 %v773
  %1011 = vmatpush1.bf16.msra.mxu0 %v772
  %1012 = vmatprep.subr.bf16.mxu0 %v781
  %1013 = vmatpush1.bf16.msra.mxu0 %v780
  %1014 = vmatprep.subr.bf16.mxu0 %v789
  %1015 = vmatpush1.bf16.msra.mxu0 %v788
  %1016 = vmatprep.subr.bf16.mxu0 %v797
  %1017 = vmatpush1.bf16.msra.mxu0 %v796
  %1018 = vmatprep.subr.bf16.mxu0 %v805
  %1019 = vmatpush1.bf16.msra.mxu0 %v804
  %1020 = vmatprep.subr.bf16.mxu0 %v813
  %1021 = vmatpush1.bf16.msra.mxu0 %v812
  %1022 = vmatprep.subr.bf16.mxu0 %v821
  %1023 = vmatpush1.bf16.msra.mxu0 %v820
  %1024 = vmatprep.subr.bf16.mxu0 %v829
  %1025 = vmatpush1.bf16.msra.mxu0 %v828
  %1026 = vmatprep.subr.bf16.mxu0 %v837
  %1027 = vmatpush1.bf16.msra.mxu0 %v836
  %1028 = vmatprep.subr.bf16.mxu0 %v845
  %1029 = vmatpush1.bf16.msra.mxu0 %v844
  %1030 = vmatprep.subr.bf16.mxu0 %v853
  %1031 = vmatpush1.bf16.msra.mxu0 %v852
  %1032 = vmatprep.subr.bf16.mxu0 %v861
  %1033 = vmatpush1.bf16.msra.mxu0 %v860
  %1034 = vmatprep.subr.bf16.mxu0 %v869
  %1035 = vmatpush1.bf16.msra.mxu0 %v868
  %1036 = vmatprep.mubr.bf16.mxu0 %v189
  %1037 = vmatmul.mubr.bf16.gmra.mrb[0].mxu0 %v188
  %v1038 = vpop.f32.mrb[0].mxu0
  %v1039 = vadd.f32 %v327, %v1038
  %v1040 = vpop.f32.mrb[0].mxu0
  %v1041 = vadd.f32 %v331, %v1040
  %v1042 = vpop.f32.mrb[0].mxu0
  %v1043 = vadd.f32 %v327, %v1042
  %v1044 = vpop.f32.mrb[0].mxu0
  %v1045 = vadd.f32 %v331, %v1044
  %1046 = vmatprep.mubr.bf16.mxu0 %v191
  %1047 = vmatmul.mubr.bf16.gmra.mrb[0].mxu0 %v190
  %v1048 = vpop.f32.mrb[0].mxu0
  %v1049 = vadd.f32 %v327, %v1048
  %v1050 = vpop.f32.mrb[0].mxu0
  %v1051 = vadd.f32 %v331, %v1050
  %v1052 = vpop.f32.mrb[0].mxu0
  %v1053 = vadd.f32 %v327, %v1052
  %v1054 = vpop.f32.mrb[0].mxu0
  %v1055 = vadd.f32 %v331, %v1054
  %1056 = vmatprep.mubr.bf16.mxu0 %v193
  %1057 = vmatmul.mubr.bf16.gmra.mrb[0].mxu0 %v192
  %v1058 = vpop.f32.mrb[0].mxu0
  %v1059 = vadd.f32 %v327, %v1058
  %v1060 = vpop.f32.mrb[0].mxu0
  %v1061 = vadd.f32 %v331, %v1060
  %v1062 = vpop.f32.mrb[0].mxu0
  %v1063 = vadd.f32 %v327, %v1062
  %v1064 = vpop.f32.mrb[0].mxu0
  %v1065 = vadd.f32 %v331, %v1064
  %1066 = vdwg.mxu0
  %1067 = vmatprep.subr.bf16.mxu0 %v751
  %1068 = vmatpush1.bf16.msra.mxu0 %v750
  %1069 = vmatprep.subr.bf16.mxu0 %v759
  %1070 = vmatpush1.bf16.msra.mxu0 %v758
  %1071 = vmatprep.subr.bf16.mxu0 %v767
  %1072 = vmatpush1.bf16.msra.mxu0 %v766
  %1073 = vmatprep.subr.bf16.mxu0 %v775
  %1074 = vmatpush1.bf16.msra.mxu0 %v774
  %1075 = vmatprep.subr.bf16.mxu0 %v783
  %1076 = vmatpush1.bf16.msra.mxu0 %v782
  %1077 = vmatprep.subr.bf16.mxu0 %v791
  %1078 = vmatpush1.bf16.msra.mxu0 %v790
  %1079 = vmatprep.subr.bf16.mxu0 %v799
  %1080 = vmatpush1.bf16.msra.mxu0 %v798
  %1081 = vmatprep.subr.bf16.mxu0 %v807
  %1082 = vmatpush1.bf16.msra.mxu0 %v806
  %1083 = vmatprep.subr.bf16.mxu0 %v815
  %1084 = vmatpush1.bf16.msra.mxu0 %v814
  %1085 = vmatprep.subr.bf16.mxu0 %v823
  %1086 = vmatpush1.bf16.msra.mxu0 %v822
  %1087 = vmatprep.subr.bf16.mxu0 %v831
  %1088 = vmatpush1.bf16.msra.mxu0 %v830
  %1089 = vmatprep.subr.bf16.mxu0 %v839
  %1090 = vmatpush1.bf16.msra.mxu0 %v838
  %1091 = vmatprep.subr.bf16.mxu0 %v847
  %1092 = vmatpush1.bf16.msra.mxu0 %v846
  %1093 = vmatprep.subr.bf16.mxu0 %v855
  %1094 = vmatpush1.bf16.msra.mxu0 %v854
  %1095 = vmatprep.subr.bf16.mxu0 %v863
  %1096 = vmatpush1.bf16.msra.mxu0 %v862
  %1097 = vmatprep.subr.bf16.mxu0 %v871
  %1098 = vmatpush1.bf16.msra.mxu0 %v870
  %1099 = vmatprep.mubr.bf16.mxu0 %v189
  %1100 = vmatmul.mubr.bf16.gmra.mrb[0].mxu0 %v188
  %v1101 = vpop.f32.mrb[0].mxu0
  %v1102 = vadd.f32 %v335, %v1101
  %v1103 = vpop.f32.mrb[0].mxu0
  %v1104 = vadd.f32 %v339, %v1103
  %v1105 = vpop.f32.mrb[0].mxu0
  %v1106 = vadd.f32 %v335, %v1105
  %v1107 = vpop.f32.mrb[0].mxu0
  %v1108 = vadd.f32 %v339, %v1107
  %1109 = vmatprep.mubr.bf16.mxu0 %v191
  %1110 = vmatmul.mubr.bf16.gmra.mrb[0].mxu0 %v190
  %v1111 = vpop.f32.mrb[0].mxu0
  %v1112 = vadd.f32 %v335, %v1111
  %v1113 = vpop.f32.mrb[0].mxu0
  %v1114 = vadd.f32 %v339, %v1113
  %v1115 = vpop.f32.mrb[0].mxu0
  %v1116 = vadd.f32 %v335, %v1115
  %v1117 = vpop.f32.mrb[0].mxu0
  %v1118 = vadd.f32 %v339, %v1117
  %1119 = vmatprep.mubr.bf16.mxu0 %v193
  %1120 = vmatmul.mubr.bf16.gmra.mrb[0].mxu0 %v192
  %v1121 = vpop.f32.mrb[0].mxu0
  %v1122 = vadd.f32 %v335, %v1121
  %v1123 = vpop.f32.mrb[0].mxu0
  %v1124 = vadd.f32 %v339, %v1123
  %v1125 = vpop.f32.mrb[0].mxu0
  %v1126 = vadd.f32 %v335, %v1125
  %v1127 = vpop.f32.mrb[0].mxu0
  %v1128 = vadd.f32 %v339, %v1127
  %1129 = vdwg.mxu0
  %1130 = vmatprep.subr.bf16.mxu0 %v753
  %1131 = vmatpush1.bf16.msra.mxu0 %v752
  %1132 = vmatprep.subr.bf16.mxu0 %v761
  %1133 = vmatpush1.bf16.msra.mxu0 %v760
  %1134 = vmatprep.subr.bf16.mxu0 %v769
  %1135 = vmatpush1.bf16.msra.mxu0 %v768
  %1136 = vmatprep.subr.bf16.mxu0 %v777
  %1137 = vmatpush1.bf16.msra.mxu0 %v776
  %1138 = vmatprep.subr.bf16.mxu0 %v785
  %1139 = vmatpush1.bf16.msra.mxu0 %v784
  %1140 = vmatprep.subr.bf16.mxu0 %v793
  %1141 = vmatpush1.bf16.msra.mxu0 %v792
  %1142 = vmatprep.subr.bf16.mxu0 %v801
  %1143 = vmatpush1.bf16.msra.mxu0 %v800
  %1144 = vmatprep.subr.bf16.mxu0 %v809
  %1145 = vmatpush1.bf16.msra.mxu0 %v808
  %1146 = vmatprep.subr.bf16.mxu0 %v817
  %1147 = vmatpush1.bf16.msra.mxu0 %v816
  %1148 = vmatprep.subr.bf16.mxu0 %v825
  %1149 = vmatpush1.bf16.msra.mxu0 %v824
  %1150 = vmatprep.subr.bf16.mxu0 %v833
  %1151 = vmatpush1.bf16.msra.mxu0 %v832
  %1152 = vmatprep.subr.bf16.mxu0 %v841
  %1153 = vmatpush1.bf16.msra.mxu0 %v840
  %1154 = vmatprep.subr.bf16.mxu0 %v849
  %1155 = vmatpush1.bf16.msra.mxu0 %v848
  %1156 = vmatprep.subr.bf16.mxu0 %v857
  %1157 = vmatpush1.bf16.msra.mxu0 %v856
  %1158 = vmatprep.subr.bf16.mxu0 %v865
  %1159 = vmatpush1.bf16.msra.mxu0 %v864
  %1160 = vmatprep.subr.bf16.mxu0 %v873
  %1161 = vmatpush1.bf16.msra.mxu0 %v872
  %1162 = vmatprep.mubr.bf16.mxu0 %v189
  %1163 = vmatmul.mubr.bf16.gmra.mrb[0].mxu0 %v188
  %v1164 = vpop.f32.mrb[0].mxu0
  %v1165 = vadd.f32 %v343, %v1164
  %v1166 = vpop.f32.mrb[0].mxu0
  %v1167 = vadd.f32 %v347, %v1166
  %v1168 = vpop.f32.mrb[0].mxu0
  %v1169 = vadd.f32 %v343, %v1168
  %v1170 = vpop.f32.mrb[0].mxu0
  %v1171 = vadd.f32 %v347, %v1170
  %1172 = vmatprep.mubr.bf16.mxu0 %v191
  %1173 = vmatmul.mubr.bf16.gmra.mrb[0].mxu0 %v190
  %v1174 = vpop.f32.mrb[0].mxu0
  %v1175 = vadd.f32 %v343, %v1174
  %v1176 = vpop.f32.mrb[0].mxu0
  %v1177 = vadd.f32 %v347, %v1176
  %v1178 = vpop.f32.mrb[0].mxu0
  %v1179 = vadd.f32 %v343, %v1178
  %v1180 = vpop.f32.mrb[0].mxu0
  %v1181 = vadd.f32 %v347, %v1180
  %1182 = vmatprep.mubr.bf16.mxu0 %v193
  %1183 = vmatmul.mubr.bf16.gmra.mrb[0].mxu0 %v192
  %v1184 = vpop.f32.mrb[0].mxu0
  %v1185 = vadd.f32 %v343, %v1184
  %v1186 = vpop.f32.mrb[0].mxu0
  %v1187 = vadd.f32 %v347, %v1186
  %v1188 = vpop.f32.mrb[0].mxu0
  %v1189 = vadd.f32 %v343, %v1188
  %v1190 = vpop.f32.mrb[0].mxu0
  %v1191 = vadd.f32 %v347, %v1190
  %1192 = vdwg.mxu0
  %1193 = vmatprep.subr.bf16.mxu0 %v755
  %1194 = vmatpush1.bf16.msra.mxu0 %v754
  %1195 = vmatprep.subr.bf16.mxu0 %v763
  %1196 = vmatpush1.bf16.msra.mxu0 %v762
  %1197 = vmatprep.subr.bf16.mxu0 %v771
  %1198 = vmatpush1.bf16.msra.mxu0 %v770
  %1199 = vmatprep.subr.bf16.mxu0 %v779
  %1200 = vmatpush1.bf16.msra.mxu0 %v778
  %1201 = vmatprep.subr.bf16.mxu0 %v787
  %1202 = vmatpush1.bf16.msra.mxu0 %v786
  %1203 = vmatprep.subr.bf16.mxu0 %v795
  %1204 = vmatpush1.bf16.msra.mxu0 %v794
  %1205 = vmatprep.subr.bf16.mxu0 %v803
  %1206 = vmatpush1.bf16.msra.mxu0 %v802
  %1207 = vmatprep.subr.bf16.mxu0 %v811
  %1208 = vmatpush1.bf16.msra.mxu0 %v810
  %1209 = vmatprep.subr.bf16.mxu0 %v819
  %1210 = vmatpush1.bf16.msra.mxu0 %v818
  %1211 = vmatprep.subr.bf16.mxu0 %v827
  %1212 = vmatpush1.bf16.msra.mxu0 %v826
  %1213 = vmatprep.subr.bf16.mxu0 %v835
  %1214 = vmatpush1.bf16.msra.mxu0 %v834
  %1215 = vmatprep.subr.bf16.mxu0 %v843
  %1216 = vmatpush1.bf16.msra.mxu0 %v842
  %1217 = vmatprep.subr.bf16.mxu0 %v851
  %1218 = vmatpush1.bf16.msra.mxu0 %v850
  %1219 = vmatprep.subr.bf16.mxu0 %v859
  %1220 = vmatpush1.bf16.msra.mxu0 %v858
  %1221 = vmatprep.subr.bf16.mxu0 %v867
  %1222 = vmatpush1.bf16.msra.mxu0 %v866
  %1223 = vmatprep.subr.bf16.mxu0 %v875
  %1224 = vmatpush1.bf16.msra.mxu0 %v874
  %1225 = vmatprep.mubr.bf16.mxu0 %v189
  %1226 = vmatmul.mubr.bf16.gmra.mrb[0].mxu0 %v188
  %v1227 = vpop.f32.mrb[0].mxu0
  %v1228 = vadd.f32 %v351, %v1227
  %v1229 = vpop.f32.mrb[0].mxu0
  %v1230 = vadd.f32 %v355, %v1229
  %v1231 = vpop.f32.mrb[0].mxu0
  %v1232 = vadd.f32 %v351, %v1231
  %v1233 = vpop.f32.mrb[0].mxu0
  %v1234 = vadd.f32 %v355, %v1233
  %1235 = vmatprep.mubr.bf16.mxu0 %v191
  %1236 = vmatmul.mubr.bf16.gmra.mrb[0].mxu0 %v190
  %v1237 = vpop.f32.mrb[0].mxu0
  %v1238 = vadd.f32 %v351, %v1237
  %v1239 = vpop.f32.mrb[0].mxu0
  %v1240 = vadd.f32 %v355, %v1239
  %v1241 = vpop.f32.mrb[0].mxu0
  %v1242 = vadd.f32 %v351, %v1241
  %v1243 = vpop.f32.mrb[0].mxu0
  %v1244 = vadd.f32 %v355, %v1243
  %1245 = vmatprep.mubr.bf16.mxu0 %v193
  %1246 = vmatmul.mubr.bf16.gmra.mrb[0].mxu0 %v192
  %v1247 = vpop.f32.mrb[0].mxu0
  %v1248 = vadd.f32 %v351, %v1247
  %v1249 = vpop.f32.mrb[0].mxu0
  %v1250 = vadd.f32 %v355, %v1249
  %v1251 = vpop.f32.mrb[0].mxu0
  %v1252 = vadd.f32 %v351, %v1251
  %v1253 = vpop.f32.mrb[0].mxu0
  %v1254 = vadd.f32 %v355, %v1253
  %1255 = vdwg.mxu0
  %v1256 = vmul.f32 %v1039, 0.5
  %v1257 = vmul.f32 %v1041, 0.5
  %v1258 = vmul.f32 %v1102, 0.5
  %v1259 = vmul.f32 %v1104, 0.5
  %v1260 = vmul.f32 %v1165, 0.5
  %v1261 = vmul.f32 %v1167, 0.5
  %v1262 = vmul.f32 %v1228, 0.5
  %v1263 = vmul.f32 %v1230, 0.5
  %v1264 = vmul.f32 %v1043, 0.5
  %v1265 = vmul.f32 %v1045, 0.5
  %v1266 = vmul.f32 %v1106, 0.5
  %v1267 = vmul.f32 %v1108, 0.5
  %v1268 = vmul.f32 %v1169, 0.5
  %v1269 = vmul.f32 %v1171, 0.5
  %v1270 = vmul.f32 %v1232, 0.5
  %v1271 = vmul.f32 %v1234, 0.5
  %v1272 = vmul.f32 %v1049, 0.5
  %v1273 = vmul.f32 %v1051, 0.5
  %v1274 = vmul.f32 %v1112, 0.5
  %v1275 = vmul.f32 %v1114, 0.5
  %v1276 = vmul.f32 %v1175, 0.5
  %v1277 = vmul.f32 %v1177, 0.5
  %v1278 = vmul.f32 %v1238, 0.5
  %v1279 = vmul.f32 %v1240, 0.5
  %v1280 = vmul.f32 %v1053, 0.5
  %v1281 = vmul.f32 %v1055, 0.5
  %v1282 = vmul.f32 %v1116, 0.5
  %v1283 = vmul.f32 %v1118, 0.5
  %v1284 = vmul.f32 %v1179, 0.5
  %v1285 = vmul.f32 %v1181, 0.5
  %v1286 = vmul.f32 %v1242, 0.5
  %v1287 = vmul.f32 %v1244, 0.5
  %v1288 = vmul.f32 %v1059, 0.5
  %v1289 = vmul.f32 %v1061, 0.5
  %v1290 = vmul.f32 %v1122, 0.5
  %v1291 = vmul.f32 %v1124, 0.5
  %v1292 = vmul.f32 %v1185, 0.5
  %v1293 = vmul.f32 %v1187, 0.5
  %v1294 = vmul.f32 %v1248, 0.5
  %v1295 = vmul.f32 %v1250, 0.5
  %v1296 = vmul.f32 %v1063, 0.5
  %v1297 = vmul.f32 %v1065, 0.5
  %v1298 = vmul.f32 %v1126, 0.5
  %v1299 = vmul.f32 %v1128, 0.5
  %v1300 = vmul.f32 %v1189, 0.5
  %v1301 = vmul.f32 %v1191, 0.5
  %v1302 = vmul.f32 %v1252, 0.5
  %v1303 = vmul.f32 %v1254, 0.5
  %v1304 = vmul.f32 %v1039, 0.044715
  %v1305 = vmul.f32 %v1041, 0.044715
  %v1306 = vmul.f32 %v1102, 0.044715
  %v1307 = vmul.f32 %v1104, 0.044715
  %v1308 = vmul.f32 %v1165, 0.044715
  %v1309 = vmul.f32 %v1167, 0.044715
  %v1310 = vmul.f32 %v1228, 0.044715
  %v1311 = vmul.f32 %v1230, 0.044715
  %v1312 = vmul.f32 %v1043, 0.044715
  %v1313 = vmul.f32 %v1045, 0.044715
  %v1314 = vmul.f32 %v1106, 0.044715
  %v1315 = vmul.f32 %v1108, 0.044715
  %v1316 = vmul.f32 %v1169, 0.044715
  %v1317 = vmul.f32 %v1171, 0.044715
  %v1318 = vmul.f32 %v1232, 0.044715
  %v1319 = vmul.f32 %v1234, 0.044715
  %v1320 = vmul.f32 %v1049, 0.044715
  %v1321 = vmul.f32 %v1051, 0.044715
  %v1322 = vmul.f32 %v1112, 0.044715
  %v1323 = vmul.f32 %v1114, 0.044715
  %v1324 = vmul.f32 %v1175, 0.044715
  %v1325 = vmul.f32 %v1177, 0.044715
  %v1326 = vmul.f32 %v1238, 0.044715
  %v1327 = vmul.f32 %v1240, 0.044715
  %v1328 = vmul.f32 %v1053, 0.044715
  %v1329 = vmul.f32 %v1055, 0.044715
  %v1330 = vmul.f32 %v1116, 0.044715
  %v1331 = vmul.f32 %v1118, 0.044715
  %v1332 = vmul.f32 %v1179, 0.044715
  %v1333 = vmul.f32 %v1181, 0.044715
  %v1334 = vmul.f32 %v1242, 0.044715
  %v1335 = vmul.f32 %v1244, 0.044715
  %v1336 = vmul.f32 %v1059, 0.044715
  %v1337 = vmul.f32 %v1061, 0.044715
  %v1338 = vmul.f32 %v1122, 0.044715
  %v1339 = vmul.f32 %v1124, 0.044715
  %v1340 = vmul.f32 %v1185, 0.044715
  %v1341 = vmul.f32 %v1187, 0.044715
  %v1342 = vmul.f32 %v1248, 0.044715
  %v1343 = vmul.f32 %v1250, 0.044715
  %v1344 = vmul.f32 %v1063, 0.044715
  %v1345 = vmul.f32 %v1065, 0.044715
  %v1346 = vmul.f32 %v1126, 0.044715
  %v1347 = vmul.f32 %v1128, 0.044715
  %v1348 = vmul.f32 %v1189, 0.044715
  %v1349 = vmul.f32 %v1191, 0.044715
  %v1350 = vmul.f32 %v1252, 0.044715
  %v1351 = vmul.f32 %v1254, 0.044715
  %v1352 = vmul.f32 %v1304, %v1039
  %v1353 = vmul.f32 %v1305, %v1041
  %v1354 = vmul.f32 %v1306, %v1102
  %v1355 = vmul.f32 %v1307, %v1104
  %v1356 = vmul.f32 %v1308, %v1165
  %v1357 = vmul.f32 %v1309, %v1167
  %v1358 = vmul.f32 %v1310, %v1228
  %v1359 = vmul.f32 %v1311, %v1230
  %v1360 = vmul.f32 %v1312, %v1043
  %v1361 = vmul.f32 %v1313, %v1045
  %v1362 = vmul.f32 %v1314, %v1106
  %v1363 = vmul.f32 %v1315, %v1108
  %v1364 = vmul.f32 %v1316, %v1169
  %v1365 = vmul.f32 %v1317, %v1171
  %v1366 = vmul.f32 %v1318, %v1232
  %v1367 = vmul.f32 %v1319, %v1234
  %v1368 = vmul.f32 %v1320, %v1049
  %v1369 = vmul.f32 %v1321, %v1051
  %v1370 = vmul.f32 %v1322, %v1112
  %v1371 = vmul.f32 %v1323, %v1114
  %v1372 = vmul.f32 %v1324, %v1175
  %v1373 = vmul.f32 %v1325, %v1177
  %v1374 = vmul.f32 %v1326, %v1238
  %v1375 = vmul.f32 %v1327, %v1240
  %v1376 = vmul.f32 %v1328, %v1053
  %v1377 = vmul.f32 %v1329, %v1055
  %v1378 = vmul.f32 %v1330, %v1116
  %v1379 = vmul.f32 %v1331, %v1118
  %v1380 = vmul.f32 %v1332, %v1179
  %v1381 = vmul.f32 %v1333, %v1181
  %v1382 = vmul.f32 %v1334, %v1242
  %v1383 = vmul.f32 %v1335, %v1244
  %v1384 = vmul.f32 %v1336, %v1059
  %v1385 = vmul.f32 %v1337, %v1061
  %v1386 = vmul.f32 %v1338, %v1122
  %v1387 = vmul.f32 %v1339, %v1124
  %v1388 = vmul.f32 %v1340, %v1185
  %v1389 = vmul.f32 %v1341, %v1187
  %v1390 = vmul.f32 %v1342, %v1248
  %v1391 = vmul.f32 %v1343, %v1250
  %v1392 = vmul.f32 %v1344, %v1063
  %v1393 = vmul.f32 %v1345, %v1065
  %v1394 = vmul.f32 %v1346, %v1126
  %v1395 = vmul.f32 %v1347, %v1128
  %v1396 = vmul.f32 %v1348, %v1189
  %v1397 = vmul.f32 %v1349, %v1191
  %v1398 = vmul.f32 %v1350, %v1252
  %v1399 = vmul.f32 %v1351, %v1254
  %v1400 = vmul.f32 %v1352, %v1039
  %v1401 = vmul.f32 %v1353, %v1041
  %v1402 = vmul.f32 %v1354, %v1102
  %v1403 = vmul.f32 %v1355, %v1104
  %v1404 = vmul.f32 %v1356, %v1165
  %v1405 = vmul.f32 %v1357, %v1167
  %v1406 = vmul.f32 %v1358, %v1228
  %v1407 = vmul.f32 %v1359, %v1230
  %v1408 = vmul.f32 %v1360, %v1043
  %v1409 = vmul.f32 %v1361, %v1045
  %v1410 = vmul.f32 %v1362, %v1106
  %v1411 = vmul.f32 %v1363, %v1108
  %v1412 = vmul.f32 %v1364, %v1169
  %v1413 = vmul.f32 %v1365, %v1171
  %v1414 = vmul.f32 %v1366, %v1232
  %v1415 = vmul.f32 %v1367, %v1234
  %v1416 = vmul.f32 %v1368, %v1049
  %v1417 = vmul.f32 %v1369, %v1051
  %v1418 = vmul.f32 %v1370, %v1112
  %v1419 = vmul.f32 %v1371, %v1114
  %v1420 = vmul.f32 %v1372, %v1175
  %v1421 = vmul.f32 %v1373, %v1177
  %v1422 = vmul.f32 %v1374, %v1238
  %v1423 = vmul.f32 %v1375, %v1240
  %v1424 = vmul.f32 %v1376, %v1053
  %v1425 = vmul.f32 %v1377, %v1055
  %v1426 = vmul.f32 %v1378, %v1116
  %v1427 = vmul.f32 %v1379, %v1118
  %v1428 = vmul.f32 %v1380, %v1179
  %v1429 = vmul.f32 %v1381, %v1181
  %v1430 = vmul.f32 %v1382, %v1242
  %v1431 = vmul.f32 %v1383, %v1244
  %v1432 = vmul.f32 %v1384, %v1059
  %v1433 = vmul.f32 %v1385, %v1061
  %v1434 = vmul.f32 %v1386, %v1122
  %v1435 = vmul.f32 %v1387, %v1124
  %v1436 = vmul.f32 %v1388, %v1185
  %v1437 = vmul.f32 %v1389, %v1187
  %v1438 = vmul.f32 %v1390, %v1248
  %v1439 = vmul.f32 %v1391, %v1250
  %v1440 = vmul.f32 %v1392, %v1063
  %v1441 = vmul.f32 %v1393, %v1065
  %v1442 = vmul.f32 %v1394, %v1126
  %v1443 = vmul.f32 %v1395, %v1128
  %v1444 = vmul.f32 %v1396, %v1189
  %v1445 = vmul.f32 %v1397, %v1191
  %v1446 = vmul.f32 %v1398, %v1252
  %v1447 = vmul.f32 %v1399, %v1254
  %v1448 = vadd.f32 %v1039, %v1400
  %v1449 = vadd.f32 %v1041, %v1401
  %v1450 = vadd.f32 %v1102, %v1402
  %v1451 = vadd.f32 %v1104, %v1403
  %v1452 = vadd.f32 %v1165, %v1404
  %v1453 = vadd.f32 %v1167, %v1405
  %v1454 = vadd.f32 %v1228, %v1406
  %v1455 = vadd.f32 %v1230, %v1407
  %v1456 = vadd.f32 %v1043, %v1408
  %v1457 = vadd.f32 %v1045, %v1409
  %v1458 = vadd.f32 %v1106, %v1410
  %v1459 = vadd.f32 %v1108, %v1411
  %v1460 = vadd.f32 %v1169, %v1412
  %v1461 = vadd.f32 %v1171, %v1413
  %v1462 = vadd.f32 %v1232, %v1414
  %v1463 = vadd.f32 %v1234, %v1415
  %v1464 = vadd.f32 %v1049, %v1416
  %v1465 = vadd.f32 %v1051, %v1417
  %v1466 = vadd.f32 %v1112, %v1418
  %v1467 = vadd.f32 %v1114, %v1419
  %v1468 = vadd.f32 %v1175, %v1420
  %v1469 = vadd.f32 %v1177, %v1421
  %v1470 = vadd.f32 %v1238, %v1422
  %v1471 = vadd.f32 %v1240, %v1423
  %v1472 = vadd.f32 %v1053, %v1424
  %v1473 = vadd.f32 %v1055, %v1425
  %v1474 = vadd.f32 %v1116, %v1426
  %v1475 = vadd.f32 %v1118, %v1427
  %v1476 = vadd.f32 %v1179, %v1428
  %v1477 = vadd.f32 %v1181, %v1429
  %v1478 = vadd.f32 %v1242, %v1430
  %v1479 = vadd.f32 %v1244, %v1431
  %v1480 = vadd.f32 %v1059, %v1432
  %v1481 = vadd.f32 %v1061, %v1433
  %v1482 = vadd.f32 %v1122, %v1434
  %v1483 = vadd.f32 %v1124, %v1435
  %v1484 = vadd.f32 %v1185, %v1436
  %v1485 = vadd.f32 %v1187, %v1437
  %v1486 = vadd.f32 %v1248, %v1438
  %v1487 = vadd.f32 %v1250, %v1439
  %v1488 = vadd.f32 %v1063, %v1440
  %v1489 = vadd.f32 %v1065, %v1441
  %v1490 = vadd.f32 %v1126, %v1442
  %v1491 = vadd.f32 %v1128, %v1443
  %v1492 = vadd.f32 %v1189, %v1444
  %v1493 = vadd.f32 %v1191, %v1445
  %v1494 = vadd.f32 %v1252, %v1446
  %v1495 = vadd.f32 %v1254, %v1447
  %v1496 = vmul.f32 %v1448, 0.7978846
  %v1497 = vmul.f32 %v1449, 0.7978846
  %v1498 = vmul.f32 %v1450, 0.7978846
  %v1499 = vmul.f32 %v1451, 0.7978846
  %v1500 = vmul.f32 %v1452, 0.7978846
  %v1501 = vmul.f32 %v1453, 0.7978846
  %v1502 = vmul.f32 %v1454, 0.7978846
  %v1503 = vmul.f32 %v1455, 0.7978846
  %v1504 = vmul.f32 %v1456, 0.7978846
  %v1505 = vmul.f32 %v1457, 0.7978846
  %v1506 = vmul.f32 %v1458, 0.7978846
  %v1507 = vmul.f32 %v1459, 0.7978846
  %v1508 = vmul.f32 %v1460, 0.7978846
  %v1509 = vmul.f32 %v1461, 0.7978846
  %v1510 = vmul.f32 %v1462, 0.7978846
  %v1511 = vmul.f32 %v1463, 0.7978846
  %v1512 = vmul.f32 %v1464, 0.7978846
  %v1513 = vmul.f32 %v1465, 0.7978846
  %v1514 = vmul.f32 %v1466, 0.7978846
  %v1515 = vmul.f32 %v1467, 0.7978846
  %v1516 = vmul.f32 %v1468, 0.7978846
  %v1517 = vmul.f32 %v1469, 0.7978846
  %v1518 = vmul.f32 %v1470, 0.7978846
  %v1519 = vmul.f32 %v1471, 0.7978846
  %v1520 = vmul.f32 %v1472, 0.7978846
  %v1521 = vmul.f32 %v1473, 0.7978846
  %v1522 = vmul.f32 %v1474, 0.7978846
  %v1523 = vmul.f32 %v1475, 0.7978846
  %v1524 = vmul.f32 %v1476, 0.7978846
  %v1525 = vmul.f32 %v1477, 0.7978846
  %v1526 = vmul.f32 %v1478, 0.7978846
  %v1527 = vmul.f32 %v1479, 0.7978846
  %v1528 = vmul.f32 %v1480, 0.7978846
  %v1529 = vmul.f32 %v1481, 0.7978846
  %v1530 = vmul.f32 %v1482, 0.7978846
  %v1531 = vmul.f32 %v1483, 0.7978846
  %v1532 = vmul.f32 %v1484, 0.7978846
  %v1533 = vmul.f32 %v1485, 0.7978846
  %v1534 = vmul.f32 %v1486, 0.7978846
  %v1535 = vmul.f32 %v1487, 0.7978846
  %v1536 = vmul.f32 %v1488, 0.7978846
  %v1537 = vmul.f32 %v1489, 0.7978846
  %v1538 = vmul.f32 %v1490, 0.7978846
  %v1539 = vmul.f32 %v1491, 0.7978846
  %v1540 = vmul.f32 %v1492, 0.7978846
  %v1541 = vmul.f32 %v1493, 0.7978846
  %v1542 = vmul.f32 %v1494, 0.7978846
  %v1543 = vmul.f32 %v1495, 0.7978846
  %v1544 = vtanh.pop %v1496
  %v1545 = vtanh.pop %v1497
  %v1546 = vtanh.pop %v1498
  %v1547 = vtanh.pop %v1499
  %v1548 = vtanh.pop %v1500
  %v1549 = vtanh.pop %v1501
  %v1550 = vtanh.pop %v1502
  %v1551 = vtanh.pop %v1503
  %v1552 = vtanh.pop %v1504
  %v1553 = vtanh.pop %v1505
  %v1554 = vtanh.pop %v1506
  %v1555 = vtanh.pop %v1507
  %v1556 = vtanh.pop %v1508
  %v1557 = vtanh.pop %v1509
  %v1558 = vtanh.pop %v1510
  %v1559 = vtanh.pop %v1511
  %v1560 = vtanh.pop %v1512
  %v1561 = vtanh.pop %v1513
  %v1562 = vtanh.pop %v1514
  %v1563 = vtanh.pop %v1515
  %v1564 = vtanh.pop %v1516
  %v1565 = vtanh.pop %v1517
  %v1566 = vtanh.pop %v1518
  %v1567 = vtanh.pop %v1519
  %v1568 = vtanh.pop %v1520
  %v1569 = vtanh.pop %v1521
  %v1570 = vtanh.pop %v1522
  %v1571 = vtanh.pop %v1523
  %v1572 = vtanh.pop %v1524
  %v1573 = vtanh.pop %v1525
  %v1574 = vtanh.pop %v1526
  %v1575 = vtanh.pop %v1527
  %v1576 = vtanh.pop %v1528
  %v1577 = vtanh.pop %v1529
  %v1578 = vtanh.pop %v1530
  %v1579 = vtanh.pop %v1531
  %v1580 = vtanh.pop %v1532
  %v1581 = vtanh.pop %v1533
  %v1582 = vtanh.pop %v1534
  %v1583 = vtanh.pop %v1535
  %v1584 = vtanh.pop %v1536
  %v1585 = vtanh.pop %v1537
  %v1586 = vtanh.pop %v1538
  %v1587 = vtanh.pop %v1539
  %v1588 = vtanh.pop %v1540
  %v1589 = vtanh.pop %v1541
  %v1590 = vtanh.pop %v1542
  %v1591 = vtanh.pop %v1543
  %v1592 = vadd.f32 %v1544, 1.0
  %v1593 = vadd.f32 %v1545, 1.0
  %v1594 = vadd.f32 %v1546, 1.0
  %v1595 = vadd.f32 %v1547, 1.0
  %v1596 = vadd.f32 %v1548, 1.0
  %v1597 = vadd.f32 %v1549, 1.0
  %v1598 = vadd.f32 %v1550, 1.0
  %v1599 = vadd.f32 %v1551, 1.0
  %v1600 = vadd.f32 %v1552, 1.0
  %v1601 = vadd.f32 %v1553, 1.0
  %v1602 = vadd.f32 %v1554, 1.0
  %v1603 = vadd.f32 %v1555, 1.0
  %v1604 = vadd.f32 %v1556, 1.0
  %v1605 = vadd.f32 %v1557, 1.0
  %v1606 = vadd.f32 %v1558, 1.0
  %v1607 = vadd.f32 %v1559, 1.0
  %v1608 = vadd.f32 %v1560, 1.0
  %v1609 = vadd.f32 %v1561, 1.0
  %v1610 = vadd.f32 %v1562, 1.0
  %v1611 = vadd.f32 %v1563, 1.0
  %v1612 = vadd.f32 %v1564, 1.0
  %v1613 = vadd.f32 %v1565, 1.0
  %v1614 = vadd.f32 %v1566, 1.0
  %v1615 = vadd.f32 %v1567, 1.0
  %v1616 = vadd.f32 %v1568, 1.0
  %v1617 = vadd.f32 %v1569, 1.0
  %v1618 = vadd.f32 %v1570, 1.0
  %v1619 = vadd.f32 %v1571, 1.0
  %v1620 = vadd.f32 %v1572, 1.0
  %v1621 = vadd.f32 %v1573, 1.0
  %v1622 = vadd.f32 %v1574, 1.0
  %v1623 = vadd.f32 %v1575, 1.0
  %v1624 = vadd.f32 %v1576, 1.0
  %v1625 = vadd.f32 %v1577, 1.0
  %v1626 = vadd.f32 %v1578, 1.0
  %v1627 = vadd.f32 %v1579, 1.0
  %v1628 = vadd.f32 %v1580, 1.0
  %v1629 = vadd.f32 %v1581, 1.0
  %v1630 = vadd.f32 %v1582, 1.0
  %v1631 = vadd.f32 %v1583, 1.0
  %v1632 = vadd.f32 %v1584, 1.0
  %v1633 = vadd.f32 %v1585, 1.0
  %v1634 = vadd.f32 %v1586, 1.0
  %v1635 = vadd.f32 %v1587, 1.0
  %v1636 = vadd.f32 %v1588, 1.0
  %v1637 = vadd.f32 %v1589, 1.0
  %v1638 = vadd.f32 %v1590, 1.0
  %v1639 = vadd.f32 %v1591, 1.0
  %v1640 = vmul.f32 %v1256, %v1592
  %v1641 = vmul.f32 %v1257, %v1593
  %v1642 = vmul.f32 %v1258, %v1594
  %v1643 = vmul.f32 %v1259, %v1595
  %v1644 = vmul.f32 %v1260, %v1596
  %v1645 = vmul.f32 %v1261, %v1597
  %v1646 = vmul.f32 %v1262, %v1598
  %v1647 = vmul.f32 %v1263, %v1599
  %v1648 = vmul.f32 %v1264, %v1600
  %v1649 = vmul.f32 %v1265, %v1601
  %v1650 = vmul.f32 %v1266, %v1602
  %v1651 = vmul.f32 %v1267, %v1603
  %v1652 = vmul.f32 %v1268, %v1604
  %v1653 = vmul.f32 %v1269, %v1605
  %v1654 = vmul.f32 %v1270, %v1606
  %v1655 = vmul.f32 %v1271, %v1607
  %v1656 = vmul.f32 %v1272, %v1608
  %v1657 = vmul.f32 %v1273, %v1609
  %v1658 = vmul.f32 %v1274, %v1610
  %v1659 = vmul.f32 %v1275, %v1611
  %v1660 = vmul.f32 %v1276, %v1612
  %v1661 = vmul.f32 %v1277, %v1613
  %v1662 = vmul.f32 %v1278, %v1614
  %v1663 = vmul.f32 %v1279, %v1615
  %v1664 = vmul.f32 %v1280, %v1616
  %v1665 = vmul.f32 %v1281, %v1617
  %v1666 = vmul.f32 %v1282, %v1618
  %v1667 = vmul.f32 %v1283, %v1619
  %v1668 = vmul.f32 %v1284, %v1620
  %v1669 = vmul.f32 %v1285, %v1621
  %v1670 = vmul.f32 %v1286, %v1622
  %v1671 = vmul.f32 %v1287, %v1623
  %v1672 = vmul.f32 %v1288, %v1624
  %v1673 = vmul.f32 %v1289, %v1625
  %v1674 = vmul.f32 %v1290, %v1626
  %v1675 = vmul.f32 %v1291, %v1627
  %v1676 = vmul.f32 %v1292, %v1628
  %v1677 = vmul.f32 %v1293, %v1629
  %v1678 = vmul.f32 %v1294, %v1630
  %v1679 = vmul.f32 %v1295, %v1631
  %v1680 = vmul.f32 %v1296, %v1632
  %v1681 = vmul.f32 %v1297, %v1633
  %v1682 = vmul.f32 %v1298, %v1634
  %v1683 = vmul.f32 %v1299, %v1635
  %v1684 = vmul.f32 %v1300, %v1636
  %v1685 = vmul.f32 %v1301, %v1637
  %v1686 = vmul.f32 %v1302, %v1638
  %v1687 = vmul.f32 %v1303, %v1639
  %v1688 = vpack.c.bf16 %v1648, %v1640
  %v1689 = vpack.c.bf16 %v1649, %v1641
  %v1690 = vpack.c.bf16 %v1650, %v1642
  %v1691 = vpack.c.bf16 %v1651, %v1643
  %v1692 = vpack.c.bf16 %v1652, %v1644
  %v1693 = vpack.c.bf16 %v1653, %v1645
  %v1694 = vpack.c.bf16 %v1654, %v1646
  %v1695 = vpack.c.bf16 %v1655, %v1647
  %v1696 = vpack.c.bf16 %v1664, %v1656
  %v1697 = vpack.c.bf16 %v1665, %v1657
  %v1698 = vpack.c.bf16 %v1666, %v1658
  %v1699 = vpack.c.bf16 %v1667, %v1659
  %v1700 = vpack.c.bf16 %v1668, %v1660
  %v1701 = vpack.c.bf16 %v1669, %v1661
  %v1702 = vpack.c.bf16 %v1670, %v1662
  %v1703 = vpack.c.bf16 %v1671, %v1663
  %v1704 = vpack.c.bf16 %v1680, %v1672
  %v1705 = vpack.c.bf16 %v1681, %v1673
  %v1706 = vpack.c.bf16 %v1682, %v1674
  %v1707 = vpack.c.bf16 %v1683, %v1675
  %v1708 = vpack.c.bf16 %v1684, %v1676
  %v1709 = vpack.c.bf16 %v1685, %v1677
  %v1710 = vpack.c.bf16 %v1686, %v1678
  %v1711 = vpack.c.bf16 %v1687, %v1679
  %v1736 = vunpack.c.l.b16 %v1688
  %v1737 = vunpack.c.l.b16 %v1689
  %v1738 = vunpack.c.l.b16 %v1690
  %v1739 = vunpack.c.l.b16 %v1691
  %v1740 = vunpack.c.l.b16 %v1692
  %v1741 = vunpack.c.l.b16 %v1693
  %v1742 = vunpack.c.l.b16 %v1694
  %v1743 = vunpack.c.l.b16 %v1695
  %v1744 = vunpack.c.h.b16 %v1688
  %v1745 = vunpack.c.h.b16 %v1689
  %v1746 = vunpack.c.h.b16 %v1690
  %v1747 = vunpack.c.h.b16 %v1691
  %v1748 = vunpack.c.h.b16 %v1692
  %v1749 = vunpack.c.h.b16 %v1693
  %v1750 = vunpack.c.h.b16 %v1694
  %v1751 = vunpack.c.h.b16 %v1695
  %v1752 = vunpack.c.l.b16 %v1696
  %v1753 = vunpack.c.l.b16 %v1697
  %v1754 = vunpack.c.l.b16 %v1698
  %v1755 = vunpack.c.l.b16 %v1699
  %v1756 = vunpack.c.l.b16 %v1700
  %v1757 = vunpack.c.l.b16 %v1701
  %v1758 = vunpack.c.l.b16 %v1702
  %v1759 = vunpack.c.l.b16 %v1703
  %v1760 = vunpack.c.h.b16 %v1696
  %v1761 = vunpack.c.h.b16 %v1697
  %v1762 = vunpack.c.h.b16 %v1698
  %v1763 = vunpack.c.h.b16 %v1699
  %v1764 = vunpack.c.h.b16 %v1700
  %v1765 = vunpack.c.h.b16 %v1701
  %v1766 = vunpack.c.h.b16 %v1702
  %v1767 = vunpack.c.h.b16 %v1703
  %v1768 = vunpack.c.l.b16 %v1704
  %v1769 = vunpack.c.l.b16 %v1705
  %v1770 = vunpack.c.l.b16 %v1706
  %v1771 = vunpack.c.l.b16 %v1707
  %v1772 = vunpack.c.l.b16 %v1708
  %v1773 = vunpack.c.l.b16 %v1709
  %v1774 = vunpack.c.l.b16 %v1710
  %v1775 = vunpack.c.l.b16 %v1711
  %v1776 = vunpack.c.h.b16 %v1704
  %v1777 = vunpack.c.h.b16 %v1705
  %v1778 = vunpack.c.h.b16 %v1706
  %v1779 = vunpack.c.h.b16 %v1707
  %v1780 = vunpack.c.h.b16 %v1708
  %v1781 = vunpack.c.h.b16 %v1709
  %v1782 = vunpack.c.h.b16 %v1710
  %v1783 = vunpack.c.h.b16 %v1711
  %v1784 = vpack.c.b16 %v1737, %v1736
  %v1785 = vpack.c.b16 %v1739, %v1738
  %v1786 = vpack.c.b16 %v1741, %v1740
  %v1787 = vpack.c.b16 %v1743, %v1742
  %v1788 = vpack.c.b16 %v1745, %v1744
  %v1789 = vpack.c.b16 %v1747, %v1746
  %v1790 = vpack.c.b16 %v1749, %v1748
  %v1791 = vpack.c.b16 %v1751, %v1750
  %v1792 = vpack.c.b16 %v1753, %v1752
  %v1793 = vpack.c.b16 %v1755, %v1754
  %v1794 = vpack.c.b16 %v1757, %v1756
  %v1795 = vpack.c.b16 %v1759, %v1758
  %v1796 = vpack.c.b16 %v1761, %v1760
  %v1797 = vpack.c.b16 %v1763, %v1762
  %v1798 = vpack.c.b16 %v1765, %v1764
  %v1799 = vpack.c.b16 %v1767, %v1766
  %v1800 = vpack.c.b16 %v1769, %v1768
  %v1801 = vpack.c.b16 %v1771, %v1770
  %v1802 = vpack.c.b16 %v1773, %v1772
  %v1803 = vpack.c.b16 %v1775, %v1774
  %v1804 = vpack.c.b16 %v1777, %v1776
  %v1805 = vpack.c.b16 %v1779, %v1778
  %v1806 = vpack.c.b16 %v1781, %v1780
  %v1807 = vpack.c.b16 %v1783, %v1782
  %1832 = vst [vmem:[%s5] sm:$0xff] %v1784
  %1833 = vst [vmem:[%s5 + $0x8] sm:$0xff] %v1785
  %1834 = vst [vmem:[%s5 + $0x10] sm:$0xff] %v1786
  %1835 = vst [vmem:[%s5 + $0x18] sm:$0xff] %v1787
  %1836 = vst [vmem:[%s5 + $0x20] sm:$0xff] %v1788
  %1837 = vst [vmem:[%s5 + $0x28] sm:$0xff] %v1789
  %1838 = vst [vmem:[%s5 + $0x30] sm:$0xff] %v1790
  %1839 = vst [vmem:[%s5 + $0x38] sm:$0xff] %v1791
  %1840 = vst [vmem:[%s5 + $0x40] sm:$0xff] %v1792
  %1841 = vst [vmem:[%s5 + $0x48] sm:$0xff] %v1793
  %1842 = vst [vmem:[%s5 + $0x50] sm:$0xff] %v1794
  %1843 = vst [vmem:[%s5 + $0x58] sm:$0xff] %v1795
  %1844 = vst [vmem:[%s5 + $0x60] sm:$0xff] %v1796
  %1845 = vst [vmem:[%s5 + $0x68] sm:$0xff] %v1797
  %1846 = vst [vmem:[%s5 + $0x70] sm:$0xff] %v1798
  %1847 = vst [vmem:[%s5 + $0x78] sm:$0xff] %v1799
  %1848 = vst [vmem:[%s5 + $0x80] sm:$0xff] %v1800
  %1849 = vst [vmem:[%s5 + $0x88] sm:$0xff] %v1801
  %1850 = vst [vmem:[%s5 + $0x90] sm:$0xff] %v1802
  %1851 = vst [vmem:[%s5 + $0x98] sm:$0xff] %v1803
  %1852 = vst [vmem:[%s5 + $0xa0] sm:$0x11] %v1804
  %1853 = vst [vmem:[%s5 + $0xa8] sm:$0x11] %v1805
  %1854 = vst [vmem:[%s5 + $0xb0] sm:$0x11] %v1806
  %1855 = vst [vmem:[%s5 + $0xb8] sm:$0x11] %v1807
  // Predicated region
  $region22: #{dino_extractor_forward.65} parent=0 // pred_check
    _
  $region23: #{dino_extractor_forward.65} parent=0 // pred_check_branch
    %1857 = sbr.rel (0) target = $region25
  $region24: #{dino_extractor_forward.65} parent=0 // pred_region
    _
  $region25: #{dino_extractor_forward.65} parent=0 // pred_fallthru
    _
  // Predicated region
  $region26: #{dino_extractor_forward.65} parent=0 // pred_check
    _
  $region27: #{dino_extractor_forward.65} parent=0 // pred_check_branch
    %1859 = sbr.rel (0) target = $region29
  $region28: #{dino_extractor_forward.65} parent=0 // pred_region
    _
  $region29: #{dino_extractor_forward.65} parent=0 // pred_fallthru
    _

</llo_original>
